<compile_context>
chip_gen: v7x
topology: tpu7x:2x2x1
jax: 0.10.0
libtpu: 0.0.40
codegen_flags: <defaults>
</compile_context>

<pallas_src>
import jax
import jax.numpy as jnp
from jax import lax
from jax.experimental import pallas as pl
from jax.experimental.pallas import tpu as pltpu


def _round_up(x, m):
    return (x + m - 1) // m * m


def _pick_m_tile(hw):
    if hw <= 1024:
        return hw
    for cand in (1024, 512, 256, 128):
        if hw % cand == 0:
            return cand
    return hw


def _compiler_params():
    kwargs = dict(dimension_semantics=("parallel", "arbitrary"))
    try:
        cap = int(pltpu.get_tpu_info().vmem_capacity_bytes)
        kwargs["vmem_limit_bytes"] = (cap * 3) // 4   # leave headroom per gen
    except Exception:
        pass                                          # fall back to default limit
    return pltpu.CompilerParams(**kwargs)


@jax.jit
def residual_stack(x_nhwc, w1_hwio, w2_io):
    """x_nhwc: (N,H,W,C) f32; w1_hwio: (L,3,3,C,Cmid); w2_io: (L,Cmid,C)."""
    N, H, W, C = x_nhwc.shape
    L, _, _, _, Cmid = w1_hwio.shape
    Cp = _round_up(C, 128)
    Cmid_p = _round_up(Cmid, 128)
    HW = H * W
    # Flattened zero halo: top/bottom pads must cover shifts of +-(W+1) rows.
    # Top pad rounded to the bf16 sublane tile so the interior store is
    # unmasked; the shifted reads carry the (cheap) misalignment instead.
    P0 = _round_up(W + 1, 16)
    P1 = _round_up(W + 1, 8)
    TM = _pick_m_tile(HW)

    # ---- wrapper-side prep: lane-dense channel padding, bf16 weights ------
    xf = jnp.pad(x_nhwc, ((0, 0), (0, 0), (0, 0), (0, Cp - C))).reshape(N, HW, Cp)
    w1 = w1_hwio.reshape(L, 9, C, Cmid)
    w1 = jnp.pad(w1, ((0, 0), (0, 0), (0, Cp - C), (0, Cmid_p - Cmid)))
    w1 = w1.astype(jnp.bfloat16)                        # (L, 9, Cp, Cmid_p)
    w2 = jnp.pad(w2_io, ((0, 0), (0, Cmid_p - Cmid), (0, Cp - C)))
    w2 = w2.astype(jnp.bfloat16)                        # (L, Cmid_p, Cp)
    # Column (w) index of every flattened row: used to zero horizontal
    # out-of-bounds taps of the 3x3 window without any in-kernel modulo.
    w_idx = jnp.tile(jnp.arange(W, dtype=jnp.int32), H).reshape(HW, 1)

    def kernel(x_ref, widx_ref, w1_ref, w2_ref, o_ref, xpad_ref, res_ref):
        # x_ref   : (1, HW, Cp)        f32 input image (flattened spatial)
        # widx_ref: (HW, 1)            int32 column index per flattened row
        # w1_ref  : (1, 9, Cp, Cmid_p) bf16 3x3 weights for this layer
        # w2_ref  : (1, Cmid_p, Cp)    bf16 1x1 weights for this layer
        # o_ref   : (1, HW, Cp)        output, written only at the last layer
        # xpad_ref: (P0+HW+P1, Cp)     bf16 zero-halo snapshot of ReLU(residual)
        # res_ref : (HW, Cp)           f32 residual carried across layers
        l = pl.program_id(1)
        num_layers = pl.num_programs(1)

        @pl.when(l == 0)
        def _():
            # Zero only the halo rows (the interior is rewritten every layer)
            # and load this image into the f32 residual accumulator.
            xpad_ref[0:P0, :] = jnp.zeros((P0, Cp), jnp.bfloat16)
            xpad_ref[P0 + HW:P0 + HW + P1, :] = jnp.zeros((P1, Cp), jnp.bfloat16)
            res_ref[...] = x_ref[0].astype(jnp.float32)

        # Snapshot ReLU(residual) into the halo buffer: ONE aligned lane-dense
        # bf16 store; all nine shifted taps below are reads from this buffer.
        xpad_ref[P0:P0 + HW, :] = jnp.maximum(res_ref[...], 0.0).astype(jnp.bfloat16)

        w2b = w2_ref[0]                                         # (Cmid_p, Cp)

        for m0 in range(0, HW, TM):                             # static M tiling
            w_col = widx_ref[m0:m0 + TM, :]                     # (TM, 1) int32
            not_first = w_col != 0
            not_last = w_col != (W - 1)
            acc = None
            for dh in range(3):
                for dw in range(3):
                    k = dh * 3 + dw
                    s = (dh - 1) * W + (dw - 1)                 # flattened shift
                    slab = xpad_ref[P0 + m0 + s:P0 + m0 + s + TM, :]  # (TM, Cp)
                    if dw == 0:      # left tap invalid in column 0
                        slab = jnp.where(not_first, slab, 0)
                    elif dw == 2:    # right tap invalid in column W-1
                        slab = jnp.where(not_last, slab, 0)
                    d = jnp.dot(slab, w1_ref[0, k],
                                preferred_element_type=jnp.float32)   # (TM, Cmid_p)
                    acc = d if acc is None else acc + d
            mid = jnp.maximum(acc, 0.0).astype(jnp.bfloat16)    # ReLU, lane-dense
            out = jnp.dot(mid, w2b, preferred_element_type=jnp.float32)  # (TM, Cp)
            res_ref[m0:m0 + TM, :] = res_ref[m0:m0 + TM, :] + out

        @pl.when(l == num_layers - 1)
        def _():
            o_ref[0] = jnp.maximum(res_ref[...], 0.0).astype(o_ref.dtype)

    out_flat = pl.pallas_call(
        kernel,
        out_shape=jax.ShapeDtypeStruct((N, HW, Cp), x_nhwc.dtype),
        grid_spec=pltpu.PrefetchScalarGridSpec(
            num_scalar_prefetch=0,
            grid=(N, L),        # batch (parallel) x layer (arbitrary, innermost)
            in_specs=[
                pl.BlockSpec((1, HW, Cp), lambda n, l: (n, 0, 0)),
                pl.BlockSpec((HW, 1), lambda n, l: (0, 0)),
                pl.BlockSpec((1, 9, Cp, Cmid_p), lambda n, l: (l, 0, 0, 0)),
                pl.BlockSpec((1, Cmid_p, Cp), lambda n, l: (l, 0, 0)),
            ],
            out_specs=pl.BlockSpec((1, HW, Cp), lambda n, l: (n, 0, 0)),
            scratch_shapes=[
                pltpu.VMEM((P0 + HW + P1, Cp), jnp.bfloat16),   # halo snapshot
                pltpu.VMEM((HW, Cp), jnp.float32),              # residual carry
            ],
        ),
        compiler_params=_compiler_params(),
    )(xf, w_idx, w1, w2)

    # Channel padding is exact (padded channels stay identically zero).
    return out_flat[:, :, :C].reshape(N, H, W, C)


def ref_residual_stack(x_nhwc, w1, w2):
    """Pure-JAX f32 reference (same semantics as the PyTorch module, NHWC)."""
    L = w1.shape[0]
    x = x_nhwc.astype(jnp.float32)
    for l in range(L):
        h = jax.nn.relu(x)
        y = lax.conv_general_dilated(
            h, w1[l], window_strides=(1, 1), padding="SAME",
            dimension_numbers=("NHWC", "HWIO", "NHWC"))
        y = jax.nn.relu(y)
        y = jnp.einsum("nhwc,cd->nhwd", y, w2[l])
        x = x + y
    return jax.nn.relu(x)


if __name__ == "__main__":
    # Small deterministic config: batch=2, in_channels=8, spatial=16x16, 2 layers.
    N, C, H, W = 2, 8, 16, 16
    L = 2
    Cmid = C // 2

    key = jax.random.PRNGKey(0)
    kx, kw1, kw2 = jax.random.split(key, 3)

    # Input in PyTorch NCHW convention, moved to NHWC for the kernel.
    x_nchw = jax.random.normal(kx, (N, C, H, W), jnp.float32)
    x_nhwc = jnp.transpose(x_nchw, (0, 2, 3, 1))

    # Conv weights generated in PyTorch OIHW, converted to kernel layouts.
    w1_oihw = 0.1 * jax.random.normal(kw1, (L, Cmid, C, 3, 3), jnp.float32)
    w2_oihw = 0.1 * jax.random.normal(kw2, (L, C, Cmid, 1, 1), jnp.float32)
    w1_hwio = jnp.transpose(w1_oihw, (0, 3, 4, 2, 1))          # (L, 3, 3, C, Cmid)
    w2_io = jnp.transpose(w2_oihw[..., 0, 0], (0, 2, 1))       # (L, Cmid, C)

    out = jax.block_until_ready(residual_stack(x_nhwc, w1_hwio, w2_io))
    ref = ref_residual_stack(x_nhwc, w1_hwio, w2_io)

    assert out.shape == (N, H, W, C)
    # bf16 matmul operands (f32 accumulation) -> slightly looser tolerance.
    max_err = jnp.max(jnp.abs(out - ref))
    assert jnp.allclose(out, ref, atol=3e-2, rtol=3e-2), f"max abs err {max_err}"

    print("KERNEL_OK")
</pallas_src>

<mosaic_0001>
module attributes {stable_mosaic.version = 11 : i64} {
  func.func @kernel(%arg0: i32, %arg1: i32, %arg2: memref<1x256x128xf32, #tpu.memory_space<vmem>>, %arg3: memref<256x1xi32, #tpu.memory_space<vmem>>, %arg4: memref<1x9x128x128xbf16, #tpu.memory_space<vmem>>, %arg5: memref<1x128x128xbf16, #tpu.memory_space<vmem>>, %arg6: memref<1x256x128xf32, #tpu.memory_space<vmem>>, %arg7: memref<312x128xbf16, #tpu.memory_space<vmem>>, %arg8: memref<256x128xf32, #tpu.memory_space<vmem>>) attributes {dimension_semantics = [#tpu.dimension_semantics<parallel>, #tpu.dimension_semantics<arbitrary>], iteration_bounds = array<i64: 2, 2>, scalar_prefetch = 0 : i64, scratch_operands = 2 : i64, tpu.core_type = #tpu.core_type<tc>, window_params = [{transform_indices = @transform_0, window_bounds = array<i64: 1, 256, 128>}, {pipeline_mode = #tpu.pipeline_mode<synchronous>, transform_indices = @transform_1, window_bounds = array<i64: 256, 1>}, {transform_indices = @transform_2, window_bounds = array<i64: 1, 9, 128, 128>}, {transform_indices = @transform_3, window_bounds = array<i64: 1, 128, 128>}, {transform_indices = @transform_4, window_bounds = array<i64: 1, 256, 128>}]} {
    %c0_i32 = arith.constant 0 : i32
    %0 = arith.cmpi eq, %arg1, %c0_i32 : i32
    %1 = arith.extui %0 : i1 to i32
    %c0_i32_0 = arith.constant 0 : i32
    %2 = arith.cmpi ne, %1, %c0_i32_0 : i32
    scf.if %2 {
      %cst_69 = arith.constant 0.000000e+00 : bf16
      %99 = vector.broadcast %cst_69 : bf16 to vector<32x128xbf16>
      %c0_70 = arith.constant 0 : index
      %c0_71 = arith.constant 0 : index
      %100 = vector.load %arg7[%c0_70, %c0_71] : memref<312x128xbf16, #tpu.memory_space<vmem>>, vector<32x128xbf16>
      tpu.vector_store %arg7[%c0_70, %c0_71], %99 {strides = array<i32>} : memref<312x128xbf16, #tpu.memory_space<vmem>>, vector<32x128xbf16>,
      %cst_72 = arith.constant 0.000000e+00 : bf16
      %101 = vector.broadcast %cst_72 : bf16 to vector<24x128xbf16>
      %c288 = arith.constant 288 : index
      %c0_73 = arith.constant 0 : index
      %102 = vector.load %arg7[%c288, %c0_73] : memref<312x128xbf16, #tpu.memory_space<vmem>>, vector<24x128xbf16>
      tpu.vector_store %arg7[%c288, %c0_73], %101 {strides = array<i32>} : memref<312x128xbf16, #tpu.memory_space<vmem>>, vector<24x128xbf16>,
      %c0_74 = arith.constant 0 : index
      %c0_75 = arith.constant 0 : index
      %c0_76 = arith.constant 0 : index
      %103 = vector.load %arg2[%c0_74, %c0_75, %c0_76] : memref<1x256x128xf32, #tpu.memory_space<vmem>>, vector<1x256x128xf32>
      %104 = vector.shape_cast %103 : vector<1x256x128xf32> to vector<256x128xf32>
      %c0_77 = arith.constant 0 : index
      %c0_78 = arith.constant 0 : index
      %105 = vector.load %arg8[%c0_77, %c0_78] : memref<256x128xf32, #tpu.memory_space<vmem>>, vector<256x128xf32>
      tpu.vector_store %arg8[%c0_77, %c0_78], %104 {strides = array<i32>} : memref<256x128xf32, #tpu.memory_space<vmem>>, vector<256x128xf32>,
    } else {
    }
    %c0 = arith.constant 0 : index
    %c0_1 = arith.constant 0 : index
    %3 = vector.load %arg8[%c0, %c0_1] : memref<256x128xf32, #tpu.memory_space<vmem>>, vector<256x128xf32>
    %cst = arith.constant 0.000000e+00 : f32
    %4 = vector.broadcast %cst : f32 to vector<256x128xf32>
    %5 = arith.maximumf %3, %4 : vector<256x128xf32>
    %6 = arith.truncf %5 : vector<256x128xf32> to vector<256x128xbf16>
    %c32 = arith.constant 32 : index
    %c0_2 = arith.constant 0 : index
    %7 = vector.load %arg7[%c32, %c0_2] : memref<312x128xbf16, #tpu.memory_space<vmem>>, vector<256x128xbf16>
    tpu.vector_store %arg7[%c32, %c0_2], %6 {strides = array<i32>} : memref<312x128xbf16, #tpu.memory_space<vmem>>, vector<256x128xbf16>,
    %c0_3 = arith.constant 0 : index
    %c0_4 = arith.constant 0 : index
    %c0_5 = arith.constant 0 : index
    %8 = vector.load %arg5[%c0_3, %c0_4, %c0_5] : memref<1x128x128xbf16, #tpu.memory_space<vmem>>, vector<1x128x128xbf16>
    %9 = vector.shape_cast %8 : vector<1x128x128xbf16> to vector<128x128xbf16>
    %c0_6 = arith.constant 0 : index
    %c0_7 = arith.constant 0 : index
    %10 = vector.load %arg3[%c0_6, %c0_7] : memref<256x1xi32, #tpu.memory_space<vmem>>, vector<256x1xi32>
    %c0_i32_8 = arith.constant 0 : i32
    %11 = vector.broadcast %c0_i32_8 : i32 to vector<256x1xi32>
    %12 = arith.cmpi ne, %10, %11 : vector<256x1xi32>
    %c15_i32 = arith.constant 15 : i32
    %13 = vector.broadcast %c15_i32 : i32 to vector<256x1xi32>
    %14 = arith.cmpi ne, %10, %13 : vector<256x1xi32>
    %c15 = arith.constant 15 : index
    %c0_9 = arith.constant 0 : index
    %15 = vector.load %arg7[%c15, %c0_9] : memref<312x128xbf16, #tpu.memory_space<vmem>>, vector<256x128xbf16>
    %c0_i32_10 = arith.constant 0 : i32
    %16 = arith.sitofp %c0_i32_10 : i32 to bf16
    %17 = vector.shape_cast %12 : vector<256x1xi1> to vector<256x1xi1>
    %18 = vector.broadcast %17 : vector<256x1xi1> to vector<256x128xi1>
    %19 = vector.broadcast %16 : bf16 to vector<256x128xbf16>
    %20 = arith.select %18, %15, %19 : vector<256x128xi1>, vector<256x128xbf16>
    %c0_11 = arith.constant 0 : index
    %c0_12 = arith.constant 0 : index
    %c0_13 = arith.constant 0 : index
    %c0_14 = arith.constant 0 : index
    %21 = vector.load %arg4[%c0_11, %c0_12, %c0_13, %c0_14] : memref<1x9x128x128xbf16, #tpu.memory_space<vmem>>, vector<1x1x128x128xbf16>
    %22 = vector.shape_cast %21 : vector<1x1x128x128xbf16> to vector<128x128xbf16>
    %cst_15 = arith.constant dense<0.000000e+00> : vector<256x128xf32>
    %23 = tpu.matmul %20, %22, %cst_15 {dimension_numbers = #tpu.dot_dimension_numbers<[1], [0], [0], [1], [0, 0, 1, 1], [], []>} : vector<256x128xbf16>, vector<128x128xbf16>, vector<256x128xf32> -> vector<256x128xf32>
    %c16 = arith.constant 16 : index
    %c0_16 = arith.constant 0 : index
    %24 = vector.load %arg7[%c16, %c0_16] : memref<312x128xbf16, #tpu.memory_space<vmem>>, vector<256x128xbf16>
    %c0_17 = arith.constant 0 : index
    %c1 = arith.constant 1 : index
    %c0_18 = arith.constant 0 : index
    %c0_19 = arith.constant 0 : index
    %25 = vector.load %arg4[%c0_17, %c1, %c0_18, %c0_19] : memref<1x9x128x128xbf16, #tpu.memory_space<vmem>>, vector<1x1x128x128xbf16>
    %26 = vector.shape_cast %25 : vector<1x1x128x128xbf16> to vector<128x128xbf16>
    %cst_20 = arith.constant dense<0.000000e+00> : vector<256x128xf32>
    %27 = tpu.matmul %24, %26, %cst_20 {dimension_numbers = #tpu.dot_dimension_numbers<[1], [0], [0], [1], [0, 0, 1, 1], [], []>} : vector<256x128xbf16>, vector<128x128xbf16>, vector<256x128xf32> -> vector<256x128xf32>
    %28 = arith.addf %23, %27 : vector<256x128xf32>
    %c17 = arith.constant 17 : index
    %c0_21 = arith.constant 0 : index
    %29 = vector.load %arg7[%c17, %c0_21] : memref<312x128xbf16, #tpu.memory_space<vmem>>, vector<256x128xbf16>
    %c0_i32_22 = arith.constant 0 : i32
    %30 = arith.sitofp %c0_i32_22 : i32 to bf16
    %31 = vector.shape_cast %14 : vector<256x1xi1> to vector<256x1xi1>
    %32 = vector.broadcast %31 : vector<256x1xi1> to vector<256x128xi1>
    %33 = vector.broadcast %30 : bf16 to vector<256x128xbf16>
    %34 = arith.select %32, %29, %33 : vector<256x128xi1>, vector<256x128xbf16>
    %c0_23 = arith.constant 0 : index
    %c2 = arith.constant 2 : index
    %c0_24 = arith.constant 0 : index
    %c0_25 = arith.constant 0 : index
    %35 = vector.load %arg4[%c0_23, %c2, %c0_24, %c0_25] : memref<1x9x128x128xbf16, #tpu.memory_space<vmem>>, vector<1x1x128x128xbf16>
    %36 = vector.shape_cast %35 : vector<1x1x128x128xbf16> to vector<128x128xbf16>
    %cst_26 = arith.constant dense<0.000000e+00> : vector<256x128xf32>
    %37 = tpu.matmul %34, %36, %cst_26 {dimension_numbers = #tpu.dot_dimension_numbers<[1], [0], [0], [1], [0, 0, 1, 1], [], []>} : vector<256x128xbf16>, vector<128x128xbf16>, vector<256x128xf32> -> vector<256x128xf32>
    %38 = arith.addf %28, %37 : vector<256x128xf32>
    %c31 = arith.constant 31 : index
    %c0_27 = arith.constant 0 : index
    %39 = vector.load %arg7[%c31, %c0_27] : memref<312x128xbf16, #tpu.memory_space<vmem>>, vector<256x128xbf16>
    %c0_i32_28 = arith.constant 0 : i32
    %40 = arith.sitofp %c0_i32_28 : i32 to bf16
    %41 = vector.shape_cast %12 : vector<256x1xi1> to vector<256x1xi1>
    %42 = vector.broadcast %41 : vector<256x1xi1> to vector<256x128xi1>
    %43 = vector.broadcast %40 : bf16 to vector<256x128xbf16>
    %44 = arith.select %42, %39, %43 : vector<256x128xi1>, vector<256x128xbf16>
    %c0_29 = arith.constant 0 : index
    %c3 = arith.constant 3 : index
    %c0_30 = arith.constant 0 : index
    %c0_31 = arith.constant 0 : index
    %45 = vector.load %arg4[%c0_29, %c3, %c0_30, %c0_31] : memref<1x9x128x128xbf16, #tpu.memory_space<vmem>>, vector<1x1x128x128xbf16>
    %46 = vector.shape_cast %45 : vector<1x1x128x128xbf16> to vector<128x128xbf16>
    %cst_32 = arith.constant dense<0.000000e+00> : vector<256x128xf32>
    %47 = tpu.matmul %44, %46, %cst_32 {dimension_numbers = #tpu.dot_dimension_numbers<[1], [0], [0], [1], [0, 0, 1, 1], [], []>} : vector<256x128xbf16>, vector<128x128xbf16>, vector<256x128xf32> -> vector<256x128xf32>
    %48 = arith.addf %38, %47 : vector<256x128xf32>
    %c32_33 = arith.constant 32 : index
    %c0_34 = arith.constant 0 : index
    %49 = vector.load %arg7[%c32_33, %c0_34] : memref<312x128xbf16, #tpu.memory_space<vmem>>, vector<256x128xbf16>
    %c0_35 = arith.constant 0 : index
    %c4 = arith.constant 4 : index
    %c0_36 = arith.constant 0 : index
    %c0_37 = arith.constant 0 : index
    %50 = vector.load %arg4[%c0_35, %c4, %c0_36, %c0_37] : memref<1x9x128x128xbf16, #tpu.memory_space<vmem>>, vector<1x1x128x128xbf16>
    %51 = vector.shape_cast %50 : vector<1x1x128x128xbf16> to vector<128x128xbf16>
    %cst_38 = arith.constant dense<0.000000e+00> : vector<256x128xf32>
    %52 = tpu.matmul %49, %51, %cst_38 {dimension_numbers = #tpu.dot_dimension_numbers<[1], [0], [0], [1], [0, 0, 1, 1], [], []>} : vector<256x128xbf16>, vector<128x128xbf16>, vector<256x128xf32> -> vector<256x128xf32>
    %53 = arith.addf %48, %52 : vector<256x128xf32>
    %c33 = arith.constant 33 : index
    %c0_39 = arith.constant 0 : index
    %54 = vector.load %arg7[%c33, %c0_39] : memref<312x128xbf16, #tpu.memory_space<vmem>>, vector<256x128xbf16>
    %c0_i32_40 = arith.constant 0 : i32
    %55 = arith.sitofp %c0_i32_40 : i32 to bf16
    %56 = vector.shape_cast %14 : vector<256x1xi1> to vector<256x1xi1>
    %57 = vector.broadcast %56 : vector<256x1xi1> to vector<256x128xi1>
    %58 = vector.broadcast %55 : bf16 to vector<256x128xbf16>
    %59 = arith.select %57, %54, %58 : vector<256x128xi1>, vector<256x128xbf16>
    %c0_41 = arith.constant 0 : index
    %c5 = arith.constant 5 : index
    %c0_42 = arith.constant 0 : index
    %c0_43 = arith.constant 0 : index
    %60 = vector.load %arg4[%c0_41, %c5, %c0_42, %c0_43] : memref<1x9x128x128xbf16, #tpu.memory_space<vmem>>, vector<1x1x128x128xbf16>
    %61 = vector.shape_cast %60 : vector<1x1x128x128xbf16> to vector<128x128xbf16>
    %cst_44 = arith.constant dense<0.000000e+00> : vector<256x128xf32>
    %62 = tpu.matmul %59, %61, %cst_44 {dimension_numbers = #tpu.dot_dimension_numbers<[1], [0], [0], [1], [0, 0, 1, 1], [], []>} : vector<256x128xbf16>, vector<128x128xbf16>, vector<256x128xf32> -> vector<256x128xf32>
    %63 = arith.addf %53, %62 : vector<256x128xf32>
    %c47 = arith.constant 47 : index
    %c0_45 = arith.constant 0 : index
    %64 = vector.load %arg7[%c47, %c0_45] : memref<312x128xbf16, #tpu.memory_space<vmem>>, vector<256x128xbf16>
    %c0_i32_46 = arith.constant 0 : i32
    %65 = arith.sitofp %c0_i32_46 : i32 to bf16
    %66 = vector.shape_cast %12 : vector<256x1xi1> to vector<256x1xi1>
    %67 = vector.broadcast %66 : vector<256x1xi1> to vector<256x128xi1>
    %68 = vector.broadcast %65 : bf16 to vector<256x128xbf16>
    %69 = arith.select %67, %64, %68 : vector<256x128xi1>, vector<256x128xbf16>
    %c0_47 = arith.constant 0 : index
    %c6 = arith.constant 6 : index
    %c0_48 = arith.constant 0 : index
    %c0_49 = arith.constant 0 : index
    %70 = vector.load %arg4[%c0_47, %c6, %c0_48, %c0_49] : memref<1x9x128x128xbf16, #tpu.memory_space<vmem>>, vector<1x1x128x128xbf16>
    %71 = vector.shape_cast %70 : vector<1x1x128x128xbf16> to vector<128x128xbf16>
    %cst_50 = arith.constant dense<0.000000e+00> : vector<256x128xf32>
    %72 = tpu.matmul %69, %71, %cst_50 {dimension_numbers = #tpu.dot_dimension_numbers<[1], [0], [0], [1], [0, 0, 1, 1], [], []>} : vector<256x128xbf16>, vector<128x128xbf16>, vector<256x128xf32> -> vector<256x128xf32>
    %73 = arith.addf %63, %72 : vector<256x128xf32>
    %c48 = arith.constant 48 : index
    %c0_51 = arith.constant 0 : index
    %74 = vector.load %arg7[%c48, %c0_51] : memref<312x128xbf16, #tpu.memory_space<vmem>>, vector<256x128xbf16>
    %c0_52 = arith.constant 0 : index
    %c7 = arith.constant 7 : index
    %c0_53 = arith.constant 0 : index
    %c0_54 = arith.constant 0 : index
    %75 = vector.load %arg4[%c0_52, %c7, %c0_53, %c0_54] : memref<1x9x128x128xbf16, #tpu.memory_space<vmem>>, vector<1x1x128x128xbf16>
    %76 = vector.shape_cast %75 : vector<1x1x128x128xbf16> to vector<128x128xbf16>
    %cst_55 = arith.constant dense<0.000000e+00> : vector<256x128xf32>
    %77 = tpu.matmul %74, %76, %cst_55 {dimension_numbers = #tpu.dot_dimension_numbers<[1], [0], [0], [1], [0, 0, 1, 1], [], []>} : vector<256x128xbf16>, vector<128x128xbf16>, vector<256x128xf32> -> vector<256x128xf32>
    %78 = arith.addf %73, %77 : vector<256x128xf32>
    %c49 = arith.constant 49 : index
    %c0_56 = arith.constant 0 : index
    %79 = vector.load %arg7[%c49, %c0_56] : memref<312x128xbf16, #tpu.memory_space<vmem>>, vector<256x128xbf16>
    %c0_i32_57 = arith.constant 0 : i32
    %80 = arith.sitofp %c0_i32_57 : i32 to bf16
    %81 = vector.shape_cast %14 : vector<256x1xi1> to vector<256x1xi1>
    %82 = vector.broadcast %81 : vector<256x1xi1> to vector<256x128xi1>
    %83 = vector.broadcast %80 : bf16 to vector<256x128xbf16>
    %84 = arith.select %82, %79, %83 : vector<256x128xi1>, vector<256x128xbf16>
    %c0_58 = arith.constant 0 : index
    %c8 = arith.constant 8 : index
    %c0_59 = arith.constant 0 : index
    %c0_60 = arith.constant 0 : index
    %85 = vector.load %arg4[%c0_58, %c8, %c0_59, %c0_60] : memref<1x9x128x128xbf16, #tpu.memory_space<vmem>>, vector<1x1x128x128xbf16>
    %86 = vector.shape_cast %85 : vector<1x1x128x128xbf16> to vector<128x128xbf16>
    %cst_61 = arith.constant dense<0.000000e+00> : vector<256x128xf32>
    %87 = tpu.matmul %84, %86, %cst_61 {dimension_numbers = #tpu.dot_dimension_numbers<[1], [0], [0], [1], [0, 0, 1, 1], [], []>} : vector<256x128xbf16>, vector<128x128xbf16>, vector<256x128xf32> -> vector<256x128xf32>
    %88 = arith.addf %78, %87 : vector<256x128xf32>
    %cst_62 = arith.constant 0.000000e+00 : f32
    %89 = vector.broadcast %cst_62 : f32 to vector<256x128xf32>
    %90 = arith.maximumf %88, %89 : vector<256x128xf32>
    %91 = arith.truncf %90 : vector<256x128xf32> to vector<256x128xbf16>
    %cst_63 = arith.constant dense<0.000000e+00> : vector<256x128xf32>
    %92 = tpu.matmul %91, %9, %cst_63 {dimension_numbers = #tpu.dot_dimension_numbers<[1], [0], [0], [1], [0, 0, 1, 1], [], []>} : vector<256x128xbf16>, vector<128x128xbf16>, vector<256x128xf32> -> vector<256x128xf32>
    %c0_64 = arith.constant 0 : index
    %c0_65 = arith.constant 0 : index
    %93 = vector.load %arg8[%c0_64, %c0_65] : memref<256x128xf32, #tpu.memory_space<vmem>>, vector<256x128xf32>
    %94 = arith.addf %93, %92 : vector<256x128xf32>
    %c0_66 = arith.constant 0 : index
    %c0_67 = arith.constant 0 : index
    %95 = vector.load %arg8[%c0_66, %c0_67] : memref<256x128xf32, #tpu.memory_space<vmem>>, vector<256x128xf32>
    tpu.vector_store %arg8[%c0_66, %c0_67], %94 {strides = array<i32>} : memref<256x128xf32, #tpu.memory_space<vmem>>, vector<256x128xf32>,
    %c1_i32 = arith.constant 1 : i32
    %96 = arith.cmpi eq, %arg1, %c1_i32 : i32
    %97 = arith.extui %96 : i1 to i32
    %c0_i32_68 = arith.constant 0 : i32
    %98 = arith.cmpi ne, %97, %c0_i32_68 : i32
    scf.if %98 {
      %c0_69 = arith.constant 0 : index
      %c0_70 = arith.constant 0 : index
      %99 = vector.load %arg8[%c0_69, %c0_70] : memref<256x128xf32, #tpu.memory_space<vmem>>, vector<256x128xf32>
      %cst_71 = arith.constant 0.000000e+00 : f32
      %100 = vector.broadcast %cst_71 : f32 to vector<256x128xf32>
      %101 = arith.maximumf %99, %100 : vector<256x128xf32>
      %c0_72 = arith.constant 0 : index
      %c0_73 = arith.constant 0 : index
      %c0_74 = arith.constant 0 : index
      %102 = vector.load %arg6[%c0_72, %c0_73, %c0_74] : memref<1x256x128xf32, #tpu.memory_space<vmem>>, vector<1x256x128xf32>
      %103 = vector.shape_cast %102 : vector<1x256x128xf32> to vector<256x128xf32>
      %104 = vector.shape_cast %101 : vector<256x128xf32> to vector<1x256x128xf32>
      tpu.vector_store %arg6[%c0_72, %c0_73, %c0_74], %104 {strides = array<i32>} : memref<1x256x128xf32, #tpu.memory_space<vmem>>, vector<1x256x128xf32>,
    } else {
    }
    return
  }
  func.func @transform_0(%arg0: i32, %arg1: i32) -> (i32, i32, i32) {
    %c0_i32 = arith.constant 0 : i32
    %c0_i32_0 = arith.constant 0 : i32
    %c0_i32_1 = arith.constant 0 : i32
    return %arg0, %c0_i32, %c0_i32_0 : i32, i32, i32
  }
  func.func @transform_1(%arg0: i32, %arg1: i32) -> (i32, i32) {
    %c0_i32 = arith.constant 0 : i32
    %c0_i32_0 = arith.constant 0 : i32
    %c0_i32_1 = arith.constant 0 : i32
    return %c0_i32, %c0_i32_0 : i32, i32
  }
  func.func @transform_2(%arg0: i32, %arg1: i32) -> (i32, i32, i32, i32) {
    %c0_i32 = arith.constant 0 : i32
    %c0_i32_0 = arith.constant 0 : i32
    %c0_i32_1 = arith.constant 0 : i32
    %c0_i32_2 = arith.constant 0 : i32
    return %arg1, %c0_i32, %c0_i32_0, %c0_i32_1 : i32, i32, i32, i32
  }
  func.func @transform_3(%arg0: i32, %arg1: i32) -> (i32, i32, i32) {
    %c0_i32 = arith.constant 0 : i32
    %c0_i32_0 = arith.constant 0 : i32
    %c0_i32_1 = arith.constant 0 : i32
    return %arg1, %c0_i32, %c0_i32_0 : i32, i32, i32
  }
  func.func @transform_4(%arg0: i32, %arg1: i32) -> (i32, i32, i32) {
    %c0_i32 = arith.constant 0 : i32
    %c0_i32_0 = arith.constant 0 : i32
    %c0_i32_1 = arith.constant 0 : i32
    return %arg0, %c0_i32, %c0_i32_0 : i32, i32, i32
  }
}

</mosaic_0001>

<llo_original>
// kernel: tile.0
$region0: #{tile.0}
  %s0 = inlined_call_operand.vmem [shape: s32[16,16], index: 0, kind: input, shape index: {}]
  %s1 = inlined_call_operand.vmem [shape: s32[256,1], index: 1, kind: output, shape index: {}]
  %v2 = vld [vmem:[%s0] sm:$0xff]
  %vm3 = vcmask 7168
  %4 = vst.msk [vmem:[%s1] ss:$16 sm:$0x3] %vm3, %v2
  %5 = vst.msk [vmem:[%s1] ss:$16 sm:$0xc] %vm3, %v2
  %6 = vst.msk [vmem:[%s1] ss:$16 sm:$0x30] %vm3, %v2
  %7 = vst.msk [vmem:[%s1] ss:$16 sm:$0xc0] %vm3, %v2
  %s8 = scalar_lea.vmem %s0, 8
  %v9 = vld [vmem:[%s8] sm:$0xff]
  %vm10 = vcmask 7168
  %s11 = scalar_lea.vmem %s1, 128
  %12 = vst.msk [vmem:[%s11] ss:$16 sm:$0x3] %vm10, %v9
  %s13 = scalar_lea.vmem %s1, 128
  %14 = vst.msk [vmem:[%s13] ss:$16 sm:$0xc] %vm10, %v9
  %s15 = scalar_lea.vmem %s1, 128
  %16 = vst.msk [vmem:[%s15] ss:$16 sm:$0x30] %vm10, %v9
  %s17 = scalar_lea.vmem %s1, 128
  %18 = vst.msk [vmem:[%s17] ss:$16 sm:$0xc0] %vm10, %v9
  %v19 = vld [vmem:[%s0] sm:$0xff]
  %20 = vrot.lane.b32.xlu0 %v19, 127
  %v21 = vpop.permute.xlu0 %20
  %vm22 = vcmask 7168
  %s23 = scalar_lea.vmem %s1, 1
  %24 = vst.msk [vmem:[%s23] ss:$16 sm:$0x3] %vm22, %v21
  %s25 = scalar_lea.vmem %s1, 1
  %26 = vst.msk [vmem:[%s25] ss:$16 sm:$0xc] %vm22, %v21
  %s27 = scalar_lea.vmem %s1, 1
  %28 = vst.msk [vmem:[%s27] ss:$16 sm:$0x30] %vm22, %v21
  %s29 = scalar_lea.vmem %s1, 1
  %30 = vst.msk [vmem:[%s29] ss:$16 sm:$0xc0] %vm22, %v21
  %s31 = scalar_lea.vmem %s0, 8
  %v32 = vld [vmem:[%s31] sm:$0xff]
  %33 = vrot.lane.b32.xlu0 %v32, 127
  %v34 = vpop.permute.xlu0 %33
  %vm35 = vcmask 7168
  %s36 = scalar_lea.vmem %s1, 129
  %37 = vst.msk [vmem:[%s36] ss:$16 sm:$0x3] %vm35, %v34
  %s38 = scalar_lea.vmem %s1, 129
  %39 = vst.msk [vmem:[%s38] ss:$16 sm:$0xc] %vm35, %v34
  %s40 = scalar_lea.vmem %s1, 129
  %41 = vst.msk [vmem:[%s40] ss:$16 sm:$0x30] %vm35, %v34
  %s42 = scalar_lea.vmem %s1, 129
  %43 = vst.msk [vmem:[%s42] ss:$16 sm:$0xc0] %vm35, %v34
  %v44 = vld [vmem:[%s0] sm:$0xff]
  %45 = vrot.lane.b32.xlu0 %v44, 126
  %v46 = vpop.permute.xlu0 %45
  %vm47 = vcmask 7168
  %s48 = scalar_lea.vmem %s1, 2
  %49 = vst.msk [vmem:[%s48] ss:$16 sm:$0x3] %vm47, %v46
  %s50 = scalar_lea.vmem %s1, 2
  %51 = vst.msk [vmem:[%s50] ss:$16 sm:$0xc] %vm47, %v46
  %s52 = scalar_lea.vmem %s1, 2
  %53 = vst.msk [vmem:[%s52] ss:$16 sm:$0x30] %vm47, %v46
  %s54 = scalar_lea.vmem %s1, 2
  %55 = vst.msk [vmem:[%s54] ss:$16 sm:$0xc0] %vm47, %v46
  %s56 = scalar_lea.vmem %s0, 8
  %v57 = vld [vmem:[%s56] sm:$0xff]
  %58 = vrot.lane.b32.xlu0 %v57, 126
  %v59 = vpop.permute.xlu0 %58
  %vm60 = vcmask 7168
  %s61 = scalar_lea.vmem %s1, 130
  %62 = vst.msk [vmem:[%s61] ss:$16 sm:$0x3] %vm60, %v59
  %s63 = scalar_lea.vmem %s1, 130
  %64 = vst.msk [vmem:[%s63] ss:$16 sm:$0xc] %vm60, %v59
  %s65 = scalar_lea.vmem %s1, 130
  %66 = vst.msk [vmem:[%s65] ss:$16 sm:$0x30] %vm60, %v59
  %s67 = scalar_lea.vmem %s1, 130
  %68 = vst.msk [vmem:[%s67] ss:$16 sm:$0xc0] %vm60, %v59
  %v69 = vld [vmem:[%s0] sm:$0xff]
  %70 = vrot.lane.b32.xlu0 %v69, 125
  %v71 = vpop.permute.xlu0 %70
  %vm72 = vcmask 7168
  %s73 = scalar_lea.vmem %s1, 3
  %74 = vst.msk [vmem:[%s73] ss:$16 sm:$0x3] %vm72, %v71
  %s75 = scalar_lea.vmem %s1, 3
  %76 = vst.msk [vmem:[%s75] ss:$16 sm:$0xc] %vm72, %v71
  %s77 = scalar_lea.vmem %s1, 3
  %78 = vst.msk [vmem:[%s77] ss:$16 sm:$0x30] %vm72, %v71
  %s79 = scalar_lea.vmem %s1, 3
  %80 = vst.msk [vmem:[%s79] ss:$16 sm:$0xc0] %vm72, %v71
  %s81 = scalar_lea.vmem %s0, 8
  %v82 = vld [vmem:[%s81] sm:$0xff]
  %83 = vrot.lane.b32.xlu0 %v82, 125
  %v84 = vpop.permute.xlu0 %83
  %vm85 = vcmask 7168
  %s86 = scalar_lea.vmem %s1, 131
  %87 = vst.msk [vmem:[%s86] ss:$16 sm:$0x3] %vm85, %v84
  %s88 = scalar_lea.vmem %s1, 131
  %89 = vst.msk [vmem:[%s88] ss:$16 sm:$0xc] %vm85, %v84
  %s90 = scalar_lea.vmem %s1, 131
  %91 = vst.msk [vmem:[%s90] ss:$16 sm:$0x30] %vm85, %v84
  %s92 = scalar_lea.vmem %s1, 131
  %93 = vst.msk [vmem:[%s92] ss:$16 sm:$0xc0] %vm85, %v84
  %v94 = vld [vmem:[%s0] sm:$0xff]
  %95 = vrot.lane.b32.xlu0 %v94, 124
  %v96 = vpop.permute.xlu0 %95
  %vm97 = vcmask 7168
  %s98 = scalar_lea.vmem %s1, 4
  %99 = vst.msk [vmem:[%s98] ss:$16 sm:$0x3] %vm97, %v96
  %s100 = scalar_lea.vmem %s1, 4
  %101 = vst.msk [vmem:[%s100] ss:$16 sm:$0xc] %vm97, %v96
  %s102 = scalar_lea.vmem %s1, 4
  %103 = vst.msk [vmem:[%s102] ss:$16 sm:$0x30] %vm97, %v96
  %s104 = scalar_lea.vmem %s1, 4
  %105 = vst.msk [vmem:[%s104] ss:$16 sm:$0xc0] %vm97, %v96
  %s106 = scalar_lea.vmem %s0, 8
  %v107 = vld [vmem:[%s106] sm:$0xff]
  %108 = vrot.lane.b32.xlu0 %v107, 124
  %v109 = vpop.permute.xlu0 %108
  %vm110 = vcmask 7168
  %s111 = scalar_lea.vmem %s1, 132
  %112 = vst.msk [vmem:[%s111] ss:$16 sm:$0x3] %vm110, %v109
  %s113 = scalar_lea.vmem %s1, 132
  %114 = vst.msk [vmem:[%s113] ss:$16 sm:$0xc] %vm110, %v109
  %s115 = scalar_lea.vmem %s1, 132
  %116 = vst.msk [vmem:[%s115] ss:$16 sm:$0x30] %vm110, %v109
  %s117 = scalar_lea.vmem %s1, 132
  %118 = vst.msk [vmem:[%s117] ss:$16 sm:$0xc0] %vm110, %v109
  %v119 = vld [vmem:[%s0] sm:$0xff]
  %120 = vrot.lane.b32.xlu0 %v119, 123
  %v121 = vpop.permute.xlu0 %120
  %vm122 = vcmask 7168
  %s123 = scalar_lea.vmem %s1, 5
  %124 = vst.msk [vmem:[%s123] ss:$16 sm:$0x3] %vm122, %v121
  %s125 = scalar_lea.vmem %s1, 5
  %126 = vst.msk [vmem:[%s125] ss:$16 sm:$0xc] %vm122, %v121
  %s127 = scalar_lea.vmem %s1, 5
  %128 = vst.msk [vmem:[%s127] ss:$16 sm:$0x30] %vm122, %v121
  %s129 = scalar_lea.vmem %s1, 5
  %130 = vst.msk [vmem:[%s129] ss:$16 sm:$0xc0] %vm122, %v121
  %s131 = scalar_lea.vmem %s0, 8
  %v132 = vld [vmem:[%s131] sm:$0xff]
  %133 = vrot.lane.b32.xlu0 %v132, 123
  %v134 = vpop.permute.xlu0 %133
  %vm135 = vcmask 7168
  %s136 = scalar_lea.vmem %s1, 133
  %137 = vst.msk [vmem:[%s136] ss:$16 sm:$0x3] %vm135, %v134
  %s138 = scalar_lea.vmem %s1, 133
  %139 = vst.msk [vmem:[%s138] ss:$16 sm:$0xc] %vm135, %v134
  %s140 = scalar_lea.vmem %s1, 133
  %141 = vst.msk [vmem:[%s140] ss:$16 sm:$0x30] %vm135, %v134
  %s142 = scalar_lea.vmem %s1, 133
  %143 = vst.msk [vmem:[%s142] ss:$16 sm:$0xc0] %vm135, %v134
  %v144 = vld [vmem:[%s0] sm:$0xff]
  %145 = vrot.lane.b32.xlu0 %v144, 122
  %v146 = vpop.permute.xlu0 %145
  %vm147 = vcmask 7168
  %s148 = scalar_lea.vmem %s1, 6
  %149 = vst.msk [vmem:[%s148] ss:$16 sm:$0x3] %vm147, %v146
  %s150 = scalar_lea.vmem %s1, 6
  %151 = vst.msk [vmem:[%s150] ss:$16 sm:$0xc] %vm147, %v146
  %s152 = scalar_lea.vmem %s1, 6
  %153 = vst.msk [vmem:[%s152] ss:$16 sm:$0x30] %vm147, %v146
  %s154 = scalar_lea.vmem %s1, 6
  %155 = vst.msk [vmem:[%s154] ss:$16 sm:$0xc0] %vm147, %v146
  %s156 = scalar_lea.vmem %s0, 8
  %v157 = vld [vmem:[%s156] sm:$0xff]
  %158 = vrot.lane.b32.xlu0 %v157, 122
  %v159 = vpop.permute.xlu0 %158
  %vm160 = vcmask 7168
  %s161 = scalar_lea.vmem %s1, 134
  %162 = vst.msk [vmem:[%s161] ss:$16 sm:$0x3] %vm160, %v159
  %s163 = scalar_lea.vmem %s1, 134
  %164 = vst.msk [vmem:[%s163] ss:$16 sm:$0xc] %vm160, %v159
  %s165 = scalar_lea.vmem %s1, 134
  %166 = vst.msk [vmem:[%s165] ss:$16 sm:$0x30] %vm160, %v159
  %s167 = scalar_lea.vmem %s1, 134
  %168 = vst.msk [vmem:[%s167] ss:$16 sm:$0xc0] %vm160, %v159
  %v169 = vld [vmem:[%s0] sm:$0xff]
  %170 = vrot.lane.b32.xlu0 %v169, 121
  %v171 = vpop.permute.xlu0 %170
  %vm172 = vcmask 7168
  %s173 = scalar_lea.vmem %s1, 7
  %174 = vst.msk [vmem:[%s173] ss:$16 sm:$0x3] %vm172, %v171
  %s175 = scalar_lea.vmem %s1, 7
  %176 = vst.msk [vmem:[%s175] ss:$16 sm:$0xc] %vm172, %v171
  %s177 = scalar_lea.vmem %s1, 7
  %178 = vst.msk [vmem:[%s177] ss:$16 sm:$0x30] %vm172, %v171
  %s179 = scalar_lea.vmem %s1, 7
  %180 = vst.msk [vmem:[%s179] ss:$16 sm:$0xc0] %vm172, %v171
  %s181 = scalar_lea.vmem %s0, 8
  %v182 = vld [vmem:[%s181] sm:$0xff]
  %183 = vrot.lane.b32.xlu0 %v182, 121
  %v184 = vpop.permute.xlu0 %183
  %vm185 = vcmask 7168
  %s186 = scalar_lea.vmem %s1, 135
  %187 = vst.msk [vmem:[%s186] ss:$16 sm:$0x3] %vm185, %v184
  %s188 = scalar_lea.vmem %s1, 135
  %189 = vst.msk [vmem:[%s188] ss:$16 sm:$0xc] %vm185, %v184
  %s190 = scalar_lea.vmem %s1, 135
  %191 = vst.msk [vmem:[%s190] ss:$16 sm:$0x30] %vm185, %v184
  %s192 = scalar_lea.vmem %s1, 135
  %193 = vst.msk [vmem:[%s192] ss:$16 sm:$0xc0] %vm185, %v184
  %v194 = vld [vmem:[%s0] sm:$0xff]
  %195 = vrot.lane.b32.xlu0 %v194, 120
  %v196 = vpop.permute.xlu0 %195
  %vm197 = vcmask 7168
  %s198 = scalar_lea.vmem %s1, 8
  %199 = vst.msk [vmem:[%s198] ss:$16 sm:$0x3] %vm197, %v196
  %s200 = scalar_lea.vmem %s1, 8
  %201 = vst.msk [vmem:[%s200] ss:$16 sm:$0xc] %vm197, %v196
  %s202 = scalar_lea.vmem %s1, 8
  %203 = vst.msk [vmem:[%s202] ss:$16 sm:$0x30] %vm197, %v196
  %s204 = scalar_lea.vmem %s1, 8
  %205 = vst.msk [vmem:[%s204] ss:$16 sm:$0xc0] %vm197, %v196
  %s206 = scalar_lea.vmem %s0, 8
  %v207 = vld [vmem:[%s206] sm:$0xff]
  %208 = vrot.lane.b32.xlu0 %v207, 120
  %v209 = vpop.permute.xlu0 %208
  %vm210 = vcmask 7168
  %s211 = scalar_lea.vmem %s1, 136
  %212 = vst.msk [vmem:[%s211] ss:$16 sm:$0x3] %vm210, %v209
  %s213 = scalar_lea.vmem %s1, 136
  %214 = vst.msk [vmem:[%s213] ss:$16 sm:$0xc] %vm210, %v209
  %s215 = scalar_lea.vmem %s1, 136
  %216 = vst.msk [vmem:[%s215] ss:$16 sm:$0x30] %vm210, %v209
  %s217 = scalar_lea.vmem %s1, 136
  %218 = vst.msk [vmem:[%s217] ss:$16 sm:$0xc0] %vm210, %v209
  %v219 = vld [vmem:[%s0] sm:$0xff]
  %220 = vrot.lane.b32.xlu0 %v219, 119
  %v221 = vpop.permute.xlu0 %220
  %vm222 = vcmask 7168
  %s223 = scalar_lea.vmem %s1, 9
  %224 = vst.msk [vmem:[%s223] ss:$16 sm:$0x3] %vm222, %v221
  %s225 = scalar_lea.vmem %s1, 9
  %226 = vst.msk [vmem:[%s225] ss:$16 sm:$0xc] %vm222, %v221
  %s227 = scalar_lea.vmem %s1, 9
  %228 = vst.msk [vmem:[%s227] ss:$16 sm:$0x30] %vm222, %v221
  %s229 = scalar_lea.vmem %s1, 9
  %230 = vst.msk [vmem:[%s229] ss:$16 sm:$0xc0] %vm222, %v221
  %s231 = scalar_lea.vmem %s0, 8
  %v232 = vld [vmem:[%s231] sm:$0xff]
  %233 = vrot.lane.b32.xlu0 %v232, 119
  %v234 = vpop.permute.xlu0 %233
  %vm235 = vcmask 7168
  %s236 = scalar_lea.vmem %s1, 137
  %237 = vst.msk [vmem:[%s236] ss:$16 sm:$0x3] %vm235, %v234
  %s238 = scalar_lea.vmem %s1, 137
  %239 = vst.msk [vmem:[%s238] ss:$16 sm:$0xc] %vm235, %v234
  %s240 = scalar_lea.vmem %s1, 137
  %241 = vst.msk [vmem:[%s240] ss:$16 sm:$0x30] %vm235, %v234
  %s242 = scalar_lea.vmem %s1, 137
  %243 = vst.msk [vmem:[%s242] ss:$16 sm:$0xc0] %vm235, %v234
  %v244 = vld [vmem:[%s0] sm:$0xff]
  %245 = vrot.lane.b32.xlu0 %v244, 118
  %v246 = vpop.permute.xlu0 %245
  %vm247 = vcmask 7168
  %s248 = scalar_lea.vmem %s1, 10
  %249 = vst.msk [vmem:[%s248] ss:$16 sm:$0x3] %vm247, %v246
  %s250 = scalar_lea.vmem %s1, 10
  %251 = vst.msk [vmem:[%s250] ss:$16 sm:$0xc] %vm247, %v246
  %s252 = scalar_lea.vmem %s1, 10
  %253 = vst.msk [vmem:[%s252] ss:$16 sm:$0x30] %vm247, %v246
  %s254 = scalar_lea.vmem %s1, 10
  %255 = vst.msk [vmem:[%s254] ss:$16 sm:$0xc0] %vm247, %v246
  %s256 = scalar_lea.vmem %s0, 8
  %v257 = vld [vmem:[%s256] sm:$0xff]
  %258 = vrot.lane.b32.xlu0 %v257, 118
  %v259 = vpop.permute.xlu0 %258
  %vm260 = vcmask 7168
  %s261 = scalar_lea.vmem %s1, 138
  %262 = vst.msk [vmem:[%s261] ss:$16 sm:$0x3] %vm260, %v259
  %s263 = scalar_lea.vmem %s1, 138
  %264 = vst.msk [vmem:[%s263] ss:$16 sm:$0xc] %vm260, %v259
  %s265 = scalar_lea.vmem %s1, 138
  %266 = vst.msk [vmem:[%s265] ss:$16 sm:$0x30] %vm260, %v259
  %s267 = scalar_lea.vmem %s1, 138
  %268 = vst.msk [vmem:[%s267] ss:$16 sm:$0xc0] %vm260, %v259
  %v269 = vld [vmem:[%s0] sm:$0xff]
  %270 = vrot.lane.b32.xlu0 %v269, 117
  %v271 = vpop.permute.xlu0 %270
  %vm272 = vcmask 7168
  %s273 = scalar_lea.vmem %s1, 11
  %274 = vst.msk [vmem:[%s273] ss:$16 sm:$0x3] %vm272, %v271
  %s275 = scalar_lea.vmem %s1, 11
  %276 = vst.msk [vmem:[%s275] ss:$16 sm:$0xc] %vm272, %v271
  %s277 = scalar_lea.vmem %s1, 11
  %278 = vst.msk [vmem:[%s277] ss:$16 sm:$0x30] %vm272, %v271
  %s279 = scalar_lea.vmem %s1, 11
  %280 = vst.msk [vmem:[%s279] ss:$16 sm:$0xc0] %vm272, %v271
  %s281 = scalar_lea.vmem %s0, 8
  %v282 = vld [vmem:[%s281] sm:$0xff]
  %283 = vrot.lane.b32.xlu0 %v282, 117
  %v284 = vpop.permute.xlu0 %283
  %vm285 = vcmask 7168
  %s286 = scalar_lea.vmem %s1, 139
  %287 = vst.msk [vmem:[%s286] ss:$16 sm:$0x3] %vm285, %v284
  %s288 = scalar_lea.vmem %s1, 139
  %289 = vst.msk [vmem:[%s288] ss:$16 sm:$0xc] %vm285, %v284
  %s290 = scalar_lea.vmem %s1, 139
  %291 = vst.msk [vmem:[%s290] ss:$16 sm:$0x30] %vm285, %v284
  %s292 = scalar_lea.vmem %s1, 139
  %293 = vst.msk [vmem:[%s292] ss:$16 sm:$0xc0] %vm285, %v284
  %v294 = vld [vmem:[%s0] sm:$0xff]
  %295 = vrot.lane.b32.xlu0 %v294, 116
  %v296 = vpop.permute.xlu0 %295
  %vm297 = vcmask 7168
  %s298 = scalar_lea.vmem %s1, 12
  %299 = vst.msk [vmem:[%s298] ss:$16 sm:$0x3] %vm297, %v296
  %s300 = scalar_lea.vmem %s1, 12
  %301 = vst.msk [vmem:[%s300] ss:$16 sm:$0xc] %vm297, %v296
  %s302 = scalar_lea.vmem %s1, 12
  %303 = vst.msk [vmem:[%s302] ss:$16 sm:$0x30] %vm297, %v296
  %s304 = scalar_lea.vmem %s1, 12
  %305 = vst.msk [vmem:[%s304] ss:$16 sm:$0xc0] %vm297, %v296
  %s306 = scalar_lea.vmem %s0, 8
  %v307 = vld [vmem:[%s306] sm:$0xff]
  %308 = vrot.lane.b32.xlu0 %v307, 116
  %v309 = vpop.permute.xlu0 %308
  %vm310 = vcmask 7168
  %s311 = scalar_lea.vmem %s1, 140
  %312 = vst.msk [vmem:[%s311] ss:$16 sm:$0x3] %vm310, %v309
  %s313 = scalar_lea.vmem %s1, 140
  %314 = vst.msk [vmem:[%s313] ss:$16 sm:$0xc] %vm310, %v309
  %s315 = scalar_lea.vmem %s1, 140
  %316 = vst.msk [vmem:[%s315] ss:$16 sm:$0x30] %vm310, %v309
  %s317 = scalar_lea.vmem %s1, 140
  %318 = vst.msk [vmem:[%s317] ss:$16 sm:$0xc0] %vm310, %v309
  %v319 = vld [vmem:[%s0] sm:$0xff]
  %320 = vrot.lane.b32.xlu0 %v319, 115
  %v321 = vpop.permute.xlu0 %320
  %vm322 = vcmask 7168
  %s323 = scalar_lea.vmem %s1, 13
  %324 = vst.msk [vmem:[%s323] ss:$16 sm:$0x3] %vm322, %v321
  %s325 = scalar_lea.vmem %s1, 13
  %326 = vst.msk [vmem:[%s325] ss:$16 sm:$0xc] %vm322, %v321
  %s327 = scalar_lea.vmem %s1, 13
  %328 = vst.msk [vmem:[%s327] ss:$16 sm:$0x30] %vm322, %v321
  %s329 = scalar_lea.vmem %s1, 13
  %330 = vst.msk [vmem:[%s329] ss:$16 sm:$0xc0] %vm322, %v321
  %s331 = scalar_lea.vmem %s0, 8
  %v332 = vld [vmem:[%s331] sm:$0xff]
  %333 = vrot.lane.b32.xlu0 %v332, 115
  %v334 = vpop.permute.xlu0 %333
  %vm335 = vcmask 7168
  %s336 = scalar_lea.vmem %s1, 141
  %337 = vst.msk [vmem:[%s336] ss:$16 sm:$0x3] %vm335, %v334
  %s338 = scalar_lea.vmem %s1, 141
  %339 = vst.msk [vmem:[%s338] ss:$16 sm:$0xc] %vm335, %v334
  %s340 = scalar_lea.vmem %s1, 141
  %341 = vst.msk [vmem:[%s340] ss:$16 sm:$0x30] %vm335, %v334
  %s342 = scalar_lea.vmem %s1, 141
  %343 = vst.msk [vmem:[%s342] ss:$16 sm:$0xc0] %vm335, %v334
  %v344 = vld [vmem:[%s0] sm:$0xff]
  %345 = vrot.lane.b32.xlu0 %v344, 114
  %v346 = vpop.permute.xlu0 %345
  %vm347 = vcmask 7168
  %s348 = scalar_lea.vmem %s1, 14
  %349 = vst.msk [vmem:[%s348] ss:$16 sm:$0x3] %vm347, %v346
  %s350 = scalar_lea.vmem %s1, 14
  %351 = vst.msk [vmem:[%s350] ss:$16 sm:$0xc] %vm347, %v346
  %s352 = scalar_lea.vmem %s1, 14
  %353 = vst.msk [vmem:[%s352] ss:$16 sm:$0x30] %vm347, %v346
  %s354 = scalar_lea.vmem %s1, 14
  %355 = vst.msk [vmem:[%s354] ss:$16 sm:$0xc0] %vm347, %v346
  %s356 = scalar_lea.vmem %s0, 8
  %v357 = vld [vmem:[%s356] sm:$0xff]
  %358 = vrot.lane.b32.xlu0 %v357, 114
  %v359 = vpop.permute.xlu0 %358
  %vm360 = vcmask 7168
  %s361 = scalar_lea.vmem %s1, 142
  %362 = vst.msk [vmem:[%s361] ss:$16 sm:$0x3] %vm360, %v359
  %s363 = scalar_lea.vmem %s1, 142
  %364 = vst.msk [vmem:[%s363] ss:$16 sm:$0xc] %vm360, %v359
  %s365 = scalar_lea.vmem %s1, 142
  %366 = vst.msk [vmem:[%s365] ss:$16 sm:$0x30] %vm360, %v359
  %s367 = scalar_lea.vmem %s1, 142
  %368 = vst.msk [vmem:[%s367] ss:$16 sm:$0xc0] %vm360, %v359
  %v369 = vld [vmem:[%s0] sm:$0xff]
  %370 = vrot.lane.b32.xlu0 %v369, 113
  %v371 = vpop.permute.xlu0 %370
  %vm372 = vcmask 7168
  %s373 = scalar_lea.vmem %s1, 15
  %374 = vst.msk [vmem:[%s373] ss:$16 sm:$0x3] %vm372, %v371
  %s375 = scalar_lea.vmem %s1, 15
  %376 = vst.msk [vmem:[%s375] ss:$16 sm:$0xc] %vm372, %v371
  %s377 = scalar_lea.vmem %s1, 15
  %378 = vst.msk [vmem:[%s377] ss:$16 sm:$0x30] %vm372, %v371
  %s379 = scalar_lea.vmem %s1, 15
  %380 = vst.msk [vmem:[%s379] ss:$16 sm:$0xc0] %vm372, %v371
  %s381 = scalar_lea.vmem %s0, 8
  %v382 = vld [vmem:[%s381] sm:$0xff]
  %383 = vrot.lane.b32.xlu0 %v382, 113
  %v384 = vpop.permute.xlu0 %383
  %vm385 = vcmask 7168
  %s386 = scalar_lea.vmem %s1, 143
  %387 = vst.msk [vmem:[%s386] ss:$16 sm:$0x3] %vm385, %v384
  %s388 = scalar_lea.vmem %s1, 143
  %389 = vst.msk [vmem:[%s388] ss:$16 sm:$0xc] %vm385, %v384
  %s390 = scalar_lea.vmem %s1, 143
  %391 = vst.msk [vmem:[%s390] ss:$16 sm:$0x30] %vm385, %v384
  %s392 = scalar_lea.vmem %s1, 143
  %393 = vst.msk [vmem:[%s392] ss:$16 sm:$0xc0] %vm385, %v384

// kernel: residual_stack.1
$region0: #{residual_stack.1}
  #allocation0 [shape = 'u32[]', space=smem, size = 0x4, offset = 0x4, fixed_abs, tag = 'smem constant byte address 0x4 - core index']
  #allocation1 [shape = 'u32[144,128]{1,0:T(1,128)}', space=vmem, size = 0x12000, scoped, tag = 'internal scratch']
  #allocation2 [shape = 'bf16[312,128]{1,0:T(8,128)(2,1)}', space=vmem, size = 0x13800, scoped, tag = 'scratch operand']
  #allocation3 [shape = 'f32[256,128]{1,0:T(8,128)}', space=vmem, size = 0x20000, scoped, tag = 'scratch operand']
  %s0 = inlined_call_operand.vmem [shape: f32[2,256,128], index: 0, kind: input, shape index: {}]
  %s1 = inlined_call_operand.vmem [shape: s32[256,1], index: 1, kind: input, shape index: {}]
  %s2 = inlined_call_operand.vmem [shape: bf16[2,9,128,128], index: 2, kind: input, shape index: {}]
  %s3 = inlined_call_operand.vmem [shape: bf16[2,128,128], index: 3, kind: input, shape index: {}]
  %s4 = inlined_call_operand.vmem [shape: f32[2,256,128], index: 4, kind: output, shape index: {}]
  %s5 = sld [smem:[#allocation0]]
  $region57: #{residual_stack.1} parent=0
    _
  %s7 = ssub.s32 1, %s5
  %s8 = scalar_select 0, %s7, %s5
  loop: start=0, step=1, limit=6
  $region2: #{residual_stack.1} parent=0 // loop_pre_header
    _
  $region3: #{residual_stack.1} parent=0 // loop_header
    %s10 = sphi 0, %s14
    %p11 = scmp.ge.s32.totalorder %s10, 6
    %s17 = sphi 0, %s29
    %s18 = sphi 0, %s25
    %s19 = sphi 0, %s17
    %s20 = sphi 0, %s18
    %s21 = sphi 0, %s19
    %s22 = sphi 0, %s20
    %s32 = sphi 0, %s34
    %s35 = sphi 0, %s32
    %s36 = sphi 0, %s35
    %s52 = sphi 0, %s36
    %s56 = sphi 0, %s56
    %s58 = sphi 0, %s56
    %s59 = sphi 0, %s58
    %s73 = sphi 0, %s59
    %s79 = sphi 0, %s81
    %s82 = sphi 0, %s79
    %s83 = sphi 0, %s82
    %s99 = sphi 0, %s83
    %s105 = sphi 0, %s107
    %s108 = sphi 0, %s105
    %s109 = sphi 0, %s108
    %s125 = sphi 0, %s109
    %s131 = sphi 0, %s133
    %s134 = sphi 0, %s131
    %s135 = sphi 0, %s134
    %s151 = sphi 0, %s135
  $region4: #{residual_stack.1} parent=0 // loop_header_branch
    %13 = sbr.rel (%p11) target = $region8
  $region5: #{residual_stack.1} parent=0 // loop_body
    %s15 = ssub.s32 %s10, 1
    %s16 = ssub.s32 %s10, 2
    %s23 = sadd.s32 1, %s18
    %p24 = scmp.ge.s32.totalorder %s23, 2
    %s25 = scalar_select %p24, 0, %s23
    %s26 = sadd.s32 1, %s17
    %s27 = scalar_select %p24, %s26, %s17
    %p28 = scmp.ge.s32.totalorder %s27, 2
    %s29 = scalar_select %p28, 0, %s27
    %s30 = ssub.s32 %s17, %s29
    %p31 = scmp.eq.s32.totalorder %s30, 0
    %s33 = sadd.s32 %s32, 1
    %s34 = scalar_select %p31, %s32, %s33
    %p37 = pneg %p31
    %p38 = scmp.eq.s32.totalorder %s10, 3
    %p39 = por %p37, %p38
    %p40 = scmp.ne.s32.totalorder %s32, %s35
    %p41 = scmp.eq.s32.totalorder %s10, 0
    %p42 = por %p40, %p41
    %p43 = scmp.ne.s32.totalorder %s32, %s35
    %p44 = scmp.eq.s32.totalorder %s15, 3
    %p45 = por %p43, %p44
    %p46 = scmp.ne.s32.totalorder %s35, %s36
    %p47 = scmp.eq.s32.totalorder %s15, 0
    %p48 = por %p46, %p47
    %p49 = scmp.ne.s32.totalorder %s35, %s36
    %p50 = scmp.eq.s32.totalorder %s16, 3
    %p51 = por %p49, %p50
    %p53 = scmp.ne.s32.totalorder %s36, %s52
    %p54 = scmp.eq.s32.totalorder %s16, 0
    %p55 = por %p53, %p54
    %s57 = sadd.s32 %s56, 1
    %p60 = scmp.eq.s32.totalorder %s10, 3
    %p61 = scmp.ne.s32.totalorder %s56, %s58
    %p62 = scmp.eq.s32.totalorder %s10, 0
    %p63 = por %p61, %p62
    %p64 = scmp.ne.s32.totalorder %s56, %s58
    %p65 = scmp.eq.s32.totalorder %s15, 3
    %p66 = por %p64, %p65
    %p67 = scmp.ne.s32.totalorder %s58, %s59
    %p68 = scmp.eq.s32.totalorder %s15, 0
    %p69 = por %p67, %p68
    %p70 = scmp.ne.s32.totalorder %s58, %s59
    %p71 = scmp.eq.s32.totalorder %s16, 3
    %p72 = por %p70, %p71
    %p74 = scmp.ne.s32.totalorder %s59, %s73
    %p75 = scmp.eq.s32.totalorder %s16, 0
    %p76 = por %p74, %p75
    %s77 = ssub.s32 %s18, %s25
    %p78 = scmp.eq.s32.totalorder %s77, 0
    %s80 = sadd.s32 %s79, 1
    %s81 = scalar_select %p78, %s79, %s80
    %p84 = pneg %p78
    %p85 = scmp.eq.s32.totalorder %s10, 3
    %p86 = por %p84, %p85
    %p87 = scmp.ne.s32.totalorder %s79, %s82
    %p88 = scmp.eq.s32.totalorder %s10, 0
    %p89 = por %p87, %p88
    %p90 = scmp.ne.s32.totalorder %s79, %s82
    %p91 = scmp.eq.s32.totalorder %s15, 3
    %p92 = por %p90, %p91
    %p93 = scmp.ne.s32.totalorder %s82, %s83
    %p94 = scmp.eq.s32.totalorder %s15, 0
    %p95 = por %p93, %p94
    %p96 = scmp.ne.s32.totalorder %s82, %s83
    %p97 = scmp.eq.s32.totalorder %s16, 3
    %p98 = por %p96, %p97
    %p100 = scmp.ne.s32.totalorder %s83, %s99
    %p101 = scmp.eq.s32.totalorder %s16, 0
    %p102 = por %p100, %p101
    %s103 = ssub.s32 %s18, %s25
    %p104 = scmp.eq.s32.totalorder %s103, 0
    %s106 = sadd.s32 %s105, 1
    %s107 = scalar_select %p104, %s105, %s106
    %p110 = pneg %p104
    %p111 = scmp.eq.s32.totalorder %s10, 3
    %p112 = por %p110, %p111
    %p113 = scmp.ne.s32.totalorder %s105, %s108
    %p114 = scmp.eq.s32.totalorder %s10, 0
    %p115 = por %p113, %p114
    %p116 = scmp.ne.s32.totalorder %s105, %s108
    %p117 = scmp.eq.s32.totalorder %s15, 3
    %p118 = por %p116, %p117
    %p119 = scmp.ne.s32.totalorder %s108, %s109
    %p120 = scmp.eq.s32.totalorder %s15, 0
    %p121 = por %p119, %p120
    %p122 = scmp.ne.s32.totalorder %s108, %s109
    %p123 = scmp.eq.s32.totalorder %s16, 3
    %p124 = por %p122, %p123
    %p126 = scmp.ne.s32.totalorder %s109, %s125
    %p127 = scmp.eq.s32.totalorder %s16, 0
    %p128 = por %p126, %p127
    %s129 = ssub.s32 %s17, %s29
    %p130 = scmp.eq.s32.totalorder %s129, 0
    %s132 = sadd.s32 %s131, 1
    %s133 = scalar_select %p130, %s131, %s132
    %p136 = pneg %p130
    %p137 = scmp.eq.s32.totalorder %s10, 3
    %p138 = por %p136, %p137
    %p139 = scmp.ne.s32.totalorder %s131, %s134
    %p140 = scmp.eq.s32.totalorder %s10, 0
    %p141 = por %p139, %p140
    %p142 = scmp.ne.s32.totalorder %s131, %s134
    %p143 = scmp.eq.s32.totalorder %s15, 3
    %p144 = por %p142, %p143
    %p145 = scmp.ne.s32.totalorder %s134, %s135
    %p146 = scmp.eq.s32.totalorder %s15, 0
    %p147 = por %p145, %p146
    %p148 = scmp.ne.s32.totalorder %s134, %s135
    %p149 = scmp.eq.s32.totalorder %s16, 3
    %p150 = por %p148, %p149
    %p152 = scmp.ne.s32.totalorder %s135, %s151
    %p153 = scmp.eq.s32.totalorder %s16, 0
    %p154 = por %p152, %p153
    %p155 = scmp.le.s32.totalorder 1, %s10
    %p156 = scmp.lt.s32.totalorder %s10, 5
    %p157 = pnand %p155, %p156
    %p158 = pneg %p157
    // Predicated region
    $region9: #{residual_stack.1} parent=5 // pred_check
      _
    $region10: #{residual_stack.1} parent=5 // pred_check_branch
      %160 = sbr.rel (%p157) target = $region12
    $region11: #{residual_stack.1} parent=5 // pred_region
      %s161 = ssub.s32 %s10, 1
      // Predicated region
      $region13: #{residual_stack.1} parent=11 // pred_check
        %p162 = pneg %p69
      $region14: #{residual_stack.1} parent=11 // pred_check_branch
        %164 = sbr.rel (%p162) target = $region16
      $region15: #{residual_stack.1} parent=11 // pred_region
        _
      $region16: #{residual_stack.1} parent=11 // pred_fallthru
        _
    $region12: #{residual_stack.1} parent=5 // pred_fallthru
      _
    %p165 = scmp.lt.s32.totalorder %s10, 4
    // Predicated region
    $region17: #{residual_stack.1} parent=5 // pred_check
      %p166 = pneg %p165
    $region18: #{residual_stack.1} parent=5 // pred_check_branch
      %168 = sbr.rel (%p166) target = $region20
    $region19: #{residual_stack.1} parent=5 // pred_region
      // Predicated region
      $region21: #{residual_stack.1} parent=19 // pred_check
        %p169 = pneg %p42
      $region22: #{residual_stack.1} parent=19 // pred_check_branch
        %171 = sbr.rel (%p169) target = $region24
      $region23: #{residual_stack.1} parent=19 // pred_region
        %p172 = scmp.lt.s32.totalorder %s17, 1
        %s173 = scalar_select %p172, %s17, 1
        %s174 = smul.addr %s173, 32
        %s175 = smul.addr %s174, 8
        %s176 = scalar_lea.vmem %s0, %s175
      $region24: #{residual_stack.1} parent=19 // pred_fallthru
        _
      // Predicated region
      $region25: #{residual_stack.1} parent=19 // pred_check
        %p177 = pneg %p89
      $region26: #{residual_stack.1} parent=19 // pred_check_branch
        %179 = sbr.rel (%p177) target = $region28
      $region27: #{residual_stack.1} parent=19 // pred_region
        %p180 = scmp.lt.s32.totalorder %s18, 1
        %s181 = scalar_select %p180, %s18, 1
        %s182 = smul.addr %s181, 144
        %s183 = smul.addr %s182, 4
        %s184 = scalar_lea.vmem %s2, %s183
      $region28: #{residual_stack.1} parent=19 // pred_fallthru
        _
      // Predicated region
      $region29: #{residual_stack.1} parent=19 // pred_check
        %p185 = pneg %p115
      $region30: #{residual_stack.1} parent=19 // pred_check_branch
        %187 = sbr.rel (%p185) target = $region32
      $region31: #{residual_stack.1} parent=19 // pred_region
        %p188 = scmp.lt.s32.totalorder %s18, 1
        %s189 = scalar_select %p188, %s18, 1
        %s190 = smul.addr %s189, 16
        %s191 = smul.addr %s190, 4
        %s192 = scalar_lea.vmem %s3, %s191
      $region32: #{residual_stack.1} parent=19 // pred_fallthru
        _
    $region20: #{residual_stack.1} parent=5 // pred_fallthru
      _
    %p193 = scmp.le.s32.totalorder 1, %s10
    %p194 = scmp.lt.s32.totalorder %s10, 5
    %p195 = pnand %p193, %p194
    %p196 = pneg %p195
    // Predicated region
    $region33: #{residual_stack.1} parent=5 // pred_check
      _
    $region34: #{residual_stack.1} parent=5 // pred_check_branch
      %198 = sbr.rel (%p195) target = $region36
    $region35: #{residual_stack.1} parent=5 // pred_region
      %s199 = ssub.s32 %s10, 1
      %p200 = scmp.lt.s32.totalorder %s19, 1
      %s201 = scalar_select %p200, %s19, 1
      %s202 = smul.addr %s201, 32
      %s203 = smul.addr %s202, 8
      %s204 = scalar_lea.vmem %s0, %s203
      %p205 = pneg %p48
      %p206 = pneg %p45
      %p207 = pneg %p69
      %p208 = pneg %p66
      %p209 = scmp.lt.s32.totalorder %s20, 1
      %s210 = scalar_select %p209, %s20, 1
      %s211 = smul.addr %s210, 144
      %s212 = smul.addr %s211, 4
      %s213 = scalar_lea.vmem %s2, %s212
      %p214 = pneg %p95
      %p215 = pneg %p92
      %p216 = scmp.lt.s32.totalorder %s20, 1
      %s217 = scalar_select %p216, %s20, 1
      %s218 = smul.addr %s217, 16
      %s219 = smul.addr %s218, 4
      %s220 = scalar_lea.vmem %s3, %s219
      %p221 = pneg %p121
      %p222 = pneg %p118
      %p223 = pneg %p147
      %p224 = pneg %p144
      %p225 = scmp.lt.s32.totalorder %s19, 1
      %s226 = scalar_select %p225, %s19, 1
      %s227 = smul.addr %s226, 32
      %s228 = smul.addr %s227, 8
      %s229 = scalar_lea.vmem %s4, %s228
      %p230 = scmp.lt.s32.totalorder %s19, 1
      %s231 = scalar_select %p230, %s19, 1
      %s232 = smul.addr %s231, 32
      %s233 = smul.addr %s232, 8
      %s234 = scalar_lea.vmem %s0, %s233
      %p235 = scmp.lt.s32.totalorder %s20, 1
      %s236 = scalar_select %p235, %s20, 1
      %s237 = smul.addr %s236, 144
      %s238 = smul.addr %s237, 4
      %s239 = scalar_lea.vmem %s2, %s238
      %p240 = scmp.lt.s32.totalorder %s20, 1
      %s241 = scalar_select %p240, %s20, 1
      %s242 = smul.addr %s241, 16
      %s243 = smul.addr %s242, 4
      %s244 = scalar_lea.vmem %s3, %s243
      %p245 = scmp.lt.s32.totalorder %s19, 1
      %s246 = scalar_select %p245, %s19, 1
      %s247 = smul.addr %s246, 32
      %s248 = smul.addr %s247, 8
      %s249 = scalar_lea.vmem %s4, %s248
      %p253 = scmp.eq.s32.totalorder %s20, 0
      // Predicated region
      $region37: #{residual_stack.1} parent=35 // pred_check
        %p254 = pneg %p253
      $region38: #{residual_stack.1} parent=35 // pred_check_branch
        %256 = sbr.rel (%p254) target = $region40
      $region39: #{residual_stack.1} parent=35 // pred_region
        %257 = vst [vmem:[#allocation2] sm:$0xf] 0
        %258 = vst [vmem:[#allocation2 + $0x4] sm:$0xf] 0
        %259 = vst [vmem:[#allocation2 + $0x8] sm:$0xf] 0
        %260 = vst [vmem:[#allocation2 + $0xc] sm:$0xf] 0
        %261 = vst [vmem:[#allocation2 + $0x90] sm:$0xf] 0
        %262 = vst [vmem:[#allocation2 + $0x94] sm:$0xf] 0
        %263 = vst [vmem:[#allocation2 + $0x98] sm:$0xf] 0
        %v264 = vld [vmem:[%s234] sm:$0xff]
        %v265 = vld [vmem:[%s234 + $0x8] sm:$0xff]
        %v266 = vld [vmem:[%s234 + $0x10] sm:$0xff]
        %v267 = vld [vmem:[%s234 + $0x18] sm:$0xff]
        %v268 = vld [vmem:[%s234 + $0x20] sm:$0xff]
        %v269 = vld [vmem:[%s234 + $0x28] sm:$0xff]
        %v270 = vld [vmem:[%s234 + $0x30] sm:$0xff]
        %v271 = vld [vmem:[%s234 + $0x38] sm:$0xff]
        %v272 = vld [vmem:[%s234 + $0x40] sm:$0xff]
        %v273 = vld [vmem:[%s234 + $0x48] sm:$0xff]
        %v274 = vld [vmem:[%s234 + $0x50] sm:$0xff]
        %v275 = vld [vmem:[%s234 + $0x58] sm:$0xff]
        %v276 = vld [vmem:[%s234 + $0x60] sm:$0xff]
        %v277 = vld [vmem:[%s234 + $0x68] sm:$0xff]
        %v278 = vld [vmem:[%s234 + $0x70] sm:$0xff]
        %v279 = vld [vmem:[%s234 + $0x78] sm:$0xff]
        %v280 = vld [vmem:[%s234 + $0x80] sm:$0xff]
        %v281 = vld [vmem:[%s234 + $0x88] sm:$0xff]
        %v282 = vld [vmem:[%s234 + $0x90] sm:$0xff]
        %v283 = vld [vmem:[%s234 + $0x98] sm:$0xff]
        %v284 = vld [vmem:[%s234 + $0xa0] sm:$0xff]
        %v285 = vld [vmem:[%s234 + $0xa8] sm:$0xff]
        %v286 = vld [vmem:[%s234 + $0xb0] sm:$0xff]
        %v287 = vld [vmem:[%s234 + $0xb8] sm:$0xff]
        %v288 = vld [vmem:[%s234 + $0xc0] sm:$0xff]
        %v289 = vld [vmem:[%s234 + $0xc8] sm:$0xff]
        %v290 = vld [vmem:[%s234 + $0xd0] sm:$0xff]
        %v291 = vld [vmem:[%s234 + $0xd8] sm:$0xff]
        %v292 = vld [vmem:[%s234 + $0xe0] sm:$0xff]
        %v293 = vld [vmem:[%s234 + $0xe8] sm:$0xff]
        %v294 = vld [vmem:[%s234 + $0xf0] sm:$0xff]
        %v295 = vld [vmem:[%s234 + $0xf8] sm:$0xff]
        %296 = vst [vmem:[#allocation3] sm:$0xff] %v264
        %297 = vst [vmem:[#allocation3 + $0x8] sm:$0xff] %v265
        %298 = vst [vmem:[#allocation3 + $0x10] sm:$0xff] %v266
        %299 = vst [vmem:[#allocation3 + $0x18] sm:$0xff] %v267
        %300 = vst [vmem:[#allocation3 + $0x20] sm:$0xff] %v268
        %301 = vst [vmem:[#allocation3 + $0x28] sm:$0xff] %v269
        %302 = vst [vmem:[#allocation3 + $0x30] sm:$0xff] %v270
        %303 = vst [vmem:[#allocation3 + $0x38] sm:$0xff] %v271
        %304 = vst [vmem:[#allocation3 + $0x40] sm:$0xff] %v272
        %305 = vst [vmem:[#allocation3 + $0x48] sm:$0xff] %v273
        %306 = vst [vmem:[#allocation3 + $0x50] sm:$0xff] %v274
        %307 = vst [vmem:[#allocation3 + $0x58] sm:$0xff] %v275
        %308 = vst [vmem:[#allocation3 + $0x60] sm:$0xff] %v276
        %309 = vst [vmem:[#allocation3 + $0x68] sm:$0xff] %v277
        %310 = vst [vmem:[#allocation3 + $0x70] sm:$0xff] %v278
        %311 = vst [vmem:[#allocation3 + $0x78] sm:$0xff] %v279
        %312 = vst [vmem:[#allocation3 + $0x80] sm:$0xff] %v280
        %313 = vst [vmem:[#allocation3 + $0x88] sm:$0xff] %v281
        %314 = vst [vmem:[#allocation3 + $0x90] sm:$0xff] %v282
        %315 = vst [vmem:[#allocation3 + $0x98] sm:$0xff] %v283
        %316 = vst [vmem:[#allocation3 + $0xa0] sm:$0xff] %v284
        %317 = vst [vmem:[#allocation3 + $0xa8] sm:$0xff] %v285
        %318 = vst [vmem:[#allocation3 + $0xb0] sm:$0xff] %v286
        %319 = vst [vmem:[#allocation3 + $0xb8] sm:$0xff] %v287
        %320 = vst [vmem:[#allocation3 + $0xc0] sm:$0xff] %v288
        %321 = vst [vmem:[#allocation3 + $0xc8] sm:$0xff] %v289
        %322 = vst [vmem:[#allocation3 + $0xd0] sm:$0xff] %v290
        %323 = vst [vmem:[#allocation3 + $0xd8] sm:$0xff] %v291
        %324 = vst [vmem:[#allocation3 + $0xe0] sm:$0xff] %v292
        %325 = vst [vmem:[#allocation3 + $0xe8] sm:$0xff] %v293
        %326 = vst [vmem:[#allocation3 + $0xf0] sm:$0xff] %v294
        %327 = vst [vmem:[#allocation3 + $0xf8] sm:$0xff] %v295
      $region40: #{residual_stack.1} parent=35 // pred_fallthru
        _
      %v328 = vld [vmem:[#allocation3] sm:$0xff]
      %v329 = vld [vmem:[#allocation3 + $0x8] sm:$0xff]
      %v330 = vld [vmem:[#allocation3 + $0x10] sm:$0xff]
      %v331 = vld [vmem:[#allocation3 + $0x18] sm:$0xff]
      %v332 = vld [vmem:[#allocation3 + $0x20] sm:$0xff]
      %v333 = vld [vmem:[#allocation3 + $0x28] sm:$0xff]
      %v334 = vld [vmem:[#allocation3 + $0x30] sm:$0xff]
      %v335 = vld [vmem:[#allocation3 + $0x38] sm:$0xff]
      %v336 = vld [vmem:[#allocation3 + $0x40] sm:$0xff]
      %v337 = vld [vmem:[#allocation3 + $0x48] sm:$0xff]
      %v338 = vld [vmem:[#allocation3 + $0x50] sm:$0xff]
      %v339 = vld [vmem:[#allocation3 + $0x58] sm:$0xff]
      %v340 = vld [vmem:[#allocation3 + $0x60] sm:$0xff]
      %v341 = vld [vmem:[#allocation3 + $0x68] sm:$0xff]
      %v342 = vld [vmem:[#allocation3 + $0x70] sm:$0xff]
      %v343 = vld [vmem:[#allocation3 + $0x78] sm:$0xff]
      %v344 = vld [vmem:[#allocation3 + $0x80] sm:$0xff]
      %v345 = vld [vmem:[#allocation3 + $0x88] sm:$0xff]
      %v346 = vld [vmem:[#allocation3 + $0x90] sm:$0xff]
      %v347 = vld [vmem:[#allocation3 + $0x98] sm:$0xff]
      %v348 = vld [vmem:[#allocation3 + $0xa0] sm:$0xff]
      %v349 = vld [vmem:[#allocation3 + $0xa8] sm:$0xff]
      %v350 = vld [vmem:[#allocation3 + $0xb0] sm:$0xff]
      %v351 = vld [vmem:[#allocation3 + $0xb8] sm:$0xff]
      %v352 = vld [vmem:[#allocation3 + $0xc0] sm:$0xff]
      %v353 = vld [vmem:[#allocation3 + $0xc8] sm:$0xff]
      %v354 = vld [vmem:[#allocation3 + $0xd0] sm:$0xff]
      %v355 = vld [vmem:[#allocation3 + $0xd8] sm:$0xff]
      %v356 = vld [vmem:[#allocation3 + $0xe0] sm:$0xff]
      %v357 = vld [vmem:[#allocation3 + $0xe8] sm:$0xff]
      %v358 = vld [vmem:[#allocation3 + $0xf0] sm:$0xff]
      %v359 = vld [vmem:[#allocation3 + $0xf8] sm:$0xff]
      %v360 = vmax.f32 %v328, 0.0
      %v361 = vmax.f32 %v329, 0.0
      %v362 = vmax.f32 %v330, 0.0
      %v363 = vmax.f32 %v331, 0.0
      %v364 = vmax.f32 %v332, 0.0
      %v365 = vmax.f32 %v333, 0.0
      %v366 = vmax.f32 %v334, 0.0
      %v367 = vmax.f32 %v335, 0.0
      %v368 = vmax.f32 %v336, 0.0
      %v369 = vmax.f32 %v337, 0.0
      %v370 = vmax.f32 %v338, 0.0
      %v371 = vmax.f32 %v339, 0.0
      %v372 = vmax.f32 %v340, 0.0
      %v373 = vmax.f32 %v341, 0.0
      %v374 = vmax.f32 %v342, 0.0
      %v375 = vmax.f32 %v343, 0.0
      %v376 = vmax.f32 %v344, 0.0
      %v377 = vmax.f32 %v345, 0.0
      %v378 = vmax.f32 %v346, 0.0
      %v379 = vmax.f32 %v347, 0.0
      %v380 = vmax.f32 %v348, 0.0
      %v381 = vmax.f32 %v349, 0.0
      %v382 = vmax.f32 %v350, 0.0
      %v383 = vmax.f32 %v351, 0.0
      %v384 = vmax.f32 %v352, 0.0
      %v385 = vmax.f32 %v353, 0.0
      %v386 = vmax.f32 %v354, 0.0
      %v387 = vmax.f32 %v355, 0.0
      %v388 = vmax.f32 %v356, 0.0
      %v389 = vmax.f32 %v357, 0.0
      %v390 = vmax.f32 %v358, 0.0
      %v391 = vmax.f32 %v359, 0.0
      %v392 = vpack.c.bf16 %v361, %v360
      %v393 = vpack.c.bf16 %v363, %v362
      %v394 = vpack.c.bf16 %v365, %v364
      %v395 = vpack.c.bf16 %v367, %v366
      %v396 = vpack.c.bf16 %v369, %v368
      %v397 = vpack.c.bf16 %v371, %v370
      %v398 = vpack.c.bf16 %v373, %v372
      %v399 = vpack.c.bf16 %v375, %v374
      %v400 = vpack.c.bf16 %v377, %v376
      %v401 = vpack.c.bf16 %v379, %v378
      %v402 = vpack.c.bf16 %v381, %v380
      %v403 = vpack.c.bf16 %v383, %v382
      %v404 = vpack.c.bf16 %v385, %v384
      %v405 = vpack.c.bf16 %v387, %v386
      %v406 = vpack.c.bf16 %v389, %v388
      %v407 = vpack.c.bf16 %v391, %v390
      %v424 = vunpack.c.l.b16 %v392
      %v425 = vunpack.c.h.b16 %v392
      %v426 = vunpack.c.l.b16 %v393
      %v427 = vunpack.c.h.b16 %v393
      %v428 = vunpack.c.l.b16 %v394
      %v429 = vunpack.c.h.b16 %v394
      %v430 = vunpack.c.l.b16 %v395
      %v431 = vunpack.c.h.b16 %v395
      %v432 = vunpack.c.l.b16 %v396
      %v433 = vunpack.c.h.b16 %v396
      %v434 = vunpack.c.l.b16 %v397
      %v435 = vunpack.c.h.b16 %v397
      %v436 = vunpack.c.l.b16 %v398
      %v437 = vunpack.c.h.b16 %v398
      %v438 = vunpack.c.l.b16 %v399
      %v439 = vunpack.c.h.b16 %v399
      %v440 = vunpack.c.l.b16 %v400
      %v441 = vunpack.c.h.b16 %v400
      %v442 = vunpack.c.l.b16 %v401
      %v443 = vunpack.c.h.b16 %v401
      %v444 = vunpack.c.l.b16 %v402
      %v445 = vunpack.c.h.b16 %v402
      %v446 = vunpack.c.l.b16 %v403
      %v447 = vunpack.c.h.b16 %v403
      %v448 = vunpack.c.l.b16 %v404
      %v449 = vunpack.c.h.b16 %v404
      %v450 = vunpack.c.l.b16 %v405
      %v451 = vunpack.c.h.b16 %v405
      %v452 = vunpack.c.l.b16 %v406
      %v453 = vunpack.c.h.b16 %v406
      %v454 = vunpack.c.l.b16 %v407
      %v455 = vunpack.c.h.b16 %v407
      %v456 = vpack.c.b16 %v424, %v424
      %v457 = vpack.c.b16 %v425, %v425
      %v458 = vpack.c.b16 %v426, %v426
      %v459 = vpack.c.b16 %v427, %v427
      %v460 = vpack.c.b16 %v428, %v428
      %v461 = vpack.c.b16 %v429, %v429
      %v462 = vpack.c.b16 %v430, %v430
      %v463 = vpack.c.b16 %v431, %v431
      %v464 = vpack.c.b16 %v432, %v432
      %v465 = vpack.c.b16 %v433, %v433
      %v466 = vpack.c.b16 %v434, %v434
      %v467 = vpack.c.b16 %v435, %v435
      %v468 = vpack.c.b16 %v436, %v436
      %v469 = vpack.c.b16 %v437, %v437
      %v470 = vpack.c.b16 %v438, %v438
      %v471 = vpack.c.b16 %v439, %v439
      %v472 = vpack.c.b16 %v440, %v440
      %v473 = vpack.c.b16 %v441, %v441
      %v474 = vpack.c.b16 %v442, %v442
      %v475 = vpack.c.b16 %v443, %v443
      %v476 = vpack.c.b16 %v444, %v444
      %v477 = vpack.c.b16 %v445, %v445
      %v478 = vpack.c.b16 %v446, %v446
      %v479 = vpack.c.b16 %v447, %v447
      %v480 = vpack.c.b16 %v448, %v448
      %v481 = vpack.c.b16 %v449, %v449
      %v482 = vpack.c.b16 %v450, %v450
      %v483 = vpack.c.b16 %v451, %v451
      %v484 = vpack.c.b16 %v452, %v452
      %v485 = vpack.c.b16 %v453, %v453
      %v486 = vpack.c.b16 %v454, %v454
      %v487 = vpack.c.b16 %v455, %v455
      %520 = vst [vmem:[#allocation2 + $0x10] sm:$0xf] %v456
      %521 = vst [vmem:[#allocation2 + $0x14] sm:$0xf] %v457
      %522 = vst [vmem:[#allocation2 + $0x18] sm:$0xf] %v458
      %523 = vst [vmem:[#allocation2 + $0x1c] sm:$0xf] %v459
      %524 = vst [vmem:[#allocation2 + $0x20] sm:$0xf] %v460
      %525 = vst [vmem:[#allocation2 + $0x24] sm:$0xf] %v461
      %526 = vst [vmem:[#allocation2 + $0x28] sm:$0xf] %v462
      %527 = vst [vmem:[#allocation2 + $0x2c] sm:$0xf] %v463
      %528 = vst [vmem:[#allocation2 + $0x30] sm:$0xf] %v464
      %529 = vst [vmem:[#allocation2 + $0x34] sm:$0xf] %v465
      %530 = vst [vmem:[#allocation2 + $0x38] sm:$0xf] %v466
      %531 = vst [vmem:[#allocation2 + $0x3c] sm:$0xf] %v467
      %532 = vst [vmem:[#allocation2 + $0x40] sm:$0xf] %v468
      %533 = vst [vmem:[#allocation2 + $0x44] sm:$0xf] %v469
      %534 = vst [vmem:[#allocation2 + $0x48] sm:$0xf] %v470
      %535 = vst [vmem:[#allocation2 + $0x4c] sm:$0xf] %v471
      %536 = vst [vmem:[#allocation2 + $0x50] sm:$0xf] %v472
      %537 = vst [vmem:[#allocation2 + $0x54] sm:$0xf] %v473
      %538 = vst [vmem:[#allocation2 + $0x58] sm:$0xf] %v474
      %539 = vst [vmem:[#allocation2 + $0x5c] sm:$0xf] %v475
      %540 = vst [vmem:[#allocation2 + $0x60] sm:$0xf] %v476
      %541 = vst [vmem:[#allocation2 + $0x64] sm:$0xf] %v477
      %542 = vst [vmem:[#allocation2 + $0x68] sm:$0xf] %v478
      %543 = vst [vmem:[#allocation2 + $0x6c] sm:$0xf] %v479
      %544 = vst [vmem:[#allocation2 + $0x70] sm:$0xf] %v480
      %545 = vst [vmem:[#allocation2 + $0x74] sm:$0xf] %v481
      %546 = vst [vmem:[#allocation2 + $0x78] sm:$0xf] %v482
      %547 = vst [vmem:[#allocation2 + $0x7c] sm:$0xf] %v483
      %548 = vst [vmem:[#allocation2 + $0x80] sm:$0xf] %v484
      %549 = vst [vmem:[#allocation2 + $0x84] sm:$0xf] %v485
      %550 = vst [vmem:[#allocation2 + $0x88] sm:$0xf] %v486
      %551 = vst [vmem:[#allocation2 + $0x8c] sm:$0xf] %v487
      %v552 = vld [vmem:[%s244] sm:$0xf]
      %v553 = vld [vmem:[%s244 + $0x4] sm:$0xf]
      %v554 = vld [vmem:[%s244 + $0x8] sm:$0xf]
      %v555 = vld [vmem:[%s244 + $0xc] sm:$0xf]
      %v556 = vld [vmem:[%s244 + $0x10] sm:$0xf]
      %v557 = vld [vmem:[%s244 + $0x14] sm:$0xf]
      %v558 = vld [vmem:[%s244 + $0x18] sm:$0xf]
      %v559 = vld [vmem:[%s244 + $0x1c] sm:$0xf]
      %v560 = vld [vmem:[%s244 + $0x20] sm:$0xf]
      %v561 = vld [vmem:[%s244 + $0x24] sm:$0xf]
      %v562 = vld [vmem:[%s244 + $0x28] sm:$0xf]
      %v563 = vld [vmem:[%s244 + $0x2c] sm:$0xf]
      %v564 = vld [vmem:[%s244 + $0x30] sm:$0xf]
      %v565 = vld [vmem:[%s244 + $0x34] sm:$0xf]
      %v566 = vld [vmem:[%s244 + $0x38] sm:$0xf]
      %v567 = vld [vmem:[%s244 + $0x3c] sm:$0xf]
      %v568 = vld [vmem:[%s1] sm:$0xff]
      %v569 = vld [vmem:[%s1 + $0x8] sm:$0xff]
      %v570 = vld [vmem:[%s1 + $0x10] sm:$0xff]
      %v571 = vld [vmem:[%s1 + $0x18] sm:$0xff]
      %v572 = vld [vmem:[%s1 + $0x20] sm:$0xff]
      %v573 = vld [vmem:[%s1 + $0x28] sm:$0xff]
      %v574 = vld [vmem:[%s1 + $0x30] sm:$0xff]
      %v575 = vld [vmem:[%s1 + $0x38] sm:$0xff]
      %v576 = vld [vmem:[%s1 + $0x40] sm:$0xff]
      %v577 = vld [vmem:[%s1 + $0x48] sm:$0xff]
      %v578 = vld [vmem:[%s1 + $0x50] sm:$0xff]
      %v579 = vld [vmem:[%s1 + $0x58] sm:$0xff]
      %v580 = vld [vmem:[%s1 + $0x60] sm:$0xff]
      %v581 = vld [vmem:[%s1 + $0x68] sm:$0xff]
      %v582 = vld [vmem:[%s1 + $0x70] sm:$0xff]
      %v583 = vld [vmem:[%s1 + $0x78] sm:$0xff]
      %v584 = vld [vmem:[%s1 + $0x80] sm:$0xff]
      %v585 = vld [vmem:[%s1 + $0x88] sm:$0xff]
      %v586 = vld [vmem:[%s1 + $0x90] sm:$0xff]
      %v587 = vld [vmem:[%s1 + $0x98] sm:$0xff]
      %v588 = vld [vmem:[%s1 + $0xa0] sm:$0xff]
      %v589 = vld [vmem:[%s1 + $0xa8] sm:$0xff]
      %v590 = vld [vmem:[%s1 + $0xb0] sm:$0xff]
      %v591 = vld [vmem:[%s1 + $0xb8] sm:$0xff]
      %v592 = vld [vmem:[%s1 + $0xc0] sm:$0xff]
      %v593 = vld [vmem:[%s1 + $0xc8] sm:$0xff]
      %v594 = vld [vmem:[%s1 + $0xd0] sm:$0xff]
      %v595 = vld [vmem:[%s1 + $0xd8] sm:$0xff]
      %v596 = vld [vmem:[%s1 + $0xe0] sm:$0xff]
      %v597 = vld [vmem:[%s1 + $0xe8] sm:$0xff]
      %v598 = vld [vmem:[%s1 + $0xf0] sm:$0xff]
      %v599 = vld [vmem:[%s1 + $0xf8] sm:$0xff]
      %vm600 = vcmp.ne.s32.totalorder %v568, 0
      %vm601 = vcmp.ne.s32.totalorder %v569, 0
      %vm602 = vcmp.ne.s32.totalorder %v570, 0
      %vm603 = vcmp.ne.s32.totalorder %v571, 0
      %vm604 = vcmp.ne.s32.totalorder %v572, 0
      %vm605 = vcmp.ne.s32.totalorder %v573, 0
      %vm606 = vcmp.ne.s32.totalorder %v574, 0
      %vm607 = vcmp.ne.s32.totalorder %v575, 0
      %vm608 = vcmp.ne.s32.totalorder %v576, 0
      %vm609 = vcmp.ne.s32.totalorder %v577, 0
      %vm610 = vcmp.ne.s32.totalorder %v578, 0
      %vm611 = vcmp.ne.s32.totalorder %v579, 0
      %vm612 = vcmp.ne.s32.totalorder %v580, 0
      %vm613 = vcmp.ne.s32.totalorder %v581, 0
      %vm614 = vcmp.ne.s32.totalorder %v582, 0
      %vm615 = vcmp.ne.s32.totalorder %v583, 0
      %vm616 = vcmp.ne.s32.totalorder %v584, 0
      %vm617 = vcmp.ne.s32.totalorder %v585, 0
      %vm618 = vcmp.ne.s32.totalorder %v586, 0
      %vm619 = vcmp.ne.s32.totalorder %v587, 0
      %vm620 = vcmp.ne.s32.totalorder %v588, 0
      %vm621 = vcmp.ne.s32.totalorder %v589, 0
      %vm622 = vcmp.ne.s32.totalorder %v590, 0
      %vm623 = vcmp.ne.s32.totalorder %v591, 0
      %vm624 = vcmp.ne.s32.totalorder %v592, 0
      %vm625 = vcmp.ne.s32.totalorder %v593, 0
      %vm626 = vcmp.ne.s32.totalorder %v594, 0
      %vm627 = vcmp.ne.s32.totalorder %v595, 0
      %vm628 = vcmp.ne.s32.totalorder %v596, 0
      %vm629 = vcmp.ne.s32.totalorder %v597, 0
      %vm630 = vcmp.ne.s32.totalorder %v598, 0
      %vm631 = vcmp.ne.s32.totalorder %v599, 0
      %vm632 = vcmp.ne.s32.totalorder %v568, 15
      %vm633 = vcmp.ne.s32.totalorder %v569, 15
      %vm634 = vcmp.ne.s32.totalorder %v570, 15
      %vm635 = vcmp.ne.s32.totalorder %v571, 15
      %vm636 = vcmp.ne.s32.totalorder %v572, 15
      %vm637 = vcmp.ne.s32.totalorder %v573, 15
      %vm638 = vcmp.ne.s32.totalorder %v574, 15
      %vm639 = vcmp.ne.s32.totalorder %v575, 15
      %vm640 = vcmp.ne.s32.totalorder %v576, 15
      %vm641 = vcmp.ne.s32.totalorder %v577, 15
      %vm642 = vcmp.ne.s32.totalorder %v578, 15
      %vm643 = vcmp.ne.s32.totalorder %v579, 15
      %vm644 = vcmp.ne.s32.totalorder %v580, 15
      %vm645 = vcmp.ne.s32.totalorder %v581, 15
      %vm646 = vcmp.ne.s32.totalorder %v582, 15
      %vm647 = vcmp.ne.s32.totalorder %v583, 15
      %vm648 = vcmp.ne.s32.totalorder %v584, 15
      %vm649 = vcmp.ne.s32.totalorder %v585, 15
      %vm650 = vcmp.ne.s32.totalorder %v586, 15
      %vm651 = vcmp.ne.s32.totalorder %v587, 15
      %vm652 = vcmp.ne.s32.totalorder %v588, 15
      %vm653 = vcmp.ne.s32.totalorder %v589, 15
      %vm654 = vcmp.ne.s32.totalorder %v590, 15
      %vm655 = vcmp.ne.s32.totalorder %v591, 15
      %vm656 = vcmp.ne.s32.totalorder %v592, 15
      %vm657 = vcmp.ne.s32.totalorder %v593, 15
      %vm658 = vcmp.ne.s32.totalorder %v594, 15
      %vm659 = vcmp.ne.s32.totalorder %v595, 15
      %vm660 = vcmp.ne.s32.totalorder %v596, 15
      %vm661 = vcmp.ne.s32.totalorder %v597, 15
      %vm662 = vcmp.ne.s32.totalorder %v598, 15
      %vm663 = vcmp.ne.s32.totalorder %v599, 15
      %v664 = vld [vmem:[#allocation2 + $0x4] sm:$0x8]
      %v665 = vld [vmem:[#allocation2 + $0x8] sm:$0xf]
      %v666 = vld [vmem:[#allocation2 + $0xc] sm:$0xf]
      %v667 = vld [vmem:[#allocation2 + $0x10] sm:$0xf]
      %v668 = vld [vmem:[#allocation2 + $0x14] sm:$0xf]
      %v669 = vld [vmem:[#allocation2 + $0x18] sm:$0xf]
      %v670 = vld [vmem:[#allocation2 + $0x1c] sm:$0xf]
      %v671 = vld [vmem:[#allocation2 + $0x20] sm:$0xf]
      %v672 = vld [vmem:[#allocation2 + $0x24] sm:$0xf]
      %v673 = vld [vmem:[#allocation2 + $0x28] sm:$0xf]
      %v674 = vld [vmem:[#allocation2 + $0x2c] sm:$0xf]
      %v675 = vld [vmem:[#allocation2 + $0x30] sm:$0xf]
      %v676 = vld [vmem:[#allocation2 + $0x34] sm:$0xf]
      %v677 = vld [vmem:[#allocation2 + $0x38] sm:$0xf]
      %v678 = vld [vmem:[#allocation2 + $0x3c] sm:$0xf]
      %v679 = vld [vmem:[#allocation2 + $0x40] sm:$0xf]
      %v680 = vld [vmem:[#allocation2 + $0x44] sm:$0xf]
      %v681 = vld [vmem:[#allocation2 + $0x48] sm:$0xf]
      %v682 = vld [vmem:[#allocation2 + $0x4c] sm:$0xf]
      %v683 = vld [vmem:[#allocation2 + $0x50] sm:$0xf]
      %v684 = vld [vmem:[#allocation2 + $0x54] sm:$0xf]
      %v685 = vld [vmem:[#allocation2 + $0x58] sm:$0xf]
      %v686 = vld [vmem:[#allocation2 + $0x5c] sm:$0xf]
      %v687 = vld [vmem:[#allocation2 + $0x60] sm:$0xf]
      %v688 = vld [vmem:[#allocation2 + $0x64] sm:$0xf]
      %v689 = vld [vmem:[#allocation2 + $0x68] sm:$0xf]
      %v690 = vld [vmem:[#allocation2 + $0x6c] sm:$0xf]
      %v691 = vld [vmem:[#allocation2 + $0x70] sm:$0xf]
      %v692 = vld [vmem:[#allocation2 + $0x74] sm:$0xf]
      %v693 = vld [vmem:[#allocation2 + $0x78] sm:$0xf]
      %v694 = vld [vmem:[#allocation2 + $0x7c] sm:$0xf]
      %v695 = vld [vmem:[#allocation2 + $0x80] sm:$0xf]
      %v696 = vld [vmem:[#allocation2 + $0x84] sm:$0xf]
      %v697 = vsel %vm600, 1, 0
      %v698 = vsel %vm601, 1, 0
      %v699 = vsel %vm602, 1, 0
      %v700 = vsel %vm603, 1, 0
      %v701 = vsel %vm604, 1, 0
      %v702 = vsel %vm605, 1, 0
      %v703 = vsel %vm606, 1, 0
      %v704 = vsel %vm607, 1, 0
      %v705 = vsel %vm608, 1, 0
      %v706 = vsel %vm609, 1, 0
      %v707 = vsel %vm610, 1, 0
      %v708 = vsel %vm611, 1, 0
      %v709 = vsel %vm612, 1, 0
      %v710 = vsel %vm613, 1, 0
      %v711 = vsel %vm614, 1, 0
      %v712 = vsel %vm615, 1, 0
      %v713 = vsel %vm616, 1, 0
      %v714 = vsel %vm617, 1, 0
      %v715 = vsel %vm618, 1, 0
      %v716 = vsel %vm619, 1, 0
      %v717 = vsel %vm620, 1, 0
      %v718 = vsel %vm621, 1, 0
      %v719 = vsel %vm622, 1, 0
      %v720 = vsel %vm623, 1, 0
      %v721 = vsel %vm624, 1, 0
      %v722 = vsel %vm625, 1, 0
      %v723 = vsel %vm626, 1, 0
      %v724 = vsel %vm627, 1, 0
      %v725 = vsel %vm628, 1, 0
      %v726 = vsel %vm629, 1, 0
      %v727 = vsel %vm630, 1, 0
      %v728 = vsel %vm631, 1, 0
      %729 = vset.pattern.permute.xlu0 0
      %730 = vperm.xlu0 %729, %v697
      %v731 = vpop.permute.xlu0 %730
      %732 = vset.pattern.permute.xlu0 0
      %733 = vperm.xlu0 %732, %v698
      %v734 = vpop.permute.xlu0 %733
      %735 = vset.pattern.permute.xlu0 0
      %736 = vperm.xlu0 %735, %v699
      %v737 = vpop.permute.xlu0 %736
      %738 = vset.pattern.permute.xlu0 0
      %739 = vperm.xlu0 %738, %v700
      %v740 = vpop.permute.xlu0 %739
      %741 = vset.pattern.permute.xlu0 0
      %742 = vperm.xlu0 %741, %v701
      %v743 = vpop.permute.xlu0 %742
      %744 = vset.pattern.permute.xlu0 0
      %745 = vperm.xlu0 %744, %v702
      %v746 = vpop.permute.xlu0 %745
      %747 = vset.pattern.permute.xlu0 0
      %748 = vperm.xlu0 %747, %v703
      %v749 = vpop.permute.xlu0 %748
      %750 = vset.pattern.permute.xlu0 0
      %751 = vperm.xlu0 %750, %v704
      %v752 = vpop.permute.xlu0 %751
      %753 = vset.pattern.permute.xlu0 0
      %754 = vperm.xlu0 %753, %v705
      %v755 = vpop.permute.xlu0 %754
      %756 = vset.pattern.permute.xlu0 0
      %757 = vperm.xlu0 %756, %v706
      %v758 = vpop.permute.xlu0 %757
      %759 = vset.pattern.permute.xlu0 0
      %760 = vperm.xlu0 %759, %v707
      %v761 = vpop.permute.xlu0 %760
      %762 = vset.pattern.permute.xlu0 0
      %763 = vperm.xlu0 %762, %v708
      %v764 = vpop.permute.xlu0 %763
      %765 = vset.pattern.permute.xlu0 0
      %766 = vperm.xlu0 %765, %v709
      %v767 = vpop.permute.xlu0 %766
      %768 = vset.pattern.permute.xlu0 0
      %769 = vperm.xlu0 %768, %v710
      %v770 = vpop.permute.xlu0 %769
      %771 = vset.pattern.permute.xlu0 0
      %772 = vperm.xlu0 %771, %v711
      %v773 = vpop.permute.xlu0 %772
      %774 = vset.pattern.permute.xlu0 0
      %775 = vperm.xlu0 %774, %v712
      %v776 = vpop.permute.xlu0 %775
      %777 = vset.pattern.permute.xlu0 0
      %778 = vperm.xlu0 %777, %v713
      %v779 = vpop.permute.xlu0 %778
      %780 = vset.pattern.permute.xlu0 0
      %781 = vperm.xlu0 %780, %v714
      %v782 = vpop.permute.xlu0 %781
      %783 = vset.pattern.permute.xlu0 0
      %784 = vperm.xlu0 %783, %v715
      %v785 = vpop.permute.xlu0 %784
      %786 = vset.pattern.permute.xlu0 0
      %787 = vperm.xlu0 %786, %v716
      %v788 = vpop.permute.xlu0 %787
      %789 = vset.pattern.permute.xlu0 0
      %790 = vperm.xlu0 %789, %v717
      %v791 = vpop.permute.xlu0 %790
      %792 = vset.pattern.permute.xlu0 0
      %793 = vperm.xlu0 %792, %v718
      %v794 = vpop.permute.xlu0 %793
      %795 = vset.pattern.permute.xlu0 0
      %796 = vperm.xlu0 %795, %v719
      %v797 = vpop.permute.xlu0 %796
      %798 = vset.pattern.permute.xlu0 0
      %799 = vperm.xlu0 %798, %v720
      %v800 = vpop.permute.xlu0 %799
      %801 = vset.pattern.permute.xlu0 0
      %802 = vperm.xlu0 %801, %v721
      %v803 = vpop.permute.xlu0 %802
      %804 = vset.pattern.permute.xlu0 0
      %805 = vperm.xlu0 %804, %v722
      %v806 = vpop.permute.xlu0 %805
      %807 = vset.pattern.permute.xlu0 0
      %808 = vperm.xlu0 %807, %v723
      %v809 = vpop.permute.xlu0 %808
      %810 = vset.pattern.permute.xlu0 0
      %811 = vperm.xlu0 %810, %v724
      %v812 = vpop.permute.xlu0 %811
      %813 = vset.pattern.permute.xlu0 0
      %814 = vperm.xlu0 %813, %v725
      %v815 = vpop.permute.xlu0 %814
      %816 = vset.pattern.permute.xlu0 0
      %817 = vperm.xlu0 %816, %v726
      %v818 = vpop.permute.xlu0 %817
      %819 = vset.pattern.permute.xlu0 0
      %820 = vperm.xlu0 %819, %v727
      %v821 = vpop.permute.xlu0 %820
      %822 = vset.pattern.permute.xlu0 0
      %823 = vperm.xlu0 %822, %v728
      %v824 = vpop.permute.xlu0 %823
      %vm825 = vcmp.eq.s32.totalorder %v731, 1
      %vm826 = vcmp.eq.s32.totalorder %v734, 1
      %vm827 = vcmp.eq.s32.totalorder %v737, 1
      %vm828 = vcmp.eq.s32.totalorder %v740, 1
      %vm829 = vcmp.eq.s32.totalorder %v743, 1
      %vm830 = vcmp.eq.s32.totalorder %v746, 1
      %vm831 = vcmp.eq.s32.totalorder %v749, 1
      %vm832 = vcmp.eq.s32.totalorder %v752, 1
      %vm833 = vcmp.eq.s32.totalorder %v755, 1
      %vm834 = vcmp.eq.s32.totalorder %v758, 1
      %vm835 = vcmp.eq.s32.totalorder %v761, 1
      %vm836 = vcmp.eq.s32.totalorder %v764, 1
      %vm837 = vcmp.eq.s32.totalorder %v767, 1
      %vm838 = vcmp.eq.s32.totalorder %v770, 1
      %vm839 = vcmp.eq.s32.totalorder %v773, 1
      %vm840 = vcmp.eq.s32.totalorder %v776, 1
      %vm841 = vcmp.eq.s32.totalorder %v779, 1
      %vm842 = vcmp.eq.s32.totalorder %v782, 1
      %vm843 = vcmp.eq.s32.totalorder %v785, 1
      %vm844 = vcmp.eq.s32.totalorder %v788, 1
      %vm845 = vcmp.eq.s32.totalorder %v791, 1
      %vm846 = vcmp.eq.s32.totalorder %v794, 1
      %vm847 = vcmp.eq.s32.totalorder %v797, 1
      %vm848 = vcmp.eq.s32.totalorder %v800, 1
      %vm849 = vcmp.eq.s32.totalorder %v803, 1
      %vm850 = vcmp.eq.s32.totalorder %v806, 1
      %vm851 = vcmp.eq.s32.totalorder %v809, 1
      %vm852 = vcmp.eq.s32.totalorder %v812, 1
      %vm853 = vcmp.eq.s32.totalorder %v815, 1
      %vm854 = vcmp.eq.s32.totalorder %v818, 1
      %vm855 = vcmp.eq.s32.totalorder %v821, 1
      %vm856 = vcmp.eq.s32.totalorder %v824, 1
      %vm857 = vmpackc.low %vm825, %vm825
      %vm858 = vmpackc.low %vm826, %vm826
      %vm859 = vmpackc.low %vm827, %vm827
      %vm860 = vmpackc.low %vm828, %vm828
      %vm861 = vmpackc.low %vm829, %vm829
      %vm862 = vmpackc.low %vm830, %vm830
      %vm863 = vmpackc.low %vm831, %vm831
      %vm864 = vmpackc.low %vm832, %vm832
      %vm865 = vmpackc.low %vm833, %vm833
      %vm866 = vmpackc.low %vm834, %vm834
      %vm867 = vmpackc.low %vm835, %vm835
      %vm868 = vmpackc.low %vm836, %vm836
      %vm869 = vmpackc.low %vm837, %vm837
      %vm870 = vmpackc.low %vm838, %vm838
      %vm871 = vmpackc.low %vm839, %vm839
      %vm872 = vmpackc.low %vm840, %vm840
      %vm873 = vmpackc.low %vm841, %vm841
      %vm874 = vmpackc.low %vm842, %vm842
      %vm875 = vmpackc.low %vm843, %vm843
      %vm876 = vmpackc.low %vm844, %vm844
      %vm877 = vmpackc.low %vm845, %vm845
      %vm878 = vmpackc.low %vm846, %vm846
      %vm879 = vmpackc.low %vm847, %vm847
      %vm880 = vmpackc.low %vm848, %vm848
      %vm881 = vmpackc.low %vm849, %vm849
      %vm882 = vmpackc.low %vm850, %vm850
      %vm883 = vmpackc.low %vm851, %vm851
      %vm884 = vmpackc.low %vm852, %vm852
      %vm885 = vmpackc.low %vm853, %vm853
      %vm886 = vmpackc.low %vm854, %vm854
      %vm887 = vmpackc.low %vm855, %vm855
      %vm888 = vmpackc.low %vm856, %vm856
      %v889 = vsel %vm857, 65537, 0
      %v890 = vsel %vm858, 65537, 0
      %v891 = vsel %vm859, 65537, 0
      %v892 = vsel %vm860, 65537, 0
      %v893 = vsel %vm861, 65537, 0
      %v894 = vsel %vm862, 65537, 0
      %v895 = vsel %vm863, 65537, 0
      %v896 = vsel %vm864, 65537, 0
      %v897 = vsel %vm865, 65537, 0
      %v898 = vsel %vm866, 65537, 0
      %v899 = vsel %vm867, 65537, 0
      %v900 = vsel %vm868, 65537, 0
      %v901 = vsel %vm869, 65537, 0
      %v902 = vsel %vm870, 65537, 0
      %v903 = vsel %vm871, 65537, 0
      %v904 = vsel %vm872, 65537, 0
      %v905 = vsel %vm873, 65537, 0
      %v906 = vsel %vm874, 65537, 0
      %v907 = vsel %vm875, 65537, 0
      %v908 = vsel %vm876, 65537, 0
      %v909 = vsel %vm877, 65537, 0
      %v910 = vsel %vm878, 65537, 0
      %v911 = vsel %vm879, 65537, 0
      %v912 = vsel %vm880, 65537, 0
      %v913 = vsel %vm881, 65537, 0
      %v914 = vsel %vm882, 65537, 0
      %v915 = vsel %vm883, 65537, 0
      %v916 = vsel %vm884, 65537, 0
      %v917 = vsel %vm885, 65537, 0
      %v918 = vsel %vm886, 65537, 0
      %v919 = vsel %vm887, 65537, 0
      %v920 = vsel %vm888, 65537, 0
      %vm921 = vsmask.f32 3328
      %vm922 = vsmask.f32 7440
      %vm923 = vmor %vm921, %vm922
      %v925 = vshll.u32 %v889, 16
      %v927 = vrot.slane %v925, 5
      %v928 = vshrl.u32 %v889, 16
      %v930 = vrot.slane %v928, 4
      %v931 = vor.u32 %v930, %v927
      %v932 = vrot.slane %v931, 4
      %v934 = vshll.u32 %v890, 16
      %v936 = vrot.slane %v934, 5
      %v937 = vsel %vm923, %v932, %v936
      %v938 = vshrl.u32 %v890, 16
      %v940 = vrot.slane %v938, 4
      %v941 = vor.u32 %v940, %v936
      %v942 = vrot.slane %v941, 4
      %v944 = vshll.u32 %v891, 16
      %v946 = vrot.slane %v944, 5
      %v947 = vsel %vm923, %v942, %v946
      %v948 = vshrl.u32 %v891, 16
      %v950 = vrot.slane %v948, 4
      %v951 = vor.u32 %v950, %v946
      %v952 = vrot.slane %v951, 4
      %v954 = vshll.u32 %v892, 16
      %v956 = vrot.slane %v954, 5
      %v957 = vsel %vm923, %v952, %v956
      %v958 = vshrl.u32 %v892, 16
      %v960 = vrot.slane %v958, 4
      %v961 = vor.u32 %v960, %v956
      %v962 = vrot.slane %v961, 4
      %v964 = vshll.u32 %v893, 16
      %v966 = vrot.slane %v964, 5
      %v967 = vsel %vm923, %v962, %v966
      %v968 = vshrl.u32 %v893, 16
      %v970 = vrot.slane %v968, 4
      %v971 = vor.u32 %v970, %v966
      %v972 = vrot.slane %v971, 4
      %v974 = vshll.u32 %v894, 16
      %v976 = vrot.slane %v974, 5
      %v977 = vsel %vm923, %v972, %v976
      %v978 = vshrl.u32 %v894, 16
      %v980 = vrot.slane %v978, 4
      %v981 = vor.u32 %v980, %v976
      %v982 = vrot.slane %v981, 4
      %v984 = vshll.u32 %v895, 16
      %v986 = vrot.slane %v984, 5
      %v987 = vsel %vm923, %v982, %v986
      %v988 = vshrl.u32 %v895, 16
      %v990 = vrot.slane %v988, 4
      %v991 = vor.u32 %v990, %v986
      %v992 = vrot.slane %v991, 4
      %v994 = vshll.u32 %v896, 16
      %v996 = vrot.slane %v994, 5
      %v997 = vsel %vm923, %v992, %v996
      %v998 = vshrl.u32 %v896, 16
      %v1000 = vrot.slane %v998, 4
      %v1001 = vor.u32 %v1000, %v996
      %v1002 = vrot.slane %v1001, 4
      %v1004 = vshll.u32 %v897, 16
      %v1006 = vrot.slane %v1004, 5
      %v1007 = vsel %vm923, %v1002, %v1006
      %v1008 = vshrl.u32 %v897, 16
      %v1010 = vrot.slane %v1008, 4
      %v1011 = vor.u32 %v1010, %v1006
      %v1012 = vrot.slane %v1011, 4
      %v1014 = vshll.u32 %v898, 16
      %v1016 = vrot.slane %v1014, 5
      %v1017 = vsel %vm923, %v1012, %v1016
      %v1018 = vshrl.u32 %v898, 16
      %v1020 = vrot.slane %v1018, 4
      %v1021 = vor.u32 %v1020, %v1016
      %v1022 = vrot.slane %v1021, 4
      %v1024 = vshll.u32 %v899, 16
      %v1026 = vrot.slane %v1024, 5
      %v1027 = vsel %vm923, %v1022, %v1026
      %v1028 = vshrl.u32 %v899, 16
      %v1030 = vrot.slane %v1028, 4
      %v1031 = vor.u32 %v1030, %v1026
      %v1032 = vrot.slane %v1031, 4
      %v1034 = vshll.u32 %v900, 16
      %v1036 = vrot.slane %v1034, 5
      %v1037 = vsel %vm923, %v1032, %v1036
      %v1038 = vshrl.u32 %v900, 16
      %v1040 = vrot.slane %v1038, 4
      %v1041 = vor.u32 %v1040, %v1036
      %v1042 = vrot.slane %v1041, 4
      %v1044 = vshll.u32 %v901, 16
      %v1046 = vrot.slane %v1044, 5
      %v1047 = vsel %vm923, %v1042, %v1046
      %v1048 = vshrl.u32 %v901, 16
      %v1050 = vrot.slane %v1048, 4
      %v1051 = vor.u32 %v1050, %v1046
      %v1052 = vrot.slane %v1051, 4
      %v1054 = vshll.u32 %v902, 16
      %v1056 = vrot.slane %v1054, 5
      %v1057 = vsel %vm923, %v1052, %v1056
      %v1058 = vshrl.u32 %v902, 16
      %v1060 = vrot.slane %v1058, 4
      %v1061 = vor.u32 %v1060, %v1056
      %v1062 = vrot.slane %v1061, 4
      %v1064 = vshll.u32 %v903, 16
      %v1066 = vrot.slane %v1064, 5
      %v1067 = vsel %vm923, %v1062, %v1066
      %v1068 = vshrl.u32 %v903, 16
      %v1070 = vrot.slane %v1068, 4
      %v1071 = vor.u32 %v1070, %v1066
      %v1072 = vrot.slane %v1071, 4
      %v1074 = vshll.u32 %v904, 16
      %v1076 = vrot.slane %v1074, 5
      %v1077 = vsel %vm923, %v1072, %v1076
      %v1078 = vshrl.u32 %v904, 16
      %v1080 = vrot.slane %v1078, 4
      %v1081 = vor.u32 %v1080, %v1076
      %v1082 = vrot.slane %v1081, 4
      %v1084 = vshll.u32 %v905, 16
      %v1086 = vrot.slane %v1084, 5
      %v1087 = vsel %vm923, %v1082, %v1086
      %v1088 = vshrl.u32 %v905, 16
      %v1090 = vrot.slane %v1088, 4
      %v1091 = vor.u32 %v1090, %v1086
      %v1092 = vrot.slane %v1091, 4
      %v1094 = vshll.u32 %v906, 16
      %v1096 = vrot.slane %v1094, 5
      %v1097 = vsel %vm923, %v1092, %v1096
      %v1098 = vshrl.u32 %v906, 16
      %v1100 = vrot.slane %v1098, 4
      %v1101 = vor.u32 %v1100, %v1096
      %v1102 = vrot.slane %v1101, 4
      %v1104 = vshll.u32 %v907, 16
      %v1106 = vrot.slane %v1104, 5
      %v1107 = vsel %vm923, %v1102, %v1106
      %v1108 = vshrl.u32 %v907, 16
      %v1110 = vrot.slane %v1108, 4
      %v1111 = vor.u32 %v1110, %v1106
      %v1112 = vrot.slane %v1111, 4
      %v1114 = vshll.u32 %v908, 16
      %v1116 = vrot.slane %v1114, 5
      %v1117 = vsel %vm923, %v1112, %v1116
      %v1118 = vshrl.u32 %v908, 16
      %v1120 = vrot.slane %v1118, 4
      %v1121 = vor.u32 %v1120, %v1116
      %v1122 = vrot.slane %v1121, 4
      %v1124 = vshll.u32 %v909, 16
      %v1126 = vrot.slane %v1124, 5
      %v1127 = vsel %vm923, %v1122, %v1126
      %v1128 = vshrl.u32 %v909, 16
      %v1130 = vrot.slane %v1128, 4
      %v1131 = vor.u32 %v1130, %v1126
      %v1132 = vrot.slane %v1131, 4
      %v1134 = vshll.u32 %v910, 16
      %v1136 = vrot.slane %v1134, 5
      %v1137 = vsel %vm923, %v1132, %v1136
      %v1138 = vshrl.u32 %v910, 16
      %v1140 = vrot.slane %v1138, 4
      %v1141 = vor.u32 %v1140, %v1136
      %v1142 = vrot.slane %v1141, 4
      %v1144 = vshll.u32 %v911, 16
      %v1146 = vrot.slane %v1144, 5
      %v1147 = vsel %vm923, %v1142, %v1146
      %v1148 = vshrl.u32 %v911, 16
      %v1150 = vrot.slane %v1148, 4
      %v1151 = vor.u32 %v1150, %v1146
      %v1152 = vrot.slane %v1151, 4
      %v1154 = vshll.u32 %v912, 16
      %v1156 = vrot.slane %v1154, 5
      %v1157 = vsel %vm923, %v1152, %v1156
      %v1158 = vshrl.u32 %v912, 16
      %v1160 = vrot.slane %v1158, 4
      %v1161 = vor.u32 %v1160, %v1156
      %v1162 = vrot.slane %v1161, 4
      %v1164 = vshll.u32 %v913, 16
      %v1166 = vrot.slane %v1164, 5
      %v1167 = vsel %vm923, %v1162, %v1166
      %v1168 = vshrl.u32 %v913, 16
      %v1170 = vrot.slane %v1168, 4
      %v1171 = vor.u32 %v1170, %v1166
      %v1172 = vrot.slane %v1171, 4
      %v1174 = vshll.u32 %v914, 16
      %v1176 = vrot.slane %v1174, 5
      %v1177 = vsel %vm923, %v1172, %v1176
      %v1178 = vshrl.u32 %v914, 16
      %v1180 = vrot.slane %v1178, 4
      %v1181 = vor.u32 %v1180, %v1176
      %v1182 = vrot.slane %v1181, 4
      %v1184 = vshll.u32 %v915, 16
      %v1186 = vrot.slane %v1184, 5
      %v1187 = vsel %vm923, %v1182, %v1186
      %v1188 = vshrl.u32 %v915, 16
      %v1190 = vrot.slane %v1188, 4
      %v1191 = vor.u32 %v1190, %v1186
      %v1192 = vrot.slane %v1191, 4
      %v1194 = vshll.u32 %v916, 16
      %v1196 = vrot.slane %v1194, 5
      %v1197 = vsel %vm923, %v1192, %v1196
      %v1198 = vshrl.u32 %v916, 16
      %v1200 = vrot.slane %v1198, 4
      %v1201 = vor.u32 %v1200, %v1196
      %v1202 = vrot.slane %v1201, 4
      %v1204 = vshll.u32 %v917, 16
      %v1206 = vrot.slane %v1204, 5
      %v1207 = vsel %vm923, %v1202, %v1206
      %v1208 = vshrl.u32 %v917, 16
      %v1210 = vrot.slane %v1208, 4
      %v1211 = vor.u32 %v1210, %v1206
      %v1212 = vrot.slane %v1211, 4
      %v1214 = vshll.u32 %v918, 16
      %v1216 = vrot.slane %v1214, 5
      %v1217 = vsel %vm923, %v1212, %v1216
      %v1218 = vshrl.u32 %v918, 16
      %v1220 = vrot.slane %v1218, 4
      %v1221 = vor.u32 %v1220, %v1216
      %v1222 = vrot.slane %v1221, 4
      %v1224 = vshll.u32 %v919, 16
      %v1226 = vrot.slane %v1224, 5
      %v1227 = vsel %vm923, %v1222, %v1226
      %v1228 = vshrl.u32 %v919, 16
      %v1230 = vrot.slane %v1228, 4
      %v1231 = vor.u32 %v1230, %v1226
      %v1232 = vrot.slane %v1231, 4
      %v1234 = vshll.u32 %v920, 16
      %v1236 = vrot.slane %v1234, 5
      %v1237 = vsel %vm923, %v1232, %v1236
      %v1238 = vshrl.u32 %v920, 16
      %v1240 = vrot.slane %v1238, 4
      %v1241 = vor.u32 %v1240, %v1236
      %v1242 = vrot.slane %v1241, 4
      %vm1243 = vcmp.ne.s16.totalorder %v927, 0
      %vm1244 = vcmp.ne.s16.totalorder %v937, 0
      %vm1245 = vcmp.ne.s16.totalorder %v947, 0
      %vm1246 = vcmp.ne.s16.totalorder %v957, 0
      %vm1247 = vcmp.ne.s16.totalorder %v967, 0
      %vm1248 = vcmp.ne.s16.totalorder %v977, 0
      %vm1249 = vcmp.ne.s16.totalorder %v987, 0
      %vm1250 = vcmp.ne.s16.totalorder %v997, 0
      %vm1251 = vcmp.ne.s16.totalorder %v1007, 0
      %vm1252 = vcmp.ne.s16.totalorder %v1017, 0
      %vm1253 = vcmp.ne.s16.totalorder %v1027, 0
      %vm1254 = vcmp.ne.s16.totalorder %v1037, 0
      %vm1255 = vcmp.ne.s16.totalorder %v1047, 0
      %vm1256 = vcmp.ne.s16.totalorder %v1057, 0
      %vm1257 = vcmp.ne.s16.totalorder %v1067, 0
      %vm1258 = vcmp.ne.s16.totalorder %v1077, 0
      %vm1259 = vcmp.ne.s16.totalorder %v1087, 0
      %vm1260 = vcmp.ne.s16.totalorder %v1097, 0
      %vm1261 = vcmp.ne.s16.totalorder %v1107, 0
      %vm1262 = vcmp.ne.s16.totalorder %v1117, 0
      %vm1263 = vcmp.ne.s16.totalorder %v1127, 0
      %vm1264 = vcmp.ne.s16.totalorder %v1137, 0
      %vm1265 = vcmp.ne.s16.totalorder %v1147, 0
      %vm1266 = vcmp.ne.s16.totalorder %v1157, 0
      %vm1267 = vcmp.ne.s16.totalorder %v1167, 0
      %vm1268 = vcmp.ne.s16.totalorder %v1177, 0
      %vm1269 = vcmp.ne.s16.totalorder %v1187, 0
      %vm1270 = vcmp.ne.s16.totalorder %v1197, 0
      %vm1271 = vcmp.ne.s16.totalorder %v1207, 0
      %vm1272 = vcmp.ne.s16.totalorder %v1217, 0
      %vm1273 = vcmp.ne.s16.totalorder %v1227, 0
      %vm1274 = vcmp.ne.s16.totalorder %v1237, 0
      %vm1275 = vcmp.ne.s16.totalorder %v1242, 0
      %v1276 = vsel %vm1243, %v664, 0
      %v1277 = vsel %vm1244, %v665, 0
      %v1278 = vsel %vm1245, %v666, 0
      %v1279 = vsel %vm1246, %v667, 0
      %v1280 = vsel %vm1247, %v668, 0
      %v1281 = vsel %vm1248, %v669, 0
      %v1282 = vsel %vm1249, %v670, 0
      %v1283 = vsel %vm1250, %v671, 0
      %v1284 = vsel %vm1251, %v672, 0
      %v1285 = vsel %vm1252, %v673, 0
      %v1286 = vsel %vm1253, %v674, 0
      %v1287 = vsel %vm1254, %v675, 0
      %v1288 = vsel %vm1255, %v676, 0
      %v1289 = vsel %vm1256, %v677, 0
      %v1290 = vsel %vm1257, %v678, 0
      %v1291 = vsel %vm1258, %v679, 0
      %v1292 = vsel %vm1259, %v680, 0
      %v1293 = vsel %vm1260, %v681, 0
      %v1294 = vsel %vm1261, %v682, 0
      %v1295 = vsel %vm1262, %v683, 0
      %v1296 = vsel %vm1263, %v684, 0
      %v1297 = vsel %vm1264, %v685, 0
      %v1298 = vsel %vm1265, %v686, 0
      %v1299 = vsel %vm1266, %v687, 0
      %v1300 = vsel %vm1267, %v688, 0
      %v1301 = vsel %vm1268, %v689, 0
      %v1302 = vsel %vm1269, %v690, 0
      %v1303 = vsel %vm1270, %v691, 0
      %v1304 = vsel %vm1271, %v692, 0
      %v1305 = vsel %vm1272, %v693, 0
      %v1306 = vsel %vm1273, %v694, 0
      %v1307 = vsel %vm1274, %v695, 0
      %v1308 = vsel %vm1275, %v696, 0
      %v1309 = vld [vmem:[%s239] sm:$0xf]
      %v1310 = vld [vmem:[%s239 + $0x4] sm:$0xf]
      %v1311 = vld [vmem:[%s239 + $0x8] sm:$0xf]
      %v1312 = vld [vmem:[%s239 + $0xc] sm:$0xf]
      %v1313 = vld [vmem:[%s239 + $0x10] sm:$0xf]
      %v1314 = vld [vmem:[%s239 + $0x14] sm:$0xf]
      %v1315 = vld [vmem:[%s239 + $0x18] sm:$0xf]
      %v1316 = vld [vmem:[%s239 + $0x1c] sm:$0xf]
      %v1317 = vld [vmem:[%s239 + $0x20] sm:$0xf]
      %v1318 = vld [vmem:[%s239 + $0x24] sm:$0xf]
      %v1319 = vld [vmem:[%s239 + $0x28] sm:$0xf]
      %v1320 = vld [vmem:[%s239 + $0x2c] sm:$0xf]
      %v1321 = vld [vmem:[%s239 + $0x30] sm:$0xf]
      %v1322 = vld [vmem:[%s239 + $0x34] sm:$0xf]
      %v1323 = vld [vmem:[%s239 + $0x38] sm:$0xf]
      %v1324 = vld [vmem:[%s239 + $0x3c] sm:$0xf]
      %s1325 = scalar_lea.vmem %s239, 64
      %v1326 = vld [vmem:[%s1325] sm:$0xf]
      %v1327 = vld [vmem:[%s1325 + $0x4] sm:$0xf]
      %v1328 = vld [vmem:[%s1325 + $0x8] sm:$0xf]
      %v1329 = vld [vmem:[%s1325 + $0xc] sm:$0xf]
      %v1330 = vld [vmem:[%s1325 + $0x10] sm:$0xf]
      %v1331 = vld [vmem:[%s1325 + $0x14] sm:$0xf]
      %v1332 = vld [vmem:[%s1325 + $0x18] sm:$0xf]
      %v1333 = vld [vmem:[%s1325 + $0x1c] sm:$0xf]
      %v1334 = vld [vmem:[%s1325 + $0x20] sm:$0xf]
      %v1335 = vld [vmem:[%s1325 + $0x24] sm:$0xf]
      %v1336 = vld [vmem:[%s1325 + $0x28] sm:$0xf]
      %v1337 = vld [vmem:[%s1325 + $0x2c] sm:$0xf]
      %v1338 = vld [vmem:[%s1325 + $0x30] sm:$0xf]
      %v1339 = vld [vmem:[%s1325 + $0x34] sm:$0xf]
      %v1340 = vld [vmem:[%s1325 + $0x38] sm:$0xf]
      %v1341 = vld [vmem:[%s1325 + $0x3c] sm:$0xf]
      %v1374 = vunpack.c.l.b16 %v665
      %v1375 = vunpack.c.l.b16 %v666
      %v1376 = vunpack.c.l.b16 %v667
      %v1377 = vunpack.c.l.b16 %v668
      %v1378 = vunpack.c.l.b16 %v669
      %v1379 = vunpack.c.l.b16 %v670
      %v1380 = vunpack.c.l.b16 %v671
      %v1381 = vunpack.c.l.b16 %v672
      %v1382 = vunpack.c.l.b16 %v673
      %v1383 = vunpack.c.l.b16 %v674
      %v1384 = vunpack.c.l.b16 %v675
      %v1385 = vunpack.c.l.b16 %v676
      %v1386 = vunpack.c.l.b16 %v677
      %v1387 = vunpack.c.l.b16 %v678
      %v1388 = vunpack.c.l.b16 %v679
      %v1389 = vunpack.c.l.b16 %v680
      %v1390 = vunpack.c.l.b16 %v681
      %v1391 = vunpack.c.l.b16 %v682
      %v1392 = vunpack.c.l.b16 %v683
      %v1393 = vunpack.c.l.b16 %v684
      %v1394 = vunpack.c.l.b16 %v685
      %v1395 = vunpack.c.l.b16 %v686
      %v1396 = vunpack.c.l.b16 %v687
      %v1397 = vunpack.c.l.b16 %v688
      %v1398 = vunpack.c.l.b16 %v689
      %v1399 = vunpack.c.l.b16 %v690
      %v1400 = vunpack.c.l.b16 %v691
      %v1401 = vunpack.c.l.b16 %v692
      %v1402 = vunpack.c.l.b16 %v693
      %v1403 = vunpack.c.l.b16 %v694
      %v1404 = vunpack.c.l.b16 %v695
      %v1405 = vunpack.c.l.b16 %v696
      %v1406 = vpack.c.b16 %v1375, %v1374
      %v1407 = vpack.c.b16 %v1377, %v1376
      %v1408 = vpack.c.b16 %v1379, %v1378
      %v1409 = vpack.c.b16 %v1381, %v1380
      %v1410 = vpack.c.b16 %v1383, %v1382
      %v1411 = vpack.c.b16 %v1385, %v1384
      %v1412 = vpack.c.b16 %v1387, %v1386
      %v1413 = vpack.c.b16 %v1389, %v1388
      %v1414 = vpack.c.b16 %v1391, %v1390
      %v1415 = vpack.c.b16 %v1393, %v1392
      %v1416 = vpack.c.b16 %v1395, %v1394
      %v1417 = vpack.c.b16 %v1397, %v1396
      %v1418 = vpack.c.b16 %v1399, %v1398
      %v1419 = vpack.c.b16 %v1401, %v1400
      %v1420 = vpack.c.b16 %v1403, %v1402
      %v1421 = vpack.c.b16 %v1405, %v1404
      %v1454 = vunpack.c.l.b16 %v1326
      %v1455 = vunpack.c.l.b16 %v1327
      %v1456 = vunpack.c.l.b16 %v1328
      %v1457 = vunpack.c.l.b16 %v1329
      %v1458 = vunpack.c.l.b16 %v1330
      %v1459 = vunpack.c.l.b16 %v1331
      %v1460 = vunpack.c.l.b16 %v1332
      %v1461 = vunpack.c.l.b16 %v1333
      %v1462 = vunpack.c.l.b16 %v1334
      %v1463 = vunpack.c.l.b16 %v1335
      %v1464 = vunpack.c.l.b16 %v1336
      %v1465 = vunpack.c.l.b16 %v1337
      %v1466 = vunpack.c.l.b16 %v1338
      %v1467 = vunpack.c.l.b16 %v1339
      %v1468 = vunpack.c.l.b16 %v1340
      %v1469 = vunpack.c.l.b16 %v1341
      %v1470 = vpack.c.b16 %v1455, %v1454
      %v1471 = vpack.c.b16 %v1457, %v1456
      %v1472 = vpack.c.b16 %v1459, %v1458
      %v1473 = vpack.c.b16 %v1461, %v1460
      %v1474 = vpack.c.b16 %v1463, %v1462
      %v1475 = vpack.c.b16 %v1465, %v1464
      %v1476 = vpack.c.b16 %v1467, %v1466
      %v1477 = vpack.c.b16 %v1469, %v1468
      %1486 = vmatprep.subr.bf16.mxu0 0
      %1487 = vmatpush1.bf16.msra.mxu0 %v1470
      %1488 = vmatprep.subr.bf16.mxu0 0
      %1489 = vmatpush1.bf16.msra.mxu0 %v1471
      %1490 = vmatprep.subr.bf16.mxu0 0
      %1491 = vmatpush1.bf16.msra.mxu0 %v1472
      %1492 = vmatprep.subr.bf16.mxu0 0
      %1493 = vmatpush1.bf16.msra.mxu0 %v1473
      %1494 = vmatprep.subr.bf16.mxu0 0
      %1495 = vmatpush1.bf16.msra.mxu0 %v1474
      %1496 = vmatprep.subr.bf16.mxu0 0
      %1497 = vmatpush1.bf16.msra.mxu0 %v1475
      %1498 = vmatprep.subr.bf16.mxu0 0
      %1499 = vmatpush1.bf16.msra.mxu0 %v1476
      %1500 = vmatprep.subr.bf16.mxu0 0
      %1501 = vmatpush1.bf16.msra.mxu0 %v1477
      %1502 = vmatprep.subr.bf16.mxu0 0
      %1503 = vmatpush1.bf16.msra.mxu0 0
      %1504 = vmatprep.subr.bf16.mxu0 0
      %1505 = vmatpush1.bf16.msra.mxu0 0
      %1506 = vmatprep.subr.bf16.mxu0 0
      %1507 = vmatpush1.bf16.msra.mxu0 0
      %1508 = vmatprep.subr.bf16.mxu0 0
      %1509 = vmatpush1.bf16.msra.mxu0 0
      %1510 = vmatprep.subr.bf16.mxu0 0
      %1511 = vmatpush1.bf16.msra.mxu0 0
      %1512 = vmatprep.subr.bf16.mxu0 0
      %1513 = vmatpush1.bf16.msra.mxu0 0
      %1514 = vmatprep.subr.bf16.mxu0 0
      %1515 = vmatpush1.bf16.msra.mxu0 0
      %1516 = vmatprep.subr.bf16.mxu0 0
      %1517 = vmatpush1.bf16.msra.mxu0 0
      %1518 = vmatprep.mubr.bf16.mxu0 0
      %1519 = vmatmul.mubr.bf16.gmra.mrb[0].mxu0 %v1406
      %v1520 = vpop.f32.mrb[0].mxu0
      %v1521 = vadd.f32 0.0, %v1520
      %v1522 = vpop.f32.mrb[0].mxu0
      %v1523 = vpop.f32.mrb[0].mxu0
      %v1524 = vadd.f32 0.0, %v1523
      %v1525 = vpop.f32.mrb[0].mxu0
      %1526 = vmatprep.mubr.bf16.mxu0 0
      %1527 = vmatmul.mubr.bf16.gmra.mrb[0].mxu0 %v1407
      %v1528 = vpop.f32.mrb[0].mxu0
      %v1529 = vadd.f32 0.0, %v1528
      %v1530 = vpop.f32.mrb[0].mxu0
      %v1531 = vpop.f32.mrb[0].mxu0
      %v1532 = vadd.f32 0.0, %v1531
      %v1533 = vpop.f32.mrb[0].mxu0
      %1534 = vmatprep.mubr.bf16.mxu0 0
      %1535 = vmatmul.mubr.bf16.gmra.mrb[0].mxu0 %v1408
      %v1536 = vpop.f32.mrb[0].mxu0
      %v1537 = vadd.f32 0.0, %v1536
      %v1538 = vpop.f32.mrb[0].mxu0
      %v1539 = vpop.f32.mrb[0].mxu0
      %v1540 = vadd.f32 0.0, %v1539
      %v1541 = vpop.f32.mrb[0].mxu0
      %1542 = vmatprep.mubr.bf16.mxu0 0
      %1543 = vmatmul.mubr.bf16.gmra.mrb[0].mxu0 %v1409
      %v1544 = vpop.f32.mrb[0].mxu0
      %v1545 = vadd.f32 0.0, %v1544
      %v1546 = vpop.f32.mrb[0].mxu0
      %v1547 = vpop.f32.mrb[0].mxu0
      %v1548 = vadd.f32 0.0, %v1547
      %v1549 = vpop.f32.mrb[0].mxu0
      %1550 = vmatprep.mubr.bf16.mxu0 0
      %1551 = vmatmul.mubr.bf16.gmra.mrb[0].mxu0 %v1410
      %v1552 = vpop.f32.mrb[0].mxu0
      %v1553 = vadd.f32 0.0, %v1552
      %v1554 = vpop.f32.mrb[0].mxu0
      %v1555 = vpop.f32.mrb[0].mxu0
      %v1556 = vadd.f32 0.0, %v1555
      %v1557 = vpop.f32.mrb[0].mxu0
      %1558 = vmatprep.mubr.bf16.mxu0 0
      %1559 = vmatmul.mubr.bf16.gmra.mrb[0].mxu0 %v1411
      %v1560 = vpop.f32.mrb[0].mxu0
      %v1561 = vadd.f32 0.0, %v1560
      %v1562 = vpop.f32.mrb[0].mxu0
      %v1563 = vpop.f32.mrb[0].mxu0
      %v1564 = vadd.f32 0.0, %v1563
      %v1565 = vpop.f32.mrb[0].mxu0
      %1566 = vmatprep.mubr.bf16.mxu0 0
      %1567 = vmatmul.mubr.bf16.gmra.mrb[0].mxu0 %v1412
      %v1568 = vpop.f32.mrb[0].mxu0
      %v1569 = vadd.f32 0.0, %v1568
      %v1570 = vpop.f32.mrb[0].mxu0
      %v1571 = vpop.f32.mrb[0].mxu0
      %v1572 = vadd.f32 0.0, %v1571
      %v1573 = vpop.f32.mrb[0].mxu0
      %1574 = vmatprep.mubr.bf16.mxu0 0
      %1575 = vmatmul.mubr.bf16.gmra.mrb[0].mxu0 %v1413
      %v1576 = vpop.f32.mrb[0].mxu0
      %v1577 = vadd.f32 0.0, %v1576
      %v1578 = vpop.f32.mrb[0].mxu0
      %v1579 = vpop.f32.mrb[0].mxu0
      %v1580 = vadd.f32 0.0, %v1579
      %v1581 = vpop.f32.mrb[0].mxu0
      %1582 = vmatprep.mubr.bf16.mxu0 0
      %1583 = vmatmul.mubr.bf16.gmra.mrb[0].mxu0 %v1414
      %v1584 = vpop.f32.mrb[0].mxu0
      %v1585 = vadd.f32 0.0, %v1584
      %v1586 = vpop.f32.mrb[0].mxu0
      %v1587 = vpop.f32.mrb[0].mxu0
      %v1588 = vadd.f32 0.0, %v1587
      %v1589 = vpop.f32.mrb[0].mxu0
      %1590 = vmatprep.mubr.bf16.mxu0 0
      %1591 = vmatmul.mubr.bf16.gmra.mrb[0].mxu0 %v1415
      %v1592 = vpop.f32.mrb[0].mxu0
      %v1593 = vadd.f32 0.0, %v1592
      %v1594 = vpop.f32.mrb[0].mxu0
      %v1595 = vpop.f32.mrb[0].mxu0
      %v1596 = vadd.f32 0.0, %v1595
      %v1597 = vpop.f32.mrb[0].mxu0
      %1598 = vmatprep.mubr.bf16.mxu0 0
      %1599 = vmatmul.mubr.bf16.gmra.mrb[0].mxu0 %v1416
      %v1600 = vpop.f32.mrb[0].mxu0
      %v1601 = vadd.f32 0.0, %v1600
      %v1602 = vpop.f32.mrb[0].mxu0
      %v1603 = vpop.f32.mrb[0].mxu0
      %v1604 = vadd.f32 0.0, %v1603
      %v1605 = vpop.f32.mrb[0].mxu0
      %1606 = vmatprep.mubr.bf16.mxu0 0
      %1607 = vmatmul.mubr.bf16.gmra.mrb[0].mxu0 %v1417
      %v1608 = vpop.f32.mrb[0].mxu0
      %v1609 = vadd.f32 0.0, %v1608
      %v1610 = vpop.f32.mrb[0].mxu0
      %v1611 = vpop.f32.mrb[0].mxu0
      %v1612 = vadd.f32 0.0, %v1611
      %v1613 = vpop.f32.mrb[0].mxu0
      %1614 = vmatprep.mubr.bf16.mxu0 0
      %1615 = vmatmul.mubr.bf16.gmra.mrb[0].mxu0 %v1418
      %v1616 = vpop.f32.mrb[0].mxu0
      %v1617 = vadd.f32 0.0, %v1616
      %v1618 = vpop.f32.mrb[0].mxu0
      %v1619 = vpop.f32.mrb[0].mxu0
      %v1620 = vadd.f32 0.0, %v1619
      %v1621 = vpop.f32.mrb[0].mxu0
      %1622 = vmatprep.mubr.bf16.mxu0 0
      %1623 = vmatmul.mubr.bf16.gmra.mrb[0].mxu0 %v1419
      %v1624 = vpop.f32.mrb[0].mxu0
      %v1625 = vadd.f32 0.0, %v1624
      %v1626 = vpop.f32.mrb[0].mxu0
      %v1627 = vpop.f32.mrb[0].mxu0
      %v1628 = vadd.f32 0.0, %v1627
      %v1629 = vpop.f32.mrb[0].mxu0
      %1630 = vmatprep.mubr.bf16.mxu0 0
      %1631 = vmatmul.mubr.bf16.gmra.mrb[0].mxu0 %v1420
      %v1632 = vpop.f32.mrb[0].mxu0
      %v1633 = vadd.f32 0.0, %v1632
      %v1634 = vpop.f32.mrb[0].mxu0
      %v1635 = vpop.f32.mrb[0].mxu0
      %v1636 = vadd.f32 0.0, %v1635
      %v1637 = vpop.f32.mrb[0].mxu0
      %1638 = vmatprep.mubr.bf16.mxu0 0
      %1639 = vmatmul.mubr.bf16.gmra.mrb[0].mxu0 %v1421
      %v1640 = vpop.f32.mrb[0].mxu0
      %v1641 = vadd.f32 0.0, %v1640
      %v1642 = vpop.f32.mrb[0].mxu0
      %v1643 = vpop.f32.mrb[0].mxu0
      %v1644 = vadd.f32 0.0, %v1643
      %v1645 = vpop.f32.mrb[0].mxu0
      %1646 = vdwg.mxu0
      %v1680 = vunpack.c.l.b16 %v1276
      %v1681 = vunpack.c.l.b16 %v1277
      %v1682 = vunpack.c.l.b16 %v1278
      %v1683 = vunpack.c.l.b16 %v1279
      %v1684 = vunpack.c.l.b16 %v1280
      %v1685 = vunpack.c.l.b16 %v1281
      %v1686 = vunpack.c.l.b16 %v1282
      %v1687 = vunpack.c.l.b16 %v1283
      %v1688 = vunpack.c.l.b16 %v1284
      %v1689 = vunpack.c.l.b16 %v1285
      %v1690 = vunpack.c.l.b16 %v1286
      %v1691 = vunpack.c.l.b16 %v1287
      %v1692 = vunpack.c.l.b16 %v1288
      %v1693 = vunpack.c.l.b16 %v1289
      %v1694 = vunpack.c.l.b16 %v1290
      %v1695 = vunpack.c.l.b16 %v1291
      %v1696 = vunpack.c.l.b16 %v1292
      %v1697 = vunpack.c.l.b16 %v1293
      %v1698 = vunpack.c.l.b16 %v1294
      %v1699 = vunpack.c.l.b16 %v1295
      %v1700 = vunpack.c.l.b16 %v1296
      %v1701 = vunpack.c.l.b16 %v1297
      %v1702 = vunpack.c.l.b16 %v1298
      %v1703 = vunpack.c.l.b16 %v1299
      %v1704 = vunpack.c.l.b16 %v1300
      %v1705 = vunpack.c.l.b16 %v1301
      %v1706 = vunpack.c.l.b16 %v1302
      %v1707 = vunpack.c.l.b16 %v1303
      %v1708 = vunpack.c.l.b16 %v1304
      %v1709 = vunpack.c.l.b16 %v1305
      %v1710 = vunpack.c.l.b16 %v1306
      %v1711 = vunpack.c.l.b16 %v1307
      %v1712 = vunpack.c.l.b16 %v1308
      %v1713 = vpack.c.b16 %v1681, %v1680
      %v1714 = vpack.c.b16 %v1683, %v1682
      %v1715 = vpack.c.b16 %v1685, %v1684
      %v1716 = vpack.c.b16 %v1687, %v1686
      %v1717 = vpack.c.b16 %v1689, %v1688
      %v1718 = vpack.c.b16 %v1691, %v1690
      %v1719 = vpack.c.b16 %v1693, %v1692
      %v1720 = vpack.c.b16 %v1695, %v1694
      %v1721 = vpack.c.b16 %v1697, %v1696
      %v1722 = vpack.c.b16 %v1699, %v1698
      %v1723 = vpack.c.b16 %v1701, %v1700
      %v1724 = vpack.c.b16 %v1703, %v1702
      %v1725 = vpack.c.b16 %v1705, %v1704
      %v1726 = vpack.c.b16 %v1707, %v1706
      %v1727 = vpack.c.b16 %v1709, %v1708
      %v1728 = vpack.c.b16 %v1711, %v1710
      %v1729 = vpack.c.b16 %v1712, %v1712
      %vm1730 = vsmask.f32 4352
      %v1732 = vshrl.u32 %v1713, 16
      %v1734 = vrot.slane %v1732, 3
      %v1735 = vshll.u32 %v1713, 16
      %v1737 = vrot.slane %v1735, 4
      %v1738 = vor.u32 %v1734, %v1737
      %v1740 = vshrl.u32 %v1714, 16
      %v1742 = vrot.slane %v1740, 3
      %v1743 = vshll.u32 %v1714, 16
      %v1745 = vrot.slane %v1743, 4
      %v1746 = vor.u32 %v1742, %v1745
      %v1747 = vsel %vm1730, %v1738, %v1746
      %v1749 = vshrl.u32 %v1715, 16
      %v1751 = vrot.slane %v1749, 3
      %v1752 = vshll.u32 %v1715, 16
      %v1754 = vrot.slane %v1752, 4
      %v1755 = vor.u32 %v1751, %v1754
      %v1756 = vsel %vm1730, %v1746, %v1755
      %v1758 = vshrl.u32 %v1716, 16
      %v1760 = vrot.slane %v1758, 3
      %v1761 = vshll.u32 %v1716, 16
      %v1763 = vrot.slane %v1761, 4
      %v1764 = vor.u32 %v1760, %v1763
      %v1765 = vsel %vm1730, %v1755, %v1764
      %v1767 = vshrl.u32 %v1717, 16
      %v1769 = vrot.slane %v1767, 3
      %v1770 = vshll.u32 %v1717, 16
      %v1772 = vrot.slane %v1770, 4
      %v1773 = vor.u32 %v1769, %v1772
      %v1774 = vsel %vm1730, %v1764, %v1773
      %v1776 = vshrl.u32 %v1718, 16
      %v1778 = vrot.slane %v1776, 3
      %v1779 = vshll.u32 %v1718, 16
      %v1781 = vrot.slane %v1779, 4
      %v1782 = vor.u32 %v1778, %v1781
      %v1783 = vsel %vm1730, %v1773, %v1782
      %v1785 = vshrl.u32 %v1719, 16
      %v1787 = vrot.slane %v1785, 3
      %v1788 = vshll.u32 %v1719, 16
      %v1790 = vrot.slane %v1788, 4
      %v1791 = vor.u32 %v1787, %v1790
      %v1792 = vsel %vm1730, %v1782, %v1791
      %v1794 = vshrl.u32 %v1720, 16
      %v1796 = vrot.slane %v1794, 3
      %v1797 = vshll.u32 %v1720, 16
      %v1799 = vrot.slane %v1797, 4
      %v1800 = vor.u32 %v1796, %v1799
      %v1801 = vsel %vm1730, %v1791, %v1800
      %v1803 = vshrl.u32 %v1721, 16
      %v1805 = vrot.slane %v1803, 3
      %v1806 = vshll.u32 %v1721, 16
      %v1808 = vrot.slane %v1806, 4
      %v1809 = vor.u32 %v1805, %v1808
      %v1810 = vsel %vm1730, %v1800, %v1809
      %v1812 = vshrl.u32 %v1722, 16
      %v1814 = vrot.slane %v1812, 3
      %v1815 = vshll.u32 %v1722, 16
      %v1817 = vrot.slane %v1815, 4
      %v1818 = vor.u32 %v1814, %v1817
      %v1819 = vsel %vm1730, %v1809, %v1818
      %v1821 = vshrl.u32 %v1723, 16
      %v1823 = vrot.slane %v1821, 3
      %v1824 = vshll.u32 %v1723, 16
      %v1826 = vrot.slane %v1824, 4
      %v1827 = vor.u32 %v1823, %v1826
      %v1828 = vsel %vm1730, %v1818, %v1827
      %v1830 = vshrl.u32 %v1724, 16
      %v1832 = vrot.slane %v1830, 3
      %v1833 = vshll.u32 %v1724, 16
      %v1835 = vrot.slane %v1833, 4
      %v1836 = vor.u32 %v1832, %v1835
      %v1837 = vsel %vm1730, %v1827, %v1836
      %v1839 = vshrl.u32 %v1725, 16
      %v1841 = vrot.slane %v1839, 3
      %v1842 = vshll.u32 %v1725, 16
      %v1844 = vrot.slane %v1842, 4
      %v1845 = vor.u32 %v1841, %v1844
      %v1846 = vsel %vm1730, %v1836, %v1845
      %v1848 = vshrl.u32 %v1726, 16
      %v1850 = vrot.slane %v1848, 3
      %v1851 = vshll.u32 %v1726, 16
      %v1853 = vrot.slane %v1851, 4
      %v1854 = vor.u32 %v1850, %v1853
      %v1855 = vsel %vm1730, %v1845, %v1854
      %v1857 = vshrl.u32 %v1727, 16
      %v1859 = vrot.slane %v1857, 3
      %v1860 = vshll.u32 %v1727, 16
      %v1862 = vrot.slane %v1860, 4
      %v1863 = vor.u32 %v1859, %v1862
      %v1864 = vsel %vm1730, %v1854, %v1863
      %v1866 = vshrl.u32 %v1728, 16
      %v1868 = vrot.slane %v1866, 3
      %v1869 = vshll.u32 %v1728, 16
      %v1871 = vrot.slane %v1869, 4
      %v1872 = vor.u32 %v1868, %v1871
      %v1873 = vsel %vm1730, %v1863, %v1872
      %v1875 = vshrl.u32 %v1729, 16
      %v1877 = vrot.slane %v1875, 3
      %v1878 = vshll.u32 %v1729, 16
      %v1880 = vrot.slane %v1878, 4
      %v1881 = vor.u32 %v1877, %v1880
      %v1882 = vsel %vm1730, %v1872, %v1881
      %v1915 = vunpack.c.l.b16 %v1309
      %v1916 = vunpack.c.l.b16 %v1310
      %v1917 = vunpack.c.l.b16 %v1311
      %v1918 = vunpack.c.l.b16 %v1312
      %v1919 = vunpack.c.l.b16 %v1313
      %v1920 = vunpack.c.l.b16 %v1314
      %v1921 = vunpack.c.l.b16 %v1315
      %v1922 = vunpack.c.l.b16 %v1316
      %v1923 = vunpack.c.l.b16 %v1317
      %v1924 = vunpack.c.l.b16 %v1318
      %v1925 = vunpack.c.l.b16 %v1319
      %v1926 = vunpack.c.l.b16 %v1320
      %v1927 = vunpack.c.l.b16 %v1321
      %v1928 = vunpack.c.l.b16 %v1322
      %v1929 = vunpack.c.l.b16 %v1323
      %v1930 = vunpack.c.l.b16 %v1324
      %v1931 = vpack.c.b16 %v1916, %v1915
      %v1932 = vpack.c.b16 %v1918, %v1917
      %v1933 = vpack.c.b16 %v1920, %v1919
      %v1934 = vpack.c.b16 %v1922, %v1921
      %v1935 = vpack.c.b16 %v1924, %v1923
      %v1936 = vpack.c.b16 %v1926, %v1925
      %v1937 = vpack.c.b16 %v1928, %v1927
      %v1938 = vpack.c.b16 %v1930, %v1929
      %1947 = vmatprep.subr.bf16.mxu0 0
      %1948 = vmatpush1.bf16.msra.mxu0 %v1931
      %1949 = vmatprep.subr.bf16.mxu0 0
      %1950 = vmatpush1.bf16.msra.mxu0 %v1932
      %1951 = vmatprep.subr.bf16.mxu0 0
      %1952 = vmatpush1.bf16.msra.mxu0 %v1933
      %1953 = vmatprep.subr.bf16.mxu0 0
      %1954 = vmatpush1.bf16.msra.mxu0 %v1934
      %1955 = vmatprep.subr.bf16.mxu0 0
      %1956 = vmatpush1.bf16.msra.mxu0 %v1935
      %1957 = vmatprep.subr.bf16.mxu0 0
      %1958 = vmatpush1.bf16.msra.mxu0 %v1936
      %1959 = vmatprep.subr.bf16.mxu0 0
      %1960 = vmatpush1.bf16.msra.mxu0 %v1937
      %1961 = vmatprep.subr.bf16.mxu0 0
      %1962 = vmatpush1.bf16.msra.mxu0 %v1938
      %1963 = vmatprep.subr.bf16.mxu0 0
      %1964 = vmatpush1.bf16.msra.mxu0 0
      %1965 = vmatprep.subr.bf16.mxu0 0
      %1966 = vmatpush1.bf16.msra.mxu0 0
      %1967 = vmatprep.subr.bf16.mxu0 0
      %1968 = vmatpush1.bf16.msra.mxu0 0
      %1969 = vmatprep.subr.bf16.mxu0 0
      %1970 = vmatpush1.bf16.msra.mxu0 0
      %1971 = vmatprep.subr.bf16.mxu0 0
      %1972 = vmatpush1.bf16.msra.mxu0 0
      %1973 = vmatprep.subr.bf16.mxu0 0
      %1974 = vmatpush1.bf16.msra.mxu0 0
      %1975 = vmatprep.subr.bf16.mxu0 0
      %1976 = vmatpush1.bf16.msra.mxu0 0
      %1977 = vmatprep.subr.bf16.mxu0 0
      %1978 = vmatpush1.bf16.msra.mxu0 0
      %1979 = vmatprep.mubr.bf16.mxu0 0
      %1980 = vmatmul.mubr.bf16.gmra.mrb[0].mxu0 %v1747
      %v1981 = vpop.f32.mrb[0].mxu0
      %v1982 = vadd.f32 %v1521, %v1981
      %v1983 = vpop.f32.mrb[0].mxu0
      %v1984 = vpop.f32.mrb[0].mxu0
      %v1985 = vadd.f32 %v1524, %v1984
      %v1986 = vpop.f32.mrb[0].mxu0
      %1987 = vmatprep.mubr.bf16.mxu0 0
      %1988 = vmatmul.mubr.bf16.gmra.mrb[0].mxu0 %v1756
      %v1989 = vpop.f32.mrb[0].mxu0
      %v1990 = vadd.f32 %v1529, %v1989
      %v1991 = vpop.f32.mrb[0].mxu0
      %v1992 = vpop.f32.mrb[0].mxu0
      %v1993 = vadd.f32 %v1532, %v1992
      %v1994 = vpop.f32.mrb[0].mxu0
      %1995 = vmatprep.mubr.bf16.mxu0 0
      %1996 = vmatmul.mubr.bf16.gmra.mrb[0].mxu0 %v1765
      %v1997 = vpop.f32.mrb[0].mxu0
      %v1998 = vadd.f32 %v1537, %v1997
      %v1999 = vpop.f32.mrb[0].mxu0
      %v2000 = vpop.f32.mrb[0].mxu0
      %v2001 = vadd.f32 %v1540, %v2000
      %v2002 = vpop.f32.mrb[0].mxu0
      %2003 = vmatprep.mubr.bf16.mxu0 0
      %2004 = vmatmul.mubr.bf16.gmra.mrb[0].mxu0 %v1774
      %v2005 = vpop.f32.mrb[0].mxu0
      %v2006 = vadd.f32 %v1545, %v2005
      %v2007 = vpop.f32.mrb[0].mxu0
      %v2008 = vpop.f32.mrb[0].mxu0
      %v2009 = vadd.f32 %v1548, %v2008
      %v2010 = vpop.f32.mrb[0].mxu0
      %2011 = vmatprep.mubr.bf16.mxu0 0
      %2012 = vmatmul.mubr.bf16.gmra.mrb[0].mxu0 %v1783
      %v2013 = vpop.f32.mrb[0].mxu0
      %v2014 = vadd.f32 %v1553, %v2013
      %v2015 = vpop.f32.mrb[0].mxu0
      %v2016 = vpop.f32.mrb[0].mxu0
      %v2017 = vadd.f32 %v1556, %v2016
      %v2018 = vpop.f32.mrb[0].mxu0
      %2019 = vmatprep.mubr.bf16.mxu0 0
      %2020 = vmatmul.mubr.bf16.gmra.mrb[0].mxu0 %v1792
      %v2021 = vpop.f32.mrb[0].mxu0
      %v2022 = vadd.f32 %v1561, %v2021
      %v2023 = vpop.f32.mrb[0].mxu0
      %v2024 = vpop.f32.mrb[0].mxu0
      %v2025 = vadd.f32 %v1564, %v2024
      %v2026 = vpop.f32.mrb[0].mxu0
      %2027 = vmatprep.mubr.bf16.mxu0 0
      %2028 = vmatmul.mubr.bf16.gmra.mrb[0].mxu0 %v1801
      %v2029 = vpop.f32.mrb[0].mxu0
      %v2030 = vadd.f32 %v1569, %v2029
      %v2031 = vpop.f32.mrb[0].mxu0
      %v2032 = vpop.f32.mrb[0].mxu0
      %v2033 = vadd.f32 %v1572, %v2032
      %v2034 = vpop.f32.mrb[0].mxu0
      %2035 = vmatprep.mubr.bf16.mxu0 0
      %2036 = vmatmul.mubr.bf16.gmra.mrb[0].mxu0 %v1810
      %v2037 = vpop.f32.mrb[0].mxu0
      %v2038 = vadd.f32 %v1577, %v2037
      %v2039 = vpop.f32.mrb[0].mxu0
      %v2040 = vpop.f32.mrb[0].mxu0
      %v2041 = vadd.f32 %v1580, %v2040
      %v2042 = vpop.f32.mrb[0].mxu0
      %2043 = vmatprep.mubr.bf16.mxu0 0
      %2044 = vmatmul.mubr.bf16.gmra.mrb[0].mxu0 %v1819
      %v2045 = vpop.f32.mrb[0].mxu0
      %v2046 = vadd.f32 %v1585, %v2045
      %v2047 = vpop.f32.mrb[0].mxu0
      %v2048 = vpop.f32.mrb[0].mxu0
      %v2049 = vadd.f32 %v1588, %v2048
      %v2050 = vpop.f32.mrb[0].mxu0
      %2051 = vmatprep.mubr.bf16.mxu0 0
      %2052 = vmatmul.mubr.bf16.gmra.mrb[0].mxu0 %v1828
      %v2053 = vpop.f32.mrb[0].mxu0
      %v2054 = vadd.f32 %v1593, %v2053
      %v2055 = vpop.f32.mrb[0].mxu0
      %v2056 = vpop.f32.mrb[0].mxu0
      %v2057 = vadd.f32 %v1596, %v2056
      %v2058 = vpop.f32.mrb[0].mxu0
      %2059 = vmatprep.mubr.bf16.mxu0 0
      %2060 = vmatmul.mubr.bf16.gmra.mrb[0].mxu0 %v1837
      %v2061 = vpop.f32.mrb[0].mxu0
      %v2062 = vadd.f32 %v1601, %v2061
      %v2063 = vpop.f32.mrb[0].mxu0
      %v2064 = vpop.f32.mrb[0].mxu0
      %v2065 = vadd.f32 %v1604, %v2064
      %v2066 = vpop.f32.mrb[0].mxu0
      %2067 = vmatprep.mubr.bf16.mxu0 0
      %2068 = vmatmul.mubr.bf16.gmra.mrb[0].mxu0 %v1846
      %v2069 = vpop.f32.mrb[0].mxu0
      %v2070 = vadd.f32 %v1609, %v2069
      %v2071 = vpop.f32.mrb[0].mxu0
      %v2072 = vpop.f32.mrb[0].mxu0
      %v2073 = vadd.f32 %v1612, %v2072
      %v2074 = vpop.f32.mrb[0].mxu0
      %2075 = vmatprep.mubr.bf16.mxu0 0
      %2076 = vmatmul.mubr.bf16.gmra.mrb[0].mxu0 %v1855
      %v2077 = vpop.f32.mrb[0].mxu0
      %v2078 = vadd.f32 %v1617, %v2077
      %v2079 = vpop.f32.mrb[0].mxu0
      %v2080 = vpop.f32.mrb[0].mxu0
      %v2081 = vadd.f32 %v1620, %v2080
      %v2082 = vpop.f32.mrb[0].mxu0
      %2083 = vmatprep.mubr.bf16.mxu0 0
      %2084 = vmatmul.mubr.bf16.gmra.mrb[0].mxu0 %v1864
      %v2085 = vpop.f32.mrb[0].mxu0
      %v2086 = vadd.f32 %v1625, %v2085
      %v2087 = vpop.f32.mrb[0].mxu0
      %v2088 = vpop.f32.mrb[0].mxu0
      %v2089 = vadd.f32 %v1628, %v2088
      %v2090 = vpop.f32.mrb[0].mxu0
      %2091 = vmatprep.mubr.bf16.mxu0 0
      %2092 = vmatmul.mubr.bf16.gmra.mrb[0].mxu0 %v1873
      %v2093 = vpop.f32.mrb[0].mxu0
      %v2094 = vadd.f32 %v1633, %v2093
      %v2095 = vpop.f32.mrb[0].mxu0
      %v2096 = vpop.f32.mrb[0].mxu0
      %v2097 = vadd.f32 %v1636, %v2096
      %v2098 = vpop.f32.mrb[0].mxu0
      %2099 = vmatprep.mubr.bf16.mxu0 0
      %2100 = vmatmul.mubr.bf16.gmra.mrb[0].mxu0 %v1882
      %v2101 = vpop.f32.mrb[0].mxu0
      %v2102 = vadd.f32 %v1641, %v2101
      %v2103 = vpop.f32.mrb[0].mxu0
      %v2104 = vpop.f32.mrb[0].mxu0
      %v2105 = vadd.f32 %v1644, %v2104
      %v2106 = vpop.f32.mrb[0].mxu0
      %2107 = vdwg.mxu0
      %v2108 = vld [vmem:[#allocation2 + $0x8] sm:$0xf]
      %v2109 = vld [vmem:[#allocation2 + $0xc] sm:$0xf]
      %v2110 = vld [vmem:[#allocation2 + $0x10] sm:$0xf]
      %v2111 = vld [vmem:[#allocation2 + $0x14] sm:$0xf]
      %v2112 = vld [vmem:[#allocation2 + $0x18] sm:$0xf]
      %v2113 = vld [vmem:[#allocation2 + $0x1c] sm:$0xf]
      %v2114 = vld [vmem:[#allocation2 + $0x20] sm:$0xf]
      %v2115 = vld [vmem:[#allocation2 + $0x24] sm:$0xf]
      %v2116 = vld [vmem:[#allocation2 + $0x28] sm:$0xf]
      %v2117 = vld [vmem:[#allocation2 + $0x2c] sm:$0xf]
      %v2118 = vld [vmem:[#allocation2 + $0x30] sm:$0xf]
      %v2119 = vld [vmem:[#allocation2 + $0x34] sm:$0xf]
      %v2120 = vld [vmem:[#allocation2 + $0x38] sm:$0xf]
      %v2121 = vld [vmem:[#allocation2 + $0x3c] sm:$0xf]
      %v2122 = vld [vmem:[#allocation2 + $0x40] sm:$0xf]
      %v2123 = vld [vmem:[#allocation2 + $0x44] sm:$0xf]
      %v2124 = vld [vmem:[#allocation2 + $0x48] sm:$0xf]
      %v2125 = vld [vmem:[#allocation2 + $0x4c] sm:$0xf]
      %v2126 = vld [vmem:[#allocation2 + $0x50] sm:$0xf]
      %v2127 = vld [vmem:[#allocation2 + $0x54] sm:$0xf]
      %v2128 = vld [vmem:[#allocation2 + $0x58] sm:$0xf]
      %v2129 = vld [vmem:[#allocation2 + $0x5c] sm:$0xf]
      %v2130 = vld [vmem:[#allocation2 + $0x60] sm:$0xf]
      %v2131 = vld [vmem:[#allocation2 + $0x64] sm:$0xf]
      %v2132 = vld [vmem:[#allocation2 + $0x68] sm:$0xf]
      %v2133 = vld [vmem:[#allocation2 + $0x6c] sm:$0xf]
      %v2134 = vld [vmem:[#allocation2 + $0x70] sm:$0xf]
      %v2135 = vld [vmem:[#allocation2 + $0x74] sm:$0xf]
      %v2136 = vld [vmem:[#allocation2 + $0x78] sm:$0xf]
      %v2137 = vld [vmem:[#allocation2 + $0x7c] sm:$0xf]
      %v2138 = vld [vmem:[#allocation2 + $0x80] sm:$0xf]
      %v2139 = vld [vmem:[#allocation2 + $0x84] sm:$0xf]
      %v2140 = vld [vmem:[#allocation2 + $0x88] sm:$0x1]
      %v2141 = vsel %vm632, 1, 0
      %v2142 = vsel %vm633, 1, 0
      %v2143 = vsel %vm634, 1, 0
      %v2144 = vsel %vm635, 1, 0
      %v2145 = vsel %vm636, 1, 0
      %v2146 = vsel %vm637, 1, 0
      %v2147 = vsel %vm638, 1, 0
      %v2148 = vsel %vm639, 1, 0
      %v2149 = vsel %vm640, 1, 0
      %v2150 = vsel %vm641, 1, 0
      %v2151 = vsel %vm642, 1, 0
      %v2152 = vsel %vm643, 1, 0
      %v2153 = vsel %vm644, 1, 0
      %v2154 = vsel %vm645, 1, 0
      %v2155 = vsel %vm646, 1, 0
      %v2156 = vsel %vm647, 1, 0
      %v2157 = vsel %vm648, 1, 0
      %v2158 = vsel %vm649, 1, 0
      %v2159 = vsel %vm650, 1, 0
      %v2160 = vsel %vm651, 1, 0
      %v2161 = vsel %vm652, 1, 0
      %v2162 = vsel %vm653, 1, 0
      %v2163 = vsel %vm654, 1, 0
      %v2164 = vsel %vm655, 1, 0
      %v2165 = vsel %vm656, 1, 0
      %v2166 = vsel %vm657, 1, 0
      %v2167 = vsel %vm658, 1, 0
      %v2168 = vsel %vm659, 1, 0
      %v2169 = vsel %vm660, 1, 0
      %v2170 = vsel %vm661, 1, 0
      %v2171 = vsel %vm662, 1, 0
      %v2172 = vsel %vm663, 1, 0
      %2173 = vset.pattern.permute.xlu0 0
      %2174 = vperm.xlu0 %2173, %v2141
      %v2175 = vpop.permute.xlu0 %2174
      %2176 = vset.pattern.permute.xlu0 0
      %2177 = vperm.xlu0 %2176, %v2142
      %v2178 = vpop.permute.xlu0 %2177
      %2179 = vset.pattern.permute.xlu0 0
      %2180 = vperm.xlu0 %2179, %v2143
      %v2181 = vpop.permute.xlu0 %2180
      %2182 = vset.pattern.permute.xlu0 0
      %2183 = vperm.xlu0 %2182, %v2144
      %v2184 = vpop.permute.xlu0 %2183
      %2185 = vset.pattern.permute.xlu0 0
      %2186 = vperm.xlu0 %2185, %v2145
      %v2187 = vpop.permute.xlu0 %2186
      %2188 = vset.pattern.permute.xlu0 0
      %2189 = vperm.xlu0 %2188, %v2146
      %v2190 = vpop.permute.xlu0 %2189
      %2191 = vset.pattern.permute.xlu0 0
      %2192 = vperm.xlu0 %2191, %v2147
      %v2193 = vpop.permute.xlu0 %2192
      %2194 = vset.pattern.permute.xlu0 0
      %2195 = vperm.xlu0 %2194, %v2148
      %v2196 = vpop.permute.xlu0 %2195
      %2197 = vset.pattern.permute.xlu0 0
      %2198 = vperm.xlu0 %2197, %v2149
      %v2199 = vpop.permute.xlu0 %2198
      %2200 = vset.pattern.permute.xlu0 0
      %2201 = vperm.xlu0 %2200, %v2150
      %v2202 = vpop.permute.xlu0 %2201
      %2203 = vset.pattern.permute.xlu0 0
      %2204 = vperm.xlu0 %2203, %v2151
      %v2205 = vpop.permute.xlu0 %2204
      %2206 = vset.pattern.permute.xlu0 0
      %2207 = vperm.xlu0 %2206, %v2152
      %v2208 = vpop.permute.xlu0 %2207
      %2209 = vset.pattern.permute.xlu0 0
      %2210 = vperm.xlu0 %2209, %v2153
      %v2211 = vpop.permute.xlu0 %2210
      %2212 = vset.pattern.permute.xlu0 0
      %2213 = vperm.xlu0 %2212, %v2154
      %v2214 = vpop.permute.xlu0 %2213
      %2215 = vset.pattern.permute.xlu0 0
      %2216 = vperm.xlu0 %2215, %v2155
      %v2217 = vpop.permute.xlu0 %2216
      %2218 = vset.pattern.permute.xlu0 0
      %2219 = vperm.xlu0 %2218, %v2156
      %v2220 = vpop.permute.xlu0 %2219
      %2221 = vset.pattern.permute.xlu0 0
      %2222 = vperm.xlu0 %2221, %v2157
      %v2223 = vpop.permute.xlu0 %2222
      %2224 = vset.pattern.permute.xlu0 0
      %2225 = vperm.xlu0 %2224, %v2158
      %v2226 = vpop.permute.xlu0 %2225
      %2227 = vset.pattern.permute.xlu0 0
      %2228 = vperm.xlu0 %2227, %v2159
      %v2229 = vpop.permute.xlu0 %2228
      %2230 = vset.pattern.permute.xlu0 0
      %2231 = vperm.xlu0 %2230, %v2160
      %v2232 = vpop.permute.xlu0 %2231
      %2233 = vset.pattern.permute.xlu0 0
      %2234 = vperm.xlu0 %2233, %v2161
      %v2235 = vpop.permute.xlu0 %2234
      %2236 = vset.pattern.permute.xlu0 0
      %2237 = vperm.xlu0 %2236, %v2162
      %v2238 = vpop.permute.xlu0 %2237
      %2239 = vset.pattern.permute.xlu0 0
      %2240 = vperm.xlu0 %2239, %v2163
      %v2241 = vpop.permute.xlu0 %2240
      %2242 = vset.pattern.permute.xlu0 0
      %2243 = vperm.xlu0 %2242, %v2164
      %v2244 = vpop.permute.xlu0 %2243
      %2245 = vset.pattern.permute.xlu0 0
      %2246 = vperm.xlu0 %2245, %v2165
      %v2247 = vpop.permute.xlu0 %2246
      %2248 = vset.pattern.permute.xlu0 0
      %2249 = vperm.xlu0 %2248, %v2166
      %v2250 = vpop.permute.xlu0 %2249
      %2251 = vset.pattern.permute.xlu0 0
      %2252 = vperm.xlu0 %2251, %v2167
      %v2253 = vpop.permute.xlu0 %2252
      %2254 = vset.pattern.permute.xlu0 0
      %2255 = vperm.xlu0 %2254, %v2168
      %v2256 = vpop.permute.xlu0 %2255
      %2257 = vset.pattern.permute.xlu0 0
      %2258 = vperm.xlu0 %2257, %v2169
      %v2259 = vpop.permute.xlu0 %2258
      %2260 = vset.pattern.permute.xlu0 0
      %2261 = vperm.xlu0 %2260, %v2170
      %v2262 = vpop.permute.xlu0 %2261
      %2263 = vset.pattern.permute.xlu0 0
      %2264 = vperm.xlu0 %2263, %v2171
      %v2265 = vpop.permute.xlu0 %2264
      %2266 = vset.pattern.permute.xlu0 0
      %2267 = vperm.xlu0 %2266, %v2172
      %v2268 = vpop.permute.xlu0 %2267
      %vm2269 = vcmp.eq.s32.totalorder %v2175, 1
      %vm2270 = vcmp.eq.s32.totalorder %v2178, 1
      %vm2271 = vcmp.eq.s32.totalorder %v2181, 1
      %vm2272 = vcmp.eq.s32.totalorder %v2184, 1
      %vm2273 = vcmp.eq.s32.totalorder %v2187, 1
      %vm2274 = vcmp.eq.s32.totalorder %v2190, 1
      %vm2275 = vcmp.eq.s32.totalorder %v2193, 1
      %vm2276 = vcmp.eq.s32.totalorder %v2196, 1
      %vm2277 = vcmp.eq.s32.totalorder %v2199, 1
      %vm2278 = vcmp.eq.s32.totalorder %v2202, 1
      %vm2279 = vcmp.eq.s32.totalorder %v2205, 1
      %vm2280 = vcmp.eq.s32.totalorder %v2208, 1
      %vm2281 = vcmp.eq.s32.totalorder %v2211, 1
      %vm2282 = vcmp.eq.s32.totalorder %v2214, 1
      %vm2283 = vcmp.eq.s32.totalorder %v2217, 1
      %vm2284 = vcmp.eq.s32.totalorder %v2220, 1
      %vm2285 = vcmp.eq.s32.totalorder %v2223, 1
      %vm2286 = vcmp.eq.s32.totalorder %v2226, 1
      %vm2287 = vcmp.eq.s32.totalorder %v2229, 1
      %vm2288 = vcmp.eq.s32.totalorder %v2232, 1
      %vm2289 = vcmp.eq.s32.totalorder %v2235, 1
      %vm2290 = vcmp.eq.s32.totalorder %v2238, 1
      %vm2291 = vcmp.eq.s32.totalorder %v2241, 1
      %vm2292 = vcmp.eq.s32.totalorder %v2244, 1
      %vm2293 = vcmp.eq.s32.totalorder %v2247, 1
      %vm2294 = vcmp.eq.s32.totalorder %v2250, 1
      %vm2295 = vcmp.eq.s32.totalorder %v2253, 1
      %vm2296 = vcmp.eq.s32.totalorder %v2256, 1
      %vm2297 = vcmp.eq.s32.totalorder %v2259, 1
      %vm2298 = vcmp.eq.s32.totalorder %v2262, 1
      %vm2299 = vcmp.eq.s32.totalorder %v2265, 1
      %vm2300 = vcmp.eq.s32.totalorder %v2268, 1
      %vm2301 = vmpackc.low %vm2269, %vm2269
      %vm2302 = vmpackc.low %vm2270, %vm2270
      %vm2303 = vmpackc.low %vm2271, %vm2271
      %vm2304 = vmpackc.low %vm2272, %vm2272
      %vm2305 = vmpackc.low %vm2273, %vm2273
      %vm2306 = vmpackc.low %vm2274, %vm2274
      %vm2307 = vmpackc.low %vm2275, %vm2275
      %vm2308 = vmpackc.low %vm2276, %vm2276
      %vm2309 = vmpackc.low %vm2277, %vm2277
      %vm2310 = vmpackc.low %vm2278, %vm2278
      %vm2311 = vmpackc.low %vm2279, %vm2279
      %vm2312 = vmpackc.low %vm2280, %vm2280
      %vm2313 = vmpackc.low %vm2281, %vm2281
      %vm2314 = vmpackc.low %vm2282, %vm2282
      %vm2315 = vmpackc.low %vm2283, %vm2283
      %vm2316 = vmpackc.low %vm2284, %vm2284
      %vm2317 = vmpackc.low %vm2285, %vm2285
      %vm2318 = vmpackc.low %vm2286, %vm2286
      %vm2319 = vmpackc.low %vm2287, %vm2287
      %vm2320 = vmpackc.low %vm2288, %vm2288
      %vm2321 = vmpackc.low %vm2289, %vm2289
      %vm2322 = vmpackc.low %vm2290, %vm2290
      %vm2323 = vmpackc.low %vm2291, %vm2291
      %vm2324 = vmpackc.low %vm2292, %vm2292
      %vm2325 = vmpackc.low %vm2293, %vm2293
      %vm2326 = vmpackc.low %vm2294, %vm2294
      %vm2327 = vmpackc.low %vm2295, %vm2295
      %vm2328 = vmpackc.low %vm2296, %vm2296
      %vm2329 = vmpackc.low %vm2297, %vm2297
      %vm2330 = vmpackc.low %vm2298, %vm2298
      %vm2331 = vmpackc.low %vm2299, %vm2299
      %vm2332 = vmpackc.low %vm2300, %vm2300
      %v2333 = vsel %vm2301, 65537, 0
      %v2334 = vsel %vm2302, 65537, 0
      %v2335 = vsel %vm2303, 65537, 0
      %v2336 = vsel %vm2304, 65537, 0
      %v2337 = vsel %vm2305, 65537, 0
      %v2338 = vsel %vm2306, 65537, 0
      %v2339 = vsel %vm2307, 65537, 0
      %v2340 = vsel %vm2308, 65537, 0
      %v2341 = vsel %vm2309, 65537, 0
      %v2342 = vsel %vm2310, 65537, 0
      %v2343 = vsel %vm2311, 65537, 0
      %v2344 = vsel %vm2312, 65537, 0
      %v2345 = vsel %vm2313, 65537, 0
      %v2346 = vsel %vm2314, 65537, 0
      %v2347 = vsel %vm2315, 65537, 0
      %v2348 = vsel %vm2316, 65537, 0
      %v2349 = vsel %vm2317, 65537, 0
      %v2350 = vsel %vm2318, 65537, 0
      %v2351 = vsel %vm2319, 65537, 0
      %v2352 = vsel %vm2320, 65537, 0
      %v2353 = vsel %vm2321, 65537, 0
      %v2354 = vsel %vm2322, 65537, 0
      %v2355 = vsel %vm2323, 65537, 0
      %v2356 = vsel %vm2324, 65537, 0
      %v2357 = vsel %vm2325, 65537, 0
      %v2358 = vsel %vm2326, 65537, 0
      %v2359 = vsel %vm2327, 65537, 0
      %v2360 = vsel %vm2328, 65537, 0
      %v2361 = vsel %vm2329, 65537, 0
      %v2362 = vsel %vm2330, 65537, 0
      %v2363 = vsel %vm2331, 65537, 0
      %v2364 = vsel %vm2332, 65537, 0
      %vm2365 = vsmask.f32 256
      %vm2366 = vsmask.f32 4368
      %vm2367 = vmor %vm2365, %vm2366
      %v2369 = vshrl.u32 %v2333, 16
      %v2371 = vrot.slane %v2369, 7
      %v2372 = vshll.u32 %v2333, 16
      %v2374 = vor.u32 %v2371, %v2372
      %v2375 = vrot.slane %v2371, 4
      %v2377 = vshrl.u32 %v2334, 16
      %v2379 = vrot.slane %v2377, 7
      %v2380 = vshll.u32 %v2334, 16
      %v2382 = vor.u32 %v2379, %v2380
      %v2383 = vsel %vm2367, %v2375, %v2382
      %v2384 = vrot.slane %v2379, 4
      %v2386 = vshrl.u32 %v2335, 16
      %v2388 = vrot.slane %v2386, 7
      %v2389 = vshll.u32 %v2335, 16
      %v2391 = vor.u32 %v2388, %v2389
      %v2392 = vsel %vm2367, %v2384, %v2391
      %v2393 = vrot.slane %v2388, 4
      %v2395 = vshrl.u32 %v2336, 16
      %v2397 = vrot.slane %v2395, 7
      %v2398 = vshll.u32 %v2336, 16
      %v2400 = vor.u32 %v2397, %v2398
      %v2401 = vsel %vm2367, %v2393, %v2400
      %v2402 = vrot.slane %v2397, 4
      %v2404 = vshrl.u32 %v2337, 16
      %v2406 = vrot.slane %v2404, 7
      %v2407 = vshll.u32 %v2337, 16
      %v2409 = vor.u32 %v2406, %v2407
      %v2410 = vsel %vm2367, %v2402, %v2409
      %v2411 = vrot.slane %v2406, 4
      %v2413 = vshrl.u32 %v2338, 16
      %v2415 = vrot.slane %v2413, 7
      %v2416 = vshll.u32 %v2338, 16
      %v2418 = vor.u32 %v2415, %v2416
      %v2419 = vsel %vm2367, %v2411, %v2418
      %v2420 = vrot.slane %v2415, 4
      %v2422 = vshrl.u32 %v2339, 16
      %v2424 = vrot.slane %v2422, 7
      %v2425 = vshll.u32 %v2339, 16
      %v2427 = vor.u32 %v2424, %v2425
      %v2428 = vsel %vm2367, %v2420, %v2427
      %v2429 = vrot.slane %v2424, 4
      %v2431 = vshrl.u32 %v2340, 16
      %v2433 = vrot.slane %v2431, 7
      %v2434 = vshll.u32 %v2340, 16
      %v2436 = vor.u32 %v2433, %v2434
      %v2437 = vsel %vm2367, %v2429, %v2436
      %v2438 = vrot.slane %v2433, 4
      %v2440 = vshrl.u32 %v2341, 16
      %v2442 = vrot.slane %v2440, 7
      %v2443 = vshll.u32 %v2341, 16
      %v2445 = vor.u32 %v2442, %v2443
      %v2446 = vsel %vm2367, %v2438, %v2445
      %v2447 = vrot.slane %v2442, 4
      %v2449 = vshrl.u32 %v2342, 16
      %v2451 = vrot.slane %v2449, 7
      %v2452 = vshll.u32 %v2342, 16
      %v2454 = vor.u32 %v2451, %v2452
      %v2455 = vsel %vm2367, %v2447, %v2454
      %v2456 = vrot.slane %v2451, 4
      %v2458 = vshrl.u32 %v2343, 16
      %v2460 = vrot.slane %v2458, 7
      %v2461 = vshll.u32 %v2343, 16
      %v2463 = vor.u32 %v2460, %v2461
      %v2464 = vsel %vm2367, %v2456, %v2463
      %v2465 = vrot.slane %v2460, 4
      %v2467 = vshrl.u32 %v2344, 16
      %v2469 = vrot.slane %v2467, 7
      %v2470 = vshll.u32 %v2344, 16
      %v2472 = vor.u32 %v2469, %v2470
      %v2473 = vsel %vm2367, %v2465, %v2472
      %v2474 = vrot.slane %v2469, 4
      %v2476 = vshrl.u32 %v2345, 16
      %v2478 = vrot.slane %v2476, 7
      %v2479 = vshll.u32 %v2345, 16
      %v2481 = vor.u32 %v2478, %v2479
      %v2482 = vsel %vm2367, %v2474, %v2481
      %v2483 = vrot.slane %v2478, 4
      %v2485 = vshrl.u32 %v2346, 16
      %v2487 = vrot.slane %v2485, 7
      %v2488 = vshll.u32 %v2346, 16
      %v2490 = vor.u32 %v2487, %v2488
      %v2491 = vsel %vm2367, %v2483, %v2490
      %v2492 = vrot.slane %v2487, 4
      %v2494 = vshrl.u32 %v2347, 16
      %v2496 = vrot.slane %v2494, 7
      %v2497 = vshll.u32 %v2347, 16
      %v2499 = vor.u32 %v2496, %v2497
      %v2500 = vsel %vm2367, %v2492, %v2499
      %v2501 = vrot.slane %v2496, 4
      %v2503 = vshrl.u32 %v2348, 16
      %v2505 = vrot.slane %v2503, 7
      %v2506 = vshll.u32 %v2348, 16
      %v2508 = vor.u32 %v2505, %v2506
      %v2509 = vsel %vm2367, %v2501, %v2508
      %v2510 = vrot.slane %v2505, 4
      %v2512 = vshrl.u32 %v2349, 16
      %v2514 = vrot.slane %v2512, 7
      %v2515 = vshll.u32 %v2349, 16
      %v2517 = vor.u32 %v2514, %v2515
      %v2518 = vsel %vm2367, %v2510, %v2517
      %v2519 = vrot.slane %v2514, 4
      %v2521 = vshrl.u32 %v2350, 16
      %v2523 = vrot.slane %v2521, 7
      %v2524 = vshll.u32 %v2350, 16
      %v2526 = vor.u32 %v2523, %v2524
      %v2527 = vsel %vm2367, %v2519, %v2526
      %v2528 = vrot.slane %v2523, 4
      %v2530 = vshrl.u32 %v2351, 16
      %v2532 = vrot.slane %v2530, 7
      %v2533 = vshll.u32 %v2351, 16
      %v2535 = vor.u32 %v2532, %v2533
      %v2536 = vsel %vm2367, %v2528, %v2535
      %v2537 = vrot.slane %v2532, 4
      %v2539 = vshrl.u32 %v2352, 16
      %v2541 = vrot.slane %v2539, 7
      %v2542 = vshll.u32 %v2352, 16
      %v2544 = vor.u32 %v2541, %v2542
      %v2545 = vsel %vm2367, %v2537, %v2544
      %v2546 = vrot.slane %v2541, 4
      %v2548 = vshrl.u32 %v2353, 16
      %v2550 = vrot.slane %v2548, 7
      %v2551 = vshll.u32 %v2353, 16
      %v2553 = vor.u32 %v2550, %v2551
      %v2554 = vsel %vm2367, %v2546, %v2553
      %v2555 = vrot.slane %v2550, 4
      %v2557 = vshrl.u32 %v2354, 16
      %v2559 = vrot.slane %v2557, 7
      %v2560 = vshll.u32 %v2354, 16
      %v2562 = vor.u32 %v2559, %v2560
      %v2563 = vsel %vm2367, %v2555, %v2562
      %v2564 = vrot.slane %v2559, 4
      %v2566 = vshrl.u32 %v2355, 16
      %v2568 = vrot.slane %v2566, 7
      %v2569 = vshll.u32 %v2355, 16
      %v2571 = vor.u32 %v2568, %v2569
      %v2572 = vsel %vm2367, %v2564, %v2571
      %v2573 = vrot.slane %v2568, 4
      %v2575 = vshrl.u32 %v2356, 16
      %v2577 = vrot.slane %v2575, 7
      %v2578 = vshll.u32 %v2356, 16
      %v2580 = vor.u32 %v2577, %v2578
      %v2581 = vsel %vm2367, %v2573, %v2580
      %v2582 = vrot.slane %v2577, 4
      %v2584 = vshrl.u32 %v2357, 16
      %v2586 = vrot.slane %v2584, 7
      %v2587 = vshll.u32 %v2357, 16
      %v2589 = vor.u32 %v2586, %v2587
      %v2590 = vsel %vm2367, %v2582, %v2589
      %v2591 = vrot.slane %v2586, 4
      %v2593 = vshrl.u32 %v2358, 16
      %v2595 = vrot.slane %v2593, 7
      %v2596 = vshll.u32 %v2358, 16
      %v2598 = vor.u32 %v2595, %v2596
      %v2599 = vsel %vm2367, %v2591, %v2598
      %v2600 = vrot.slane %v2595, 4
      %v2602 = vshrl.u32 %v2359, 16
      %v2604 = vrot.slane %v2602, 7
      %v2605 = vshll.u32 %v2359, 16
      %v2607 = vor.u32 %v2604, %v2605
      %v2608 = vsel %vm2367, %v2600, %v2607
      %v2609 = vrot.slane %v2604, 4
      %v2611 = vshrl.u32 %v2360, 16
      %v2613 = vrot.slane %v2611, 7
      %v2614 = vshll.u32 %v2360, 16
      %v2616 = vor.u32 %v2613, %v2614
      %v2617 = vsel %vm2367, %v2609, %v2616
      %v2618 = vrot.slane %v2613, 4
      %v2620 = vshrl.u32 %v2361, 16
      %v2622 = vrot.slane %v2620, 7
      %v2623 = vshll.u32 %v2361, 16
      %v2625 = vor.u32 %v2622, %v2623
      %v2626 = vsel %vm2367, %v2618, %v2625
      %v2627 = vrot.slane %v2622, 4
      %v2629 = vshrl.u32 %v2362, 16
      %v2631 = vrot.slane %v2629, 7
      %v2632 = vshll.u32 %v2362, 16
      %v2634 = vor.u32 %v2631, %v2632
      %v2635 = vsel %vm2367, %v2627, %v2634
      %v2636 = vrot.slane %v2631, 4
      %v2638 = vshrl.u32 %v2363, 16
      %v2640 = vrot.slane %v2638, 7
      %v2641 = vshll.u32 %v2363, 16
      %v2643 = vor.u32 %v2640, %v2641
      %v2644 = vsel %vm2367, %v2636, %v2643
      %v2645 = vrot.slane %v2640, 4
      %v2647 = vshrl.u32 %v2364, 16
      %v2649 = vrot.slane %v2647, 7
      %v2650 = vshll.u32 %v2364, 16
      %v2652 = vor.u32 %v2649, %v2650
      %v2653 = vsel %vm2367, %v2645, %v2652
      %v2654 = vrot.slane %v2649, 4
      %vm2655 = vcmp.ne.s16.totalorder %v2374, 0
      %vm2656 = vcmp.ne.s16.totalorder %v2383, 0
      %vm2657 = vcmp.ne.s16.totalorder %v2392, 0
      %vm2658 = vcmp.ne.s16.totalorder %v2401, 0
      %vm2659 = vcmp.ne.s16.totalorder %v2410, 0
      %vm2660 = vcmp.ne.s16.totalorder %v2419, 0
      %vm2661 = vcmp.ne.s16.totalorder %v2428, 0
      %vm2662 = vcmp.ne.s16.totalorder %v2437, 0
      %vm2663 = vcmp.ne.s16.totalorder %v2446, 0
      %vm2664 = vcmp.ne.s16.totalorder %v2455, 0
      %vm2665 = vcmp.ne.s16.totalorder %v2464, 0
      %vm2666 = vcmp.ne.s16.totalorder %v2473, 0
      %vm2667 = vcmp.ne.s16.totalorder %v2482, 0
      %vm2668 = vcmp.ne.s16.totalorder %v2491, 0
      %vm2669 = vcmp.ne.s16.totalorder %v2500, 0
      %vm2670 = vcmp.ne.s16.totalorder %v2509, 0
      %vm2671 = vcmp.ne.s16.totalorder %v2518, 0
      %vm2672 = vcmp.ne.s16.totalorder %v2527, 0
      %vm2673 = vcmp.ne.s16.totalorder %v2536, 0
      %vm2674 = vcmp.ne.s16.totalorder %v2545, 0
      %vm2675 = vcmp.ne.s16.totalorder %v2554, 0
      %vm2676 = vcmp.ne.s16.totalorder %v2563, 0
      %vm2677 = vcmp.ne.s16.totalorder %v2572, 0
      %vm2678 = vcmp.ne.s16.totalorder %v2581, 0
      %vm2679 = vcmp.ne.s16.totalorder %v2590, 0
      %vm2680 = vcmp.ne.s16.totalorder %v2599, 0
      %vm2681 = vcmp.ne.s16.totalorder %v2608, 0
      %vm2682 = vcmp.ne.s16.totalorder %v2617, 0
      %vm2683 = vcmp.ne.s16.totalorder %v2626, 0
      %vm2684 = vcmp.ne.s16.totalorder %v2635, 0
      %vm2685 = vcmp.ne.s16.totalorder %v2644, 0
      %vm2686 = vcmp.ne.s16.totalorder %v2653, 0
      %vm2687 = vcmp.ne.s16.totalorder %v2654, 0
      %v2688 = vsel %vm2655, %v2108, 0
      %v2689 = vsel %vm2656, %v2109, 0
      %v2690 = vsel %vm2657, %v2110, 0
      %v2691 = vsel %vm2658, %v2111, 0
      %v2692 = vsel %vm2659, %v2112, 0
      %v2693 = vsel %vm2660, %v2113, 0
      %v2694 = vsel %vm2661, %v2114, 0
      %v2695 = vsel %vm2662, %v2115, 0
      %v2696 = vsel %vm2663, %v2116, 0
      %v2697 = vsel %vm2664, %v2117, 0
      %v2698 = vsel %vm2665, %v2118, 0
      %v2699 = vsel %vm2666, %v2119, 0
      %v2700 = vsel %vm2667, %v2120, 0
      %v2701 = vsel %vm2668, %v2121, 0
      %v2702 = vsel %vm2669, %v2122, 0
      %v2703 = vsel %vm2670, %v2123, 0
      %v2704 = vsel %vm2671, %v2124, 0
      %v2705 = vsel %vm2672, %v2125, 0
      %v2706 = vsel %vm2673, %v2126, 0
      %v2707 = vsel %vm2674, %v2127, 0
      %v2708 = vsel %vm2675, %v2128, 0
      %v2709 = vsel %vm2676, %v2129, 0
      %v2710 = vsel %vm2677, %v2130, 0
      %v2711 = vsel %vm2678, %v2131, 0
      %v2712 = vsel %vm2679, %v2132, 0
      %v2713 = vsel %vm2680, %v2133, 0
      %v2714 = vsel %vm2681, %v2134, 0
      %v2715 = vsel %vm2682, %v2135, 0
      %v2716 = vsel %vm2683, %v2136, 0
      %v2717 = vsel %vm2684, %v2137, 0
      %v2718 = vsel %vm2685, %v2138, 0
      %v2719 = vsel %vm2686, %v2139, 0
      %v2720 = vsel %vm2687, %v2140, 0
      %s2721 = scalar_lea.vmem %s239, 128
      %v2722 = vld [vmem:[%s2721] sm:$0xf]
      %v2723 = vld [vmem:[%s2721 + $0x4] sm:$0xf]
      %v2724 = vld [vmem:[%s2721 + $0x8] sm:$0xf]
      %v2725 = vld [vmem:[%s2721 + $0xc] sm:$0xf]
      %v2726 = vld [vmem:[%s2721 + $0x10] sm:$0xf]
      %v2727 = vld [vmem:[%s2721 + $0x14] sm:$0xf]
      %v2728 = vld [vmem:[%s2721 + $0x18] sm:$0xf]
      %v2729 = vld [vmem:[%s2721 + $0x1c] sm:$0xf]
      %v2730 = vld [vmem:[%s2721 + $0x20] sm:$0xf]
      %v2731 = vld [vmem:[%s2721 + $0x24] sm:$0xf]
      %v2732 = vld [vmem:[%s2721 + $0x28] sm:$0xf]
      %v2733 = vld [vmem:[%s2721 + $0x2c] sm:$0xf]
      %v2734 = vld [vmem:[%s2721 + $0x30] sm:$0xf]
      %v2735 = vld [vmem:[%s2721 + $0x34] sm:$0xf]
      %v2736 = vld [vmem:[%s2721 + $0x38] sm:$0xf]
      %v2737 = vld [vmem:[%s2721 + $0x3c] sm:$0xf]
      %v2771 = vunpack.c.l.b16 %v2688
      %v2772 = vunpack.c.l.b16 %v2689
      %v2773 = vunpack.c.l.b16 %v2690
      %v2774 = vunpack.c.l.b16 %v2691
      %v2775 = vunpack.c.l.b16 %v2692
      %v2776 = vunpack.c.l.b16 %v2693
      %v2777 = vunpack.c.l.b16 %v2694
      %v2778 = vunpack.c.l.b16 %v2695
      %v2779 = vunpack.c.l.b16 %v2696
      %v2780 = vunpack.c.l.b16 %v2697
      %v2781 = vunpack.c.l.b16 %v2698
      %v2782 = vunpack.c.l.b16 %v2699
      %v2783 = vunpack.c.l.b16 %v2700
      %v2784 = vunpack.c.l.b16 %v2701
      %v2785 = vunpack.c.l.b16 %v2702
      %v2786 = vunpack.c.l.b16 %v2703
      %v2787 = vunpack.c.l.b16 %v2704
      %v2788 = vunpack.c.l.b16 %v2705
      %v2789 = vunpack.c.l.b16 %v2706
      %v2790 = vunpack.c.l.b16 %v2707
      %v2791 = vunpack.c.l.b16 %v2708
      %v2792 = vunpack.c.l.b16 %v2709
      %v2793 = vunpack.c.l.b16 %v2710
      %v2794 = vunpack.c.l.b16 %v2711
      %v2795 = vunpack.c.l.b16 %v2712
      %v2796 = vunpack.c.l.b16 %v2713
      %v2797 = vunpack.c.l.b16 %v2714
      %v2798 = vunpack.c.l.b16 %v2715
      %v2799 = vunpack.c.l.b16 %v2716
      %v2800 = vunpack.c.l.b16 %v2717
      %v2801 = vunpack.c.l.b16 %v2718
      %v2802 = vunpack.c.l.b16 %v2719
      %v2803 = vunpack.c.l.b16 %v2720
      %v2804 = vpack.c.b16 %v2772, %v2771
      %v2805 = vpack.c.b16 %v2774, %v2773
      %v2806 = vpack.c.b16 %v2776, %v2775
      %v2807 = vpack.c.b16 %v2778, %v2777
      %v2808 = vpack.c.b16 %v2780, %v2779
      %v2809 = vpack.c.b16 %v2782, %v2781
      %v2810 = vpack.c.b16 %v2784, %v2783
      %v2811 = vpack.c.b16 %v2786, %v2785
      %v2812 = vpack.c.b16 %v2788, %v2787
      %v2813 = vpack.c.b16 %v2790, %v2789
      %v2814 = vpack.c.b16 %v2792, %v2791
      %v2815 = vpack.c.b16 %v2794, %v2793
      %v2816 = vpack.c.b16 %v2796, %v2795
      %v2817 = vpack.c.b16 %v2798, %v2797
      %v2818 = vpack.c.b16 %v2800, %v2799
      %v2819 = vpack.c.b16 %v2802, %v2801
      %v2820 = vpack.c.b16 %v2803, %v2803
      %vm2821 = vsmask.f32 7424
      %v2823 = vshrl.u32 %v2804, 16
      %v2825 = vshll.u32 %v2804, 16
      %v2827 = vrot.slane %v2825, 1
      %v2828 = vor.u32 %v2823, %v2827
      %v2830 = vshll.u32 %v2805, 16
      %v2832 = vrot.slane %v2830, 1
      %v2833 = vsel %vm2821, %v2828, %v2832
      %v2834 = vshrl.u32 %v2805, 16
      %v2836 = vor.u32 %v2834, %v2832
      %v2838 = vshll.u32 %v2806, 16
      %v2840 = vrot.slane %v2838, 1
      %v2841 = vsel %vm2821, %v2836, %v2840
      %v2842 = vshrl.u32 %v2806, 16
      %v2844 = vor.u32 %v2842, %v2840
      %v2846 = vshll.u32 %v2807, 16
      %v2848 = vrot.slane %v2846, 1
      %v2849 = vsel %vm2821, %v2844, %v2848
      %v2850 = vshrl.u32 %v2807, 16
      %v2852 = vor.u32 %v2850, %v2848
      %v2854 = vshll.u32 %v2808, 16
      %v2856 = vrot.slane %v2854, 1
      %v2857 = vsel %vm2821, %v2852, %v2856
      %v2858 = vshrl.u32 %v2808, 16
      %v2860 = vor.u32 %v2858, %v2856
      %v2862 = vshll.u32 %v2809, 16
      %v2864 = vrot.slane %v2862, 1
      %v2865 = vsel %vm2821, %v2860, %v2864
      %v2866 = vshrl.u32 %v2809, 16
      %v2868 = vor.u32 %v2866, %v2864
      %v2870 = vshll.u32 %v2810, 16
      %v2872 = vrot.slane %v2870, 1
      %v2873 = vsel %vm2821, %v2868, %v2872
      %v2874 = vshrl.u32 %v2810, 16
      %v2876 = vor.u32 %v2874, %v2872
      %v2878 = vshll.u32 %v2811, 16
      %v2880 = vrot.slane %v2878, 1
      %v2881 = vsel %vm2821, %v2876, %v2880
      %v2882 = vshrl.u32 %v2811, 16
      %v2884 = vor.u32 %v2882, %v2880
      %v2886 = vshll.u32 %v2812, 16
      %v2888 = vrot.slane %v2886, 1
      %v2889 = vsel %vm2821, %v2884, %v2888
      %v2890 = vshrl.u32 %v2812, 16
      %v2892 = vor.u32 %v2890, %v2888
      %v2894 = vshll.u32 %v2813, 16
      %v2896 = vrot.slane %v2894, 1
      %v2897 = vsel %vm2821, %v2892, %v2896
      %v2898 = vshrl.u32 %v2813, 16
      %v2900 = vor.u32 %v2898, %v2896
      %v2902 = vshll.u32 %v2814, 16
      %v2904 = vrot.slane %v2902, 1
      %v2905 = vsel %vm2821, %v2900, %v2904
      %v2906 = vshrl.u32 %v2814, 16
      %v2908 = vor.u32 %v2906, %v2904
      %v2910 = vshll.u32 %v2815, 16
      %v2912 = vrot.slane %v2910, 1
      %v2913 = vsel %vm2821, %v2908, %v2912
      %v2914 = vshrl.u32 %v2815, 16
      %v2916 = vor.u32 %v2914, %v2912
      %v2918 = vshll.u32 %v2816, 16
      %v2920 = vrot.slane %v2918, 1
      %v2921 = vsel %vm2821, %v2916, %v2920
      %v2922 = vshrl.u32 %v2816, 16
      %v2924 = vor.u32 %v2922, %v2920
      %v2926 = vshll.u32 %v2817, 16
      %v2928 = vrot.slane %v2926, 1
      %v2929 = vsel %vm2821, %v2924, %v2928
      %v2930 = vshrl.u32 %v2817, 16
      %v2932 = vor.u32 %v2930, %v2928
      %v2934 = vshll.u32 %v2818, 16
      %v2936 = vrot.slane %v2934, 1
      %v2937 = vsel %vm2821, %v2932, %v2936
      %v2938 = vshrl.u32 %v2818, 16
      %v2940 = vor.u32 %v2938, %v2936
      %v2942 = vshll.u32 %v2819, 16
      %v2944 = vrot.slane %v2942, 1
      %v2945 = vsel %vm2821, %v2940, %v2944
      %v2946 = vshrl.u32 %v2819, 16
      %v2948 = vor.u32 %v2946, %v2944
      %v2950 = vshll.u32 %v2820, 16
      %v2952 = vrot.slane %v2950, 1
      %v2953 = vsel %vm2821, %v2948, %v2952
      %v2986 = vunpack.c.l.b16 %v2722
      %v2987 = vunpack.c.l.b16 %v2723
      %v2988 = vunpack.c.l.b16 %v2724
      %v2989 = vunpack.c.l.b16 %v2725
      %v2990 = vunpack.c.l.b16 %v2726
      %v2991 = vunpack.c.l.b16 %v2727
      %v2992 = vunpack.c.l.b16 %v2728
      %v2993 = vunpack.c.l.b16 %v2729
      %v2994 = vunpack.c.l.b16 %v2730
      %v2995 = vunpack.c.l.b16 %v2731
      %v2996 = vunpack.c.l.b16 %v2732
      %v2997 = vunpack.c.l.b16 %v2733
      %v2998 = vunpack.c.l.b16 %v2734
      %v2999 = vunpack.c.l.b16 %v2735
      %v3000 = vunpack.c.l.b16 %v2736
      %v3001 = vunpack.c.l.b16 %v2737
      %v3002 = vpack.c.b16 %v2987, %v2986
      %v3003 = vpack.c.b16 %v2989, %v2988
      %v3004 = vpack.c.b16 %v2991, %v2990
      %v3005 = vpack.c.b16 %v2993, %v2992
      %v3006 = vpack.c.b16 %v2995, %v2994
      %v3007 = vpack.c.b16 %v2997, %v2996
      %v3008 = vpack.c.b16 %v2999, %v2998
      %v3009 = vpack.c.b16 %v3001, %v3000
      %3018 = vmatprep.subr.bf16.mxu0 0
      %3019 = vmatpush1.bf16.msra.mxu0 %v3002
      %3020 = vmatprep.subr.bf16.mxu0 0
      %3021 = vmatpush1.bf16.msra.mxu0 %v3003
      %3022 = vmatprep.subr.bf16.mxu0 0
      %3023 = vmatpush1.bf16.msra.mxu0 %v3004
      %3024 = vmatprep.subr.bf16.mxu0 0
      %3025 = vmatpush1.bf16.msra.mxu0 %v3005
      %3026 = vmatprep.subr.bf16.mxu0 0
      %3027 = vmatpush1.bf16.msra.mxu0 %v3006
      %3028 = vmatprep.subr.bf16.mxu0 0
      %3029 = vmatpush1.bf16.msra.mxu0 %v3007
      %3030 = vmatprep.subr.bf16.mxu0 0
      %3031 = vmatpush1.bf16.msra.mxu0 %v3008
      %3032 = vmatprep.subr.bf16.mxu0 0
      %3033 = vmatpush1.bf16.msra.mxu0 %v3009
      %3034 = vmatprep.subr.bf16.mxu0 0
      %3035 = vmatpush1.bf16.msra.mxu0 0
      %3036 = vmatprep.subr.bf16.mxu0 0
      %3037 = vmatpush1.bf16.msra.mxu0 0
      %3038 = vmatprep.subr.bf16.mxu0 0
      %3039 = vmatpush1.bf16.msra.mxu0 0
      %3040 = vmatprep.subr.bf16.mxu0 0
      %3041 = vmatpush1.bf16.msra.mxu0 0
      %3042 = vmatprep.subr.bf16.mxu0 0
      %3043 = vmatpush1.bf16.msra.mxu0 0
      %3044 = vmatprep.subr.bf16.mxu0 0
      %3045 = vmatpush1.bf16.msra.mxu0 0
      %3046 = vmatprep.subr.bf16.mxu0 0
      %3047 = vmatpush1.bf16.msra.mxu0 0
      %3048 = vmatprep.subr.bf16.mxu0 0
      %3049 = vmatpush1.bf16.msra.mxu0 0
      %3050 = vmatprep.mubr.bf16.mxu0 0
      %3051 = vmatmul.mubr.bf16.gmra.mrb[0].mxu0 %v2833
      %v3052 = vpop.f32.mrb[0].mxu0
      %v3053 = vadd.f32 0.0, %v3052
      %v3054 = vpop.f32.mrb[0].mxu0
      %v3055 = vpop.f32.mrb[0].mxu0
      %v3056 = vadd.f32 0.0, %v3055
      %v3057 = vpop.f32.mrb[0].mxu0
      %3058 = vmatprep.mubr.bf16.mxu0 0
      %3059 = vmatmul.mubr.bf16.gmra.mrb[0].mxu0 %v2841
      %v3060 = vpop.f32.mrb[0].mxu0
      %v3061 = vadd.f32 0.0, %v3060
      %v3062 = vpop.f32.mrb[0].mxu0
      %v3063 = vpop.f32.mrb[0].mxu0
      %v3064 = vadd.f32 0.0, %v3063
      %v3065 = vpop.f32.mrb[0].mxu0
      %3066 = vmatprep.mubr.bf16.mxu0 0
      %3067 = vmatmul.mubr.bf16.gmra.mrb[0].mxu0 %v2849
      %v3068 = vpop.f32.mrb[0].mxu0
      %v3069 = vadd.f32 0.0, %v3068
      %v3070 = vpop.f32.mrb[0].mxu0
      %v3071 = vpop.f32.mrb[0].mxu0
      %v3072 = vadd.f32 0.0, %v3071
      %v3073 = vpop.f32.mrb[0].mxu0
      %3074 = vmatprep.mubr.bf16.mxu0 0
      %3075 = vmatmul.mubr.bf16.gmra.mrb[0].mxu0 %v2857
      %v3076 = vpop.f32.mrb[0].mxu0
      %v3077 = vadd.f32 0.0, %v3076
      %v3078 = vpop.f32.mrb[0].mxu0
      %v3079 = vpop.f32.mrb[0].mxu0
      %v3080 = vadd.f32 0.0, %v3079
      %v3081 = vpop.f32.mrb[0].mxu0
      %3082 = vmatprep.mubr.bf16.mxu0 0
      %3083 = vmatmul.mubr.bf16.gmra.mrb[0].mxu0 %v2865
      %v3084 = vpop.f32.mrb[0].mxu0
      %v3085 = vadd.f32 0.0, %v3084
      %v3086 = vpop.f32.mrb[0].mxu0
      %v3087 = vpop.f32.mrb[0].mxu0
      %v3088 = vadd.f32 0.0, %v3087
      %v3089 = vpop.f32.mrb[0].mxu0
      %3090 = vmatprep.mubr.bf16.mxu0 0
      %3091 = vmatmul.mubr.bf16.gmra.mrb[0].mxu0 %v2873
      %v3092 = vpop.f32.mrb[0].mxu0
      %v3093 = vadd.f32 0.0, %v3092
      %v3094 = vpop.f32.mrb[0].mxu0
      %v3095 = vpop.f32.mrb[0].mxu0
      %v3096 = vadd.f32 0.0, %v3095
      %v3097 = vpop.f32.mrb[0].mxu0
      %3098 = vmatprep.mubr.bf16.mxu0 0
      %3099 = vmatmul.mubr.bf16.gmra.mrb[0].mxu0 %v2881
      %v3100 = vpop.f32.mrb[0].mxu0
      %v3101 = vadd.f32 0.0, %v3100
      %v3102 = vpop.f32.mrb[0].mxu0
      %v3103 = vpop.f32.mrb[0].mxu0
      %v3104 = vadd.f32 0.0, %v3103
      %v3105 = vpop.f32.mrb[0].mxu0
      %3106 = vmatprep.mubr.bf16.mxu0 0
      %3107 = vmatmul.mubr.bf16.gmra.mrb[0].mxu0 %v2889
      %v3108 = vpop.f32.mrb[0].mxu0
      %v3109 = vadd.f32 0.0, %v3108
      %v3110 = vpop.f32.mrb[0].mxu0
      %v3111 = vpop.f32.mrb[0].mxu0
      %v3112 = vadd.f32 0.0, %v3111
      %v3113 = vpop.f32.mrb[0].mxu0
      %3114 = vmatprep.mubr.bf16.mxu0 0
      %3115 = vmatmul.mubr.bf16.gmra.mrb[0].mxu0 %v2897
      %v3116 = vpop.f32.mrb[0].mxu0
      %v3117 = vadd.f32 0.0, %v3116
      %v3118 = vpop.f32.mrb[0].mxu0
      %v3119 = vpop.f32.mrb[0].mxu0
      %v3120 = vadd.f32 0.0, %v3119
      %v3121 = vpop.f32.mrb[0].mxu0
      %3122 = vmatprep.mubr.bf16.mxu0 0
      %3123 = vmatmul.mubr.bf16.gmra.mrb[0].mxu0 %v2905
      %v3124 = vpop.f32.mrb[0].mxu0
      %v3125 = vadd.f32 0.0, %v3124
      %v3126 = vpop.f32.mrb[0].mxu0
      %v3127 = vpop.f32.mrb[0].mxu0
      %v3128 = vadd.f32 0.0, %v3127
      %v3129 = vpop.f32.mrb[0].mxu0
      %3130 = vmatprep.mubr.bf16.mxu0 0
      %3131 = vmatmul.mubr.bf16.gmra.mrb[0].mxu0 %v2913
      %v3132 = vpop.f32.mrb[0].mxu0
      %v3133 = vadd.f32 0.0, %v3132
      %v3134 = vpop.f32.mrb[0].mxu0
      %v3135 = vpop.f32.mrb[0].mxu0
      %v3136 = vadd.f32 0.0, %v3135
      %v3137 = vpop.f32.mrb[0].mxu0
      %3138 = vmatprep.mubr.bf16.mxu0 0
      %3139 = vmatmul.mubr.bf16.gmra.mrb[0].mxu0 %v2921
      %v3140 = vpop.f32.mrb[0].mxu0
      %v3141 = vadd.f32 0.0, %v3140
      %v3142 = vpop.f32.mrb[0].mxu0
      %v3143 = vpop.f32.mrb[0].mxu0
      %v3144 = vadd.f32 0.0, %v3143
      %v3145 = vpop.f32.mrb[0].mxu0
      %3146 = vmatprep.mubr.bf16.mxu0 0
      %3147 = vmatmul.mubr.bf16.gmra.mrb[0].mxu0 %v2929
      %v3148 = vpop.f32.mrb[0].mxu0
      %v3149 = vadd.f32 0.0, %v3148
      %v3150 = vpop.f32.mrb[0].mxu0
      %v3151 = vpop.f32.mrb[0].mxu0
      %v3152 = vadd.f32 0.0, %v3151
      %v3153 = vpop.f32.mrb[0].mxu0
      %3154 = vmatprep.mubr.bf16.mxu0 0
      %3155 = vmatmul.mubr.bf16.gmra.mrb[0].mxu0 %v2937
      %v3156 = vpop.f32.mrb[0].mxu0
      %v3157 = vadd.f32 0.0, %v3156
      %v3158 = vpop.f32.mrb[0].mxu0
      %v3159 = vpop.f32.mrb[0].mxu0
      %v3160 = vadd.f32 0.0, %v3159
      %v3161 = vpop.f32.mrb[0].mxu0
      %3162 = vmatprep.mubr.bf16.mxu0 0
      %3163 = vmatmul.mubr.bf16.gmra.mrb[0].mxu0 %v2945
      %v3164 = vpop.f32.mrb[0].mxu0
      %v3165 = vadd.f32 0.0, %v3164
      %v3166 = vpop.f32.mrb[0].mxu0
      %v3167 = vpop.f32.mrb[0].mxu0
      %v3168 = vadd.f32 0.0, %v3167
      %v3169 = vpop.f32.mrb[0].mxu0
      %3170 = vmatprep.mubr.bf16.mxu0 0
      %3171 = vmatmul.mubr.bf16.gmra.mrb[0].mxu0 %v2953
      %v3172 = vpop.f32.mrb[0].mxu0
      %v3173 = vadd.f32 0.0, %v3172
      %v3174 = vpop.f32.mrb[0].mxu0
      %v3175 = vpop.f32.mrb[0].mxu0
      %v3176 = vadd.f32 0.0, %v3175
      %v3177 = vpop.f32.mrb[0].mxu0
      %3178 = vdwg.mxu0
      %v3179 = vadd.f32 %v1982, %v3053
      %v3180 = vadd.f32 %v1985, %v3056
      %v3181 = vadd.f32 %v1990, %v3061
      %v3182 = vadd.f32 %v1993, %v3064
      %v3183 = vadd.f32 %v1998, %v3069
      %v3184 = vadd.f32 %v2001, %v3072
      %v3185 = vadd.f32 %v2006, %v3077
      %v3186 = vadd.f32 %v2009, %v3080
      %v3187 = vadd.f32 %v2014, %v3085
      %v3188 = vadd.f32 %v2017, %v3088
      %v3189 = vadd.f32 %v2022, %v3093
      %v3190 = vadd.f32 %v2025, %v3096
      %v3191 = vadd.f32 %v2030, %v3101
      %v3192 = vadd.f32 %v2033, %v3104
      %v3193 = vadd.f32 %v2038, %v3109
      %v3194 = vadd.f32 %v2041, %v3112
      %v3195 = vadd.f32 %v2046, %v3117
      %v3196 = vadd.f32 %v2049, %v3120
      %v3197 = vadd.f32 %v2054, %v3125
      %v3198 = vadd.f32 %v2057, %v3128
      %v3199 = vadd.f32 %v2062, %v3133
      %v3200 = vadd.f32 %v2065, %v3136
      %v3201 = vadd.f32 %v2070, %v3141
      %v3202 = vadd.f32 %v2073, %v3144
      %v3203 = vadd.f32 %v2078, %v3149
      %v3204 = vadd.f32 %v2081, %v3152
      %v3205 = vadd.f32 %v2086, %v3157
      %v3206 = vadd.f32 %v2089, %v3160
      %v3207 = vadd.f32 %v2094, %v3165
      %v3208 = vadd.f32 %v2097, %v3168
      %v3209 = vadd.f32 %v2102, %v3173
      %v3210 = vadd.f32 %v2105, %v3176
      %v3211 = vld [vmem:[#allocation2 + $0xc] sm:$0x8]
      %v3212 = vld [vmem:[#allocation2 + $0x10] sm:$0xf]
      %v3213 = vld [vmem:[#allocation2 + $0x14] sm:$0xf]
      %v3214 = vld [vmem:[#allocation2 + $0x18] sm:$0xf]
      %v3215 = vld [vmem:[#allocation2 + $0x1c] sm:$0xf]
      %v3216 = vld [vmem:[#allocation2 + $0x20] sm:$0xf]
      %v3217 = vld [vmem:[#allocation2 + $0x24] sm:$0xf]
      %v3218 = vld [vmem:[#allocation2 + $0x28] sm:$0xf]
      %v3219 = vld [vmem:[#allocation2 + $0x2c] sm:$0xf]
      %v3220 = vld [vmem:[#allocation2 + $0x30] sm:$0xf]
      %v3221 = vld [vmem:[#allocation2 + $0x34] sm:$0xf]
      %v3222 = vld [vmem:[#allocation2 + $0x38] sm:$0xf]
      %v3223 = vld [vmem:[#allocation2 + $0x3c] sm:$0xf]
      %v3224 = vld [vmem:[#allocation2 + $0x40] sm:$0xf]
      %v3225 = vld [vmem:[#allocation2 + $0x44] sm:$0xf]
      %v3226 = vld [vmem:[#allocation2 + $0x48] sm:$0xf]
      %v3227 = vld [vmem:[#allocation2 + $0x4c] sm:$0xf]
      %v3228 = vld [vmem:[#allocation2 + $0x50] sm:$0xf]
      %v3229 = vld [vmem:[#allocation2 + $0x54] sm:$0xf]
      %v3230 = vld [vmem:[#allocation2 + $0x58] sm:$0xf]
      %v3231 = vld [vmem:[#allocation2 + $0x5c] sm:$0xf]
      %v3232 = vld [vmem:[#allocation2 + $0x60] sm:$0xf]
      %v3233 = vld [vmem:[#allocation2 + $0x64] sm:$0xf]
      %v3234 = vld [vmem:[#allocation2 + $0x68] sm:$0xf]
      %v3235 = vld [vmem:[#allocation2 + $0x6c] sm:$0xf]
      %v3236 = vld [vmem:[#allocation2 + $0x70] sm:$0xf]
      %v3237 = vld [vmem:[#allocation2 + $0x74] sm:$0xf]
      %v3238 = vld [vmem:[#allocation2 + $0x78] sm:$0xf]
      %v3239 = vld [vmem:[#allocation2 + $0x7c] sm:$0xf]
      %v3240 = vld [vmem:[#allocation2 + $0x80] sm:$0xf]
      %v3241 = vld [vmem:[#allocation2 + $0x84] sm:$0xf]
      %v3242 = vld [vmem:[#allocation2 + $0x88] sm:$0xf]
      %v3243 = vld [vmem:[#allocation2 + $0x8c] sm:$0xf]
      %v3244 = vsel %vm1243, %v3211, 0
      %v3245 = vsel %vm1244, %v3212, 0
      %v3246 = vsel %vm1245, %v3213, 0
      %v3247 = vsel %vm1246, %v3214, 0
      %v3248 = vsel %vm1247, %v3215, 0
      %v3249 = vsel %vm1248, %v3216, 0
      %v3250 = vsel %vm1249, %v3217, 0
      %v3251 = vsel %vm1250, %v3218, 0
      %v3252 = vsel %vm1251, %v3219, 0
      %v3253 = vsel %vm1252, %v3220, 0
      %v3254 = vsel %vm1253, %v3221, 0
      %v3255 = vsel %vm1254, %v3222, 0
      %v3256 = vsel %vm1255, %v3223, 0
      %v3257 = vsel %vm1256, %v3224, 0
      %v3258 = vsel %vm1257, %v3225, 0
      %v3259 = vsel %vm1258, %v3226, 0
      %v3260 = vsel %vm1259, %v3227, 0
      %v3261 = vsel %vm1260, %v3228, 0
      %v3262 = vsel %vm1261, %v3229, 0
      %v3263 = vsel %vm1262, %v3230, 0
      %v3264 = vsel %vm1263, %v3231, 0
      %v3265 = vsel %vm1264, %v3232, 0
      %v3266 = vsel %vm1265, %v3233, 0
      %v3267 = vsel %vm1266, %v3234, 0
      %v3268 = vsel %vm1267, %v3235, 0
      %v3269 = vsel %vm1268, %v3236, 0
      %v3270 = vsel %vm1269, %v3237, 0
      %v3271 = vsel %vm1270, %v3238, 0
      %v3272 = vsel %vm1271, %v3239, 0
      %v3273 = vsel %vm1272, %v3240, 0
      %v3274 = vsel %vm1273, %v3241, 0
      %v3275 = vsel %vm1274, %v3242, 0
      %v3276 = vsel %vm1275, %v3243, 0
      %s3277 = scalar_lea.vmem %s239, 192
      %v3278 = vld [vmem:[%s3277] sm:$0xf]
      %v3279 = vld [vmem:[%s3277 + $0x4] sm:$0xf]
      %v3280 = vld [vmem:[%s3277 + $0x8] sm:$0xf]
      %v3281 = vld [vmem:[%s3277 + $0xc] sm:$0xf]
      %v3282 = vld [vmem:[%s3277 + $0x10] sm:$0xf]
      %v3283 = vld [vmem:[%s3277 + $0x14] sm:$0xf]
      %v3284 = vld [vmem:[%s3277 + $0x18] sm:$0xf]
      %v3285 = vld [vmem:[%s3277 + $0x1c] sm:$0xf]
      %v3286 = vld [vmem:[%s3277 + $0x20] sm:$0xf]
      %v3287 = vld [vmem:[%s3277 + $0x24] sm:$0xf]
      %v3288 = vld [vmem:[%s3277 + $0x28] sm:$0xf]
      %v3289 = vld [vmem:[%s3277 + $0x2c] sm:$0xf]
      %v3290 = vld [vmem:[%s3277 + $0x30] sm:$0xf]
      %v3291 = vld [vmem:[%s3277 + $0x34] sm:$0xf]
      %v3292 = vld [vmem:[%s3277 + $0x38] sm:$0xf]
      %v3293 = vld [vmem:[%s3277 + $0x3c] sm:$0xf]
      %v3327 = vunpack.c.l.b16 %v3244
      %v3328 = vunpack.c.l.b16 %v3245
      %v3329 = vunpack.c.l.b16 %v3246
      %v3330 = vunpack.c.l.b16 %v3247
      %v3331 = vunpack.c.l.b16 %v3248
      %v3332 = vunpack.c.l.b16 %v3249
      %v3333 = vunpack.c.l.b16 %v3250
      %v3334 = vunpack.c.l.b16 %v3251
      %v3335 = vunpack.c.l.b16 %v3252
      %v3336 = vunpack.c.l.b16 %v3253
      %v3337 = vunpack.c.l.b16 %v3254
      %v3338 = vunpack.c.l.b16 %v3255
      %v3339 = vunpack.c.l.b16 %v3256
      %v3340 = vunpack.c.l.b16 %v3257
      %v3341 = vunpack.c.l.b16 %v3258
      %v3342 = vunpack.c.l.b16 %v3259
      %v3343 = vunpack.c.l.b16 %v3260
      %v3344 = vunpack.c.l.b16 %v3261
      %v3345 = vunpack.c.l.b16 %v3262
      %v3346 = vunpack.c.l.b16 %v3263
      %v3347 = vunpack.c.l.b16 %v3264
      %v3348 = vunpack.c.l.b16 %v3265
      %v3349 = vunpack.c.l.b16 %v3266
      %v3350 = vunpack.c.l.b16 %v3267
      %v3351 = vunpack.c.l.b16 %v3268
      %v3352 = vunpack.c.l.b16 %v3269
      %v3353 = vunpack.c.l.b16 %v3270
      %v3354 = vunpack.c.l.b16 %v3271
      %v3355 = vunpack.c.l.b16 %v3272
      %v3356 = vunpack.c.l.b16 %v3273
      %v3357 = vunpack.c.l.b16 %v3274
      %v3358 = vunpack.c.l.b16 %v3275
      %v3359 = vunpack.c.l.b16 %v3276
      %v3360 = vpack.c.b16 %v3328, %v3327
      %v3361 = vpack.c.b16 %v3330, %v3329
      %v3362 = vpack.c.b16 %v3332, %v3331
      %v3363 = vpack.c.b16 %v3334, %v3333
      %v3364 = vpack.c.b16 %v3336, %v3335
      %v3365 = vpack.c.b16 %v3338, %v3337
      %v3366 = vpack.c.b16 %v3340, %v3339
      %v3367 = vpack.c.b16 %v3342, %v3341
      %v3368 = vpack.c.b16 %v3344, %v3343
      %v3369 = vpack.c.b16 %v3346, %v3345
      %v3370 = vpack.c.b16 %v3348, %v3347
      %v3371 = vpack.c.b16 %v3350, %v3349
      %v3372 = vpack.c.b16 %v3352, %v3351
      %v3373 = vpack.c.b16 %v3354, %v3353
      %v3374 = vpack.c.b16 %v3356, %v3355
      %v3375 = vpack.c.b16 %v3358, %v3357
      %v3376 = vpack.c.b16 %v3359, %v3359
      %v3378 = vshrl.u32 %v3360, 16
      %v3380 = vrot.slane %v3378, 3
      %v3381 = vshll.u32 %v3360, 16
      %v3383 = vrot.slane %v3381, 4
      %v3384 = vor.u32 %v3380, %v3383
      %v3386 = vshrl.u32 %v3361, 16
      %v3388 = vrot.slane %v3386, 3
      %v3389 = vshll.u32 %v3361, 16
      %v3391 = vrot.slane %v3389, 4
      %v3392 = vor.u32 %v3388, %v3391
      %v3393 = vsel %vm1730, %v3384, %v3392
      %v3395 = vshrl.u32 %v3362, 16
      %v3397 = vrot.slane %v3395, 3
      %v3398 = vshll.u32 %v3362, 16
      %v3400 = vrot.slane %v3398, 4
      %v3401 = vor.u32 %v3397, %v3400
      %v3402 = vsel %vm1730, %v3392, %v3401
      %v3404 = vshrl.u32 %v3363, 16
      %v3406 = vrot.slane %v3404, 3
      %v3407 = vshll.u32 %v3363, 16
      %v3409 = vrot.slane %v3407, 4
      %v3410 = vor.u32 %v3406, %v3409
      %v3411 = vsel %vm1730, %v3401, %v3410
      %v3413 = vshrl.u32 %v3364, 16
      %v3415 = vrot.slane %v3413, 3
      %v3416 = vshll.u32 %v3364, 16
      %v3418 = vrot.slane %v3416, 4
      %v3419 = vor.u32 %v3415, %v3418
      %v3420 = vsel %vm1730, %v3410, %v3419
      %v3422 = vshrl.u32 %v3365, 16
      %v3424 = vrot.slane %v3422, 3
      %v3425 = vshll.u32 %v3365, 16
      %v3427 = vrot.slane %v3425, 4
      %v3428 = vor.u32 %v3424, %v3427
      %v3429 = vsel %vm1730, %v3419, %v3428
      %v3431 = vshrl.u32 %v3366, 16
      %v3433 = vrot.slane %v3431, 3
      %v3434 = vshll.u32 %v3366, 16
      %v3436 = vrot.slane %v3434, 4
      %v3437 = vor.u32 %v3433, %v3436
      %v3438 = vsel %vm1730, %v3428, %v3437
      %v3440 = vshrl.u32 %v3367, 16
      %v3442 = vrot.slane %v3440, 3
      %v3443 = vshll.u32 %v3367, 16
      %v3445 = vrot.slane %v3443, 4
      %v3446 = vor.u32 %v3442, %v3445
      %v3447 = vsel %vm1730, %v3437, %v3446
      %v3449 = vshrl.u32 %v3368, 16
      %v3451 = vrot.slane %v3449, 3
      %v3452 = vshll.u32 %v3368, 16
      %v3454 = vrot.slane %v3452, 4
      %v3455 = vor.u32 %v3451, %v3454
      %v3456 = vsel %vm1730, %v3446, %v3455
      %v3458 = vshrl.u32 %v3369, 16
      %v3460 = vrot.slane %v3458, 3
      %v3461 = vshll.u32 %v3369, 16
      %v3463 = vrot.slane %v3461, 4
      %v3464 = vor.u32 %v3460, %v3463
      %v3465 = vsel %vm1730, %v3455, %v3464
      %v3467 = vshrl.u32 %v3370, 16
      %v3469 = vrot.slane %v3467, 3
      %v3470 = vshll.u32 %v3370, 16
      %v3472 = vrot.slane %v3470, 4
      %v3473 = vor.u32 %v3469, %v3472
      %v3474 = vsel %vm1730, %v3464, %v3473
      %v3476 = vshrl.u32 %v3371, 16
      %v3478 = vrot.slane %v3476, 3
      %v3479 = vshll.u32 %v3371, 16
      %v3481 = vrot.slane %v3479, 4
      %v3482 = vor.u32 %v3478, %v3481
      %v3483 = vsel %vm1730, %v3473, %v3482
      %v3485 = vshrl.u32 %v3372, 16
      %v3487 = vrot.slane %v3485, 3
      %v3488 = vshll.u32 %v3372, 16
      %v3490 = vrot.slane %v3488, 4
      %v3491 = vor.u32 %v3487, %v3490
      %v3492 = vsel %vm1730, %v3482, %v3491
      %v3494 = vshrl.u32 %v3373, 16
      %v3496 = vrot.slane %v3494, 3
      %v3497 = vshll.u32 %v3373, 16
      %v3499 = vrot.slane %v3497, 4
      %v3500 = vor.u32 %v3496, %v3499
      %v3501 = vsel %vm1730, %v3491, %v3500
      %v3503 = vshrl.u32 %v3374, 16
      %v3505 = vrot.slane %v3503, 3
      %v3506 = vshll.u32 %v3374, 16
      %v3508 = vrot.slane %v3506, 4
      %v3509 = vor.u32 %v3505, %v3508
      %v3510 = vsel %vm1730, %v3500, %v3509
      %v3512 = vshrl.u32 %v3375, 16
      %v3514 = vrot.slane %v3512, 3
      %v3515 = vshll.u32 %v3375, 16
      %v3517 = vrot.slane %v3515, 4
      %v3518 = vor.u32 %v3514, %v3517
      %v3519 = vsel %vm1730, %v3509, %v3518
      %v3521 = vshrl.u32 %v3376, 16
      %v3523 = vrot.slane %v3521, 3
      %v3524 = vshll.u32 %v3376, 16
      %v3526 = vrot.slane %v3524, 4
      %v3527 = vor.u32 %v3523, %v3526
      %v3528 = vsel %vm1730, %v3518, %v3527
      %v3561 = vunpack.c.l.b16 %v3278
      %v3562 = vunpack.c.l.b16 %v3279
      %v3563 = vunpack.c.l.b16 %v3280
      %v3564 = vunpack.c.l.b16 %v3281
      %v3565 = vunpack.c.l.b16 %v3282
      %v3566 = vunpack.c.l.b16 %v3283
      %v3567 = vunpack.c.l.b16 %v3284
      %v3568 = vunpack.c.l.b16 %v3285
      %v3569 = vunpack.c.l.b16 %v3286
      %v3570 = vunpack.c.l.b16 %v3287
      %v3571 = vunpack.c.l.b16 %v3288
      %v3572 = vunpack.c.l.b16 %v3289
      %v3573 = vunpack.c.l.b16 %v3290
      %v3574 = vunpack.c.l.b16 %v3291
      %v3575 = vunpack.c.l.b16 %v3292
      %v3576 = vunpack.c.l.b16 %v3293
      %v3577 = vpack.c.b16 %v3562, %v3561
      %v3578 = vpack.c.b16 %v3564, %v3563
      %v3579 = vpack.c.b16 %v3566, %v3565
      %v3580 = vpack.c.b16 %v3568, %v3567
      %v3581 = vpack.c.b16 %v3570, %v3569
      %v3582 = vpack.c.b16 %v3572, %v3571
      %v3583 = vpack.c.b16 %v3574, %v3573
      %v3584 = vpack.c.b16 %v3576, %v3575
      %3593 = vmatprep.subr.bf16.mxu0 0
      %3594 = vmatpush1.bf16.msra.mxu0 %v3577
      %3595 = vmatprep.subr.bf16.mxu0 0
      %3596 = vmatpush1.bf16.msra.mxu0 %v3578
      %3597 = vmatprep.subr.bf16.mxu0 0
      %3598 = vmatpush1.bf16.msra.mxu0 %v3579
      %3599 = vmatprep.subr.bf16.mxu0 0
      %3600 = vmatpush1.bf16.msra.mxu0 %v3580
      %3601 = vmatprep.subr.bf16.mxu0 0
      %3602 = vmatpush1.bf16.msra.mxu0 %v3581
      %3603 = vmatprep.subr.bf16.mxu0 0
      %3604 = vmatpush1.bf16.msra.mxu0 %v3582
      %3605 = vmatprep.subr.bf16.mxu0 0
      %3606 = vmatpush1.bf16.msra.mxu0 %v3583
      %3607 = vmatprep.subr.bf16.mxu0 0
      %3608 = vmatpush1.bf16.msra.mxu0 %v3584
      %3609 = vmatprep.subr.bf16.mxu0 0
      %3610 = vmatpush1.bf16.msra.mxu0 0
      %3611 = vmatprep.subr.bf16.mxu0 0
      %3612 = vmatpush1.bf16.msra.mxu0 0
      %3613 = vmatprep.subr.bf16.mxu0 0
      %3614 = vmatpush1.bf16.msra.mxu0 0
      %3615 = vmatprep.subr.bf16.mxu0 0
      %3616 = vmatpush1.bf16.msra.mxu0 0
      %3617 = vmatprep.subr.bf16.mxu0 0
      %3618 = vmatpush1.bf16.msra.mxu0 0
      %3619 = vmatprep.subr.bf16.mxu0 0
      %3620 = vmatpush1.bf16.msra.mxu0 0
      %3621 = vmatprep.subr.bf16.mxu0 0
      %3622 = vmatpush1.bf16.msra.mxu0 0
      %3623 = vmatprep.subr.bf16.mxu0 0
      %3624 = vmatpush1.bf16.msra.mxu0 0
      %3625 = vmatprep.mubr.bf16.mxu0 0
      %3626 = vmatmul.mubr.bf16.gmra.mrb[0].mxu0 %v3393
      %v3627 = vpop.f32.mrb[0].mxu0
      %v3628 = vadd.f32 0.0, %v3627
      %v3629 = vpop.f32.mrb[0].mxu0
      %v3630 = vpop.f32.mrb[0].mxu0
      %v3631 = vadd.f32 0.0, %v3630
      %v3632 = vpop.f32.mrb[0].mxu0
      %3633 = vmatprep.mubr.bf16.mxu0 0
      %3634 = vmatmul.mubr.bf16.gmra.mrb[0].mxu0 %v3402
      %v3635 = vpop.f32.mrb[0].mxu0
      %v3636 = vadd.f32 0.0, %v3635
      %v3637 = vpop.f32.mrb[0].mxu0
      %v3638 = vpop.f32.mrb[0].mxu0
      %v3639 = vadd.f32 0.0, %v3638
      %v3640 = vpop.f32.mrb[0].mxu0
      %3641 = vmatprep.mubr.bf16.mxu0 0
      %3642 = vmatmul.mubr.bf16.gmra.mrb[0].mxu0 %v3411
      %v3643 = vpop.f32.mrb[0].mxu0
      %v3644 = vadd.f32 0.0, %v3643
      %v3645 = vpop.f32.mrb[0].mxu0
      %v3646 = vpop.f32.mrb[0].mxu0
      %v3647 = vadd.f32 0.0, %v3646
      %v3648 = vpop.f32.mrb[0].mxu0
      %3649 = vmatprep.mubr.bf16.mxu0 0
      %3650 = vmatmul.mubr.bf16.gmra.mrb[0].mxu0 %v3420
      %v3651 = vpop.f32.mrb[0].mxu0
      %v3652 = vadd.f32 0.0, %v3651
      %v3653 = vpop.f32.mrb[0].mxu0
      %v3654 = vpop.f32.mrb[0].mxu0
      %v3655 = vadd.f32 0.0, %v3654
      %v3656 = vpop.f32.mrb[0].mxu0
      %3657 = vmatprep.mubr.bf16.mxu0 0
      %3658 = vmatmul.mubr.bf16.gmra.mrb[0].mxu0 %v3429
      %v3659 = vpop.f32.mrb[0].mxu0
      %v3660 = vadd.f32 0.0, %v3659
      %v3661 = vpop.f32.mrb[0].mxu0
      %v3662 = vpop.f32.mrb[0].mxu0
      %v3663 = vadd.f32 0.0, %v3662
      %v3664 = vpop.f32.mrb[0].mxu0
      %3665 = vmatprep.mubr.bf16.mxu0 0
      %3666 = vmatmul.mubr.bf16.gmra.mrb[0].mxu0 %v3438
      %v3667 = vpop.f32.mrb[0].mxu0
      %v3668 = vadd.f32 0.0, %v3667
      %v3669 = vpop.f32.mrb[0].mxu0
      %v3670 = vpop.f32.mrb[0].mxu0
      %v3671 = vadd.f32 0.0, %v3670
      %v3672 = vpop.f32.mrb[0].mxu0
      %3673 = vmatprep.mubr.bf16.mxu0 0
      %3674 = vmatmul.mubr.bf16.gmra.mrb[0].mxu0 %v3447
      %v3675 = vpop.f32.mrb[0].mxu0
      %v3676 = vadd.f32 0.0, %v3675
      %v3677 = vpop.f32.mrb[0].mxu0
      %v3678 = vpop.f32.mrb[0].mxu0
      %v3679 = vadd.f32 0.0, %v3678
      %v3680 = vpop.f32.mrb[0].mxu0
      %3681 = vmatprep.mubr.bf16.mxu0 0
      %3682 = vmatmul.mubr.bf16.gmra.mrb[0].mxu0 %v3456
      %v3683 = vpop.f32.mrb[0].mxu0
      %v3684 = vadd.f32 0.0, %v3683
      %v3685 = vpop.f32.mrb[0].mxu0
      %v3686 = vpop.f32.mrb[0].mxu0
      %v3687 = vadd.f32 0.0, %v3686
      %v3688 = vpop.f32.mrb[0].mxu0
      %3689 = vmatprep.mubr.bf16.mxu0 0
      %3690 = vmatmul.mubr.bf16.gmra.mrb[0].mxu0 %v3465
      %v3691 = vpop.f32.mrb[0].mxu0
      %v3692 = vadd.f32 0.0, %v3691
      %v3693 = vpop.f32.mrb[0].mxu0
      %v3694 = vpop.f32.mrb[0].mxu0
      %v3695 = vadd.f32 0.0, %v3694
      %v3696 = vpop.f32.mrb[0].mxu0
      %3697 = vmatprep.mubr.bf16.mxu0 0
      %3698 = vmatmul.mubr.bf16.gmra.mrb[0].mxu0 %v3474
      %v3699 = vpop.f32.mrb[0].mxu0
      %v3700 = vadd.f32 0.0, %v3699
      %v3701 = vpop.f32.mrb[0].mxu0
      %v3702 = vpop.f32.mrb[0].mxu0
      %v3703 = vadd.f32 0.0, %v3702
      %v3704 = vpop.f32.mrb[0].mxu0
      %3705 = vmatprep.mubr.bf16.mxu0 0
      %3706 = vmatmul.mubr.bf16.gmra.mrb[0].mxu0 %v3483
      %v3707 = vpop.f32.mrb[0].mxu0
      %v3708 = vadd.f32 0.0, %v3707
      %v3709 = vpop.f32.mrb[0].mxu0
      %v3710 = vpop.f32.mrb[0].mxu0
      %v3711 = vadd.f32 0.0, %v3710
      %v3712 = vpop.f32.mrb[0].mxu0
      %3713 = vmatprep.mubr.bf16.mxu0 0
      %3714 = vmatmul.mubr.bf16.gmra.mrb[0].mxu0 %v3492
      %v3715 = vpop.f32.mrb[0].mxu0
      %v3716 = vadd.f32 0.0, %v3715
      %v3717 = vpop.f32.mrb[0].mxu0
      %v3718 = vpop.f32.mrb[0].mxu0
      %v3719 = vadd.f32 0.0, %v3718
      %v3720 = vpop.f32.mrb[0].mxu0
      %3721 = vmatprep.mubr.bf16.mxu0 0
      %3722 = vmatmul.mubr.bf16.gmra.mrb[0].mxu0 %v3501
      %v3723 = vpop.f32.mrb[0].mxu0
      %v3724 = vadd.f32 0.0, %v3723
      %v3725 = vpop.f32.mrb[0].mxu0
      %v3726 = vpop.f32.mrb[0].mxu0
      %v3727 = vadd.f32 0.0, %v3726
      %v3728 = vpop.f32.mrb[0].mxu0
      %3729 = vmatprep.mubr.bf16.mxu0 0
      %3730 = vmatmul.mubr.bf16.gmra.mrb[0].mxu0 %v3510
      %v3731 = vpop.f32.mrb[0].mxu0
      %v3732 = vadd.f32 0.0, %v3731
      %v3733 = vpop.f32.mrb[0].mxu0
      %v3734 = vpop.f32.mrb[0].mxu0
      %v3735 = vadd.f32 0.0, %v3734
      %v3736 = vpop.f32.mrb[0].mxu0
      %3737 = vmatprep.mubr.bf16.mxu0 0
      %3738 = vmatmul.mubr.bf16.gmra.mrb[0].mxu0 %v3519
      %v3739 = vpop.f32.mrb[0].mxu0
      %v3740 = vadd.f32 0.0, %v3739
      %v3741 = vpop.f32.mrb[0].mxu0
      %v3742 = vpop.f32.mrb[0].mxu0
      %v3743 = vadd.f32 0.0, %v3742
      %v3744 = vpop.f32.mrb[0].mxu0
      %3745 = vmatprep.mubr.bf16.mxu0 0
      %3746 = vmatmul.mubr.bf16.gmra.mrb[0].mxu0 %v3528
      %v3747 = vpop.f32.mrb[0].mxu0
      %v3748 = vadd.f32 0.0, %v3747
      %v3749 = vpop.f32.mrb[0].mxu0
      %v3750 = vpop.f32.mrb[0].mxu0
      %v3751 = vadd.f32 0.0, %v3750
      %v3752 = vpop.f32.mrb[0].mxu0
      %3753 = vdwg.mxu0
      %v3754 = vadd.f32 %v3179, %v3628
      %v3755 = vadd.f32 %v3180, %v3631
      %v3756 = vadd.f32 %v3181, %v3636
      %v3757 = vadd.f32 %v3182, %v3639
      %v3758 = vadd.f32 %v3183, %v3644
      %v3759 = vadd.f32 %v3184, %v3647
      %v3760 = vadd.f32 %v3185, %v3652
      %v3761 = vadd.f32 %v3186, %v3655
      %v3762 = vadd.f32 %v3187, %v3660
      %v3763 = vadd.f32 %v3188, %v3663
      %v3764 = vadd.f32 %v3189, %v3668
      %v3765 = vadd.f32 %v3190, %v3671
      %v3766 = vadd.f32 %v3191, %v3676
      %v3767 = vadd.f32 %v3192, %v3679
      %v3768 = vadd.f32 %v3193, %v3684
      %v3769 = vadd.f32 %v3194, %v3687
      %v3770 = vadd.f32 %v3195, %v3692
      %v3771 = vadd.f32 %v3196, %v3695
      %v3772 = vadd.f32 %v3197, %v3700
      %v3773 = vadd.f32 %v3198, %v3703
      %v3774 = vadd.f32 %v3199, %v3708
      %v3775 = vadd.f32 %v3200, %v3711
      %v3776 = vadd.f32 %v3201, %v3716
      %v3777 = vadd.f32 %v3202, %v3719
      %v3778 = vadd.f32 %v3203, %v3724
      %v3779 = vadd.f32 %v3204, %v3727
      %v3780 = vadd.f32 %v3205, %v3732
      %v3781 = vadd.f32 %v3206, %v3735
      %v3782 = vadd.f32 %v3207, %v3740
      %v3783 = vadd.f32 %v3208, %v3743
      %v3784 = vadd.f32 %v3209, %v3748
      %v3785 = vadd.f32 %v3210, %v3751
      %s3786 = scalar_lea.vmem %s239, 256
      %v3787 = vld [vmem:[%s3786] sm:$0xf]
      %v3788 = vld [vmem:[%s3786 + $0x4] sm:$0xf]
      %v3789 = vld [vmem:[%s3786 + $0x8] sm:$0xf]
      %v3790 = vld [vmem:[%s3786 + $0xc] sm:$0xf]
      %v3791 = vld [vmem:[%s3786 + $0x10] sm:$0xf]
      %v3792 = vld [vmem:[%s3786 + $0x14] sm:$0xf]
      %v3793 = vld [vmem:[%s3786 + $0x18] sm:$0xf]
      %v3794 = vld [vmem:[%s3786 + $0x1c] sm:$0xf]
      %v3795 = vld [vmem:[%s3786 + $0x20] sm:$0xf]
      %v3796 = vld [vmem:[%s3786 + $0x24] sm:$0xf]
      %v3797 = vld [vmem:[%s3786 + $0x28] sm:$0xf]
      %v3798 = vld [vmem:[%s3786 + $0x2c] sm:$0xf]
      %v3799 = vld [vmem:[%s3786 + $0x30] sm:$0xf]
      %v3800 = vld [vmem:[%s3786 + $0x34] sm:$0xf]
      %v3801 = vld [vmem:[%s3786 + $0x38] sm:$0xf]
      %v3802 = vld [vmem:[%s3786 + $0x3c] sm:$0xf]
      %v3835 = vunpack.c.l.b16 %v3212
      %v3836 = vunpack.c.l.b16 %v3213
      %v3837 = vunpack.c.l.b16 %v3214
      %v3838 = vunpack.c.l.b16 %v3215
      %v3839 = vunpack.c.l.b16 %v3216
      %v3840 = vunpack.c.l.b16 %v3217
      %v3841 = vunpack.c.l.b16 %v3218
      %v3842 = vunpack.c.l.b16 %v3219
      %v3843 = vunpack.c.l.b16 %v3220
      %v3844 = vunpack.c.l.b16 %v3221
      %v3845 = vunpack.c.l.b16 %v3222
      %v3846 = vunpack.c.l.b16 %v3223
      %v3847 = vunpack.c.l.b16 %v3224
      %v3848 = vunpack.c.l.b16 %v3225
      %v3849 = vunpack.c.l.b16 %v3226
      %v3850 = vunpack.c.l.b16 %v3227
      %v3851 = vunpack.c.l.b16 %v3228
      %v3852 = vunpack.c.l.b16 %v3229
      %v3853 = vunpack.c.l.b16 %v3230
      %v3854 = vunpack.c.l.b16 %v3231
      %v3855 = vunpack.c.l.b16 %v3232
      %v3856 = vunpack.c.l.b16 %v3233
      %v3857 = vunpack.c.l.b16 %v3234
      %v3858 = vunpack.c.l.b16 %v3235
      %v3859 = vunpack.c.l.b16 %v3236
      %v3860 = vunpack.c.l.b16 %v3237
      %v3861 = vunpack.c.l.b16 %v3238
      %v3862 = vunpack.c.l.b16 %v3239
      %v3863 = vunpack.c.l.b16 %v3240
      %v3864 = vunpack.c.l.b16 %v3241
      %v3865 = vunpack.c.l.b16 %v3242
      %v3866 = vunpack.c.l.b16 %v3243
      %v3867 = vpack.c.b16 %v3836, %v3835
      %v3868 = vpack.c.b16 %v3838, %v3837
      %v3869 = vpack.c.b16 %v3840, %v3839
      %v3870 = vpack.c.b16 %v3842, %v3841
      %v3871 = vpack.c.b16 %v3844, %v3843
      %v3872 = vpack.c.b16 %v3846, %v3845
      %v3873 = vpack.c.b16 %v3848, %v3847
      %v3874 = vpack.c.b16 %v3850, %v3849
      %v3875 = vpack.c.b16 %v3852, %v3851
      %v3876 = vpack.c.b16 %v3854, %v3853
      %v3877 = vpack.c.b16 %v3856, %v3855
      %v3878 = vpack.c.b16 %v3858, %v3857
      %v3879 = vpack.c.b16 %v3860, %v3859
      %v3880 = vpack.c.b16 %v3862, %v3861
      %v3881 = vpack.c.b16 %v3864, %v3863
      %v3882 = vpack.c.b16 %v3866, %v3865
      %v3915 = vunpack.c.l.b16 %v3787
      %v3916 = vunpack.c.l.b16 %v3788
      %v3917 = vunpack.c.l.b16 %v3789
      %v3918 = vunpack.c.l.b16 %v3790
      %v3919 = vunpack.c.l.b16 %v3791
      %v3920 = vunpack.c.l.b16 %v3792
      %v3921 = vunpack.c.l.b16 %v3793
      %v3922 = vunpack.c.l.b16 %v3794
      %v3923 = vunpack.c.l.b16 %v3795
      %v3924 = vunpack.c.l.b16 %v3796
      %v3925 = vunpack.c.l.b16 %v3797
      %v3926 = vunpack.c.l.b16 %v3798
      %v3927 = vunpack.c.l.b16 %v3799
      %v3928 = vunpack.c.l.b16 %v3800
      %v3929 = vunpack.c.l.b16 %v3801
      %v3930 = vunpack.c.l.b16 %v3802
      %v3931 = vpack.c.b16 %v3916, %v3915
      %v3932 = vpack.c.b16 %v3918, %v3917
      %v3933 = vpack.c.b16 %v3920, %v3919
      %v3934 = vpack.c.b16 %v3922, %v3921
      %v3935 = vpack.c.b16 %v3924, %v3923
      %v3936 = vpack.c.b16 %v3926, %v3925
      %v3937 = vpack.c.b16 %v3928, %v3927
      %v3938 = vpack.c.b16 %v3930, %v3929
      %3947 = vmatprep.subr.bf16.mxu0 0
      %3948 = vmatpush1.bf16.msra.mxu0 %v3931
      %3949 = vmatprep.subr.bf16.mxu0 0
      %3950 = vmatpush1.bf16.msra.mxu0 %v3932
      %3951 = vmatprep.subr.bf16.mxu0 0
      %3952 = vmatpush1.bf16.msra.mxu0 %v3933
      %3953 = vmatprep.subr.bf16.mxu0 0
      %3954 = vmatpush1.bf16.msra.mxu0 %v3934
      %3955 = vmatprep.subr.bf16.mxu0 0
      %3956 = vmatpush1.bf16.msra.mxu0 %v3935
      %3957 = vmatprep.subr.bf16.mxu0 0
      %3958 = vmatpush1.bf16.msra.mxu0 %v3936
      %3959 = vmatprep.subr.bf16.mxu0 0
      %3960 = vmatpush1.bf16.msra.mxu0 %v3937
      %3961 = vmatprep.subr.bf16.mxu0 0
      %3962 = vmatpush1.bf16.msra.mxu0 %v3938
      %3963 = vmatprep.subr.bf16.mxu0 0
      %3964 = vmatpush1.bf16.msra.mxu0 0
      %3965 = vmatprep.subr.bf16.mxu0 0
      %3966 = vmatpush1.bf16.msra.mxu0 0
      %3967 = vmatprep.subr.bf16.mxu0 0
      %3968 = vmatpush1.bf16.msra.mxu0 0
      %3969 = vmatprep.subr.bf16.mxu0 0
      %3970 = vmatpush1.bf16.msra.mxu0 0
      %3971 = vmatprep.subr.bf16.mxu0 0
      %3972 = vmatpush1.bf16.msra.mxu0 0
      %3973 = vmatprep.subr.bf16.mxu0 0
      %3974 = vmatpush1.bf16.msra.mxu0 0
      %3975 = vmatprep.subr.bf16.mxu0 0
      %3976 = vmatpush1.bf16.msra.mxu0 0
      %3977 = vmatprep.subr.bf16.mxu0 0
      %3978 = vmatpush1.bf16.msra.mxu0 0
      %3979 = vmatprep.mubr.bf16.mxu0 0
      %3980 = vmatmul.mubr.bf16.gmra.mrb[0].mxu0 %v3867
      %v3981 = vpop.f32.mrb[0].mxu0
      %v3982 = vadd.f32 0.0, %v3981
      %v3983 = vpop.f32.mrb[0].mxu0
      %v3984 = vpop.f32.mrb[0].mxu0
      %v3985 = vadd.f32 0.0, %v3984
      %v3986 = vpop.f32.mrb[0].mxu0
      %3987 = vmatprep.mubr.bf16.mxu0 0
      %3988 = vmatmul.mubr.bf16.gmra.mrb[0].mxu0 %v3868
      %v3989 = vpop.f32.mrb[0].mxu0
      %v3990 = vadd.f32 0.0, %v3989
      %v3991 = vpop.f32.mrb[0].mxu0
      %v3992 = vpop.f32.mrb[0].mxu0
      %v3993 = vadd.f32 0.0, %v3992
      %v3994 = vpop.f32.mrb[0].mxu0
      %3995 = vmatprep.mubr.bf16.mxu0 0
      %3996 = vmatmul.mubr.bf16.gmra.mrb[0].mxu0 %v3869
      %v3997 = vpop.f32.mrb[0].mxu0
      %v3998 = vadd.f32 0.0, %v3997
      %v3999 = vpop.f32.mrb[0].mxu0
      %v4000 = vpop.f32.mrb[0].mxu0
      %v4001 = vadd.f32 0.0, %v4000
      %v4002 = vpop.f32.mrb[0].mxu0
      %4003 = vmatprep.mubr.bf16.mxu0 0
      %4004 = vmatmul.mubr.bf16.gmra.mrb[0].mxu0 %v3870
      %v4005 = vpop.f32.mrb[0].mxu0
      %v4006 = vadd.f32 0.0, %v4005
      %v4007 = vpop.f32.mrb[0].mxu0
      %v4008 = vpop.f32.mrb[0].mxu0
      %v4009 = vadd.f32 0.0, %v4008
      %v4010 = vpop.f32.mrb[0].mxu0
      %4011 = vmatprep.mubr.bf16.mxu0 0
      %4012 = vmatmul.mubr.bf16.gmra.mrb[0].mxu0 %v3871
      %v4013 = vpop.f32.mrb[0].mxu0
      %v4014 = vadd.f32 0.0, %v4013
      %v4015 = vpop.f32.mrb[0].mxu0
      %v4016 = vpop.f32.mrb[0].mxu0
      %v4017 = vadd.f32 0.0, %v4016
      %v4018 = vpop.f32.mrb[0].mxu0
      %4019 = vmatprep.mubr.bf16.mxu0 0
      %4020 = vmatmul.mubr.bf16.gmra.mrb[0].mxu0 %v3872
      %v4021 = vpop.f32.mrb[0].mxu0
      %v4022 = vadd.f32 0.0, %v4021
      %v4023 = vpop.f32.mrb[0].mxu0
      %v4024 = vpop.f32.mrb[0].mxu0
      %v4025 = vadd.f32 0.0, %v4024
      %v4026 = vpop.f32.mrb[0].mxu0
      %4027 = vmatprep.mubr.bf16.mxu0 0
      %4028 = vmatmul.mubr.bf16.gmra.mrb[0].mxu0 %v3873
      %v4029 = vpop.f32.mrb[0].mxu0
      %v4030 = vadd.f32 0.0, %v4029
      %v4031 = vpop.f32.mrb[0].mxu0
      %v4032 = vpop.f32.mrb[0].mxu0
      %v4033 = vadd.f32 0.0, %v4032
      %v4034 = vpop.f32.mrb[0].mxu0
      %4035 = vmatprep.mubr.bf16.mxu0 0
      %4036 = vmatmul.mubr.bf16.gmra.mrb[0].mxu0 %v3874
      %v4037 = vpop.f32.mrb[0].mxu0
      %v4038 = vadd.f32 0.0, %v4037
      %v4039 = vpop.f32.mrb[0].mxu0
      %v4040 = vpop.f32.mrb[0].mxu0
      %v4041 = vadd.f32 0.0, %v4040
      %v4042 = vpop.f32.mrb[0].mxu0
      %4043 = vmatprep.mubr.bf16.mxu0 0
      %4044 = vmatmul.mubr.bf16.gmra.mrb[0].mxu0 %v3875
      %v4045 = vpop.f32.mrb[0].mxu0
      %v4046 = vadd.f32 0.0, %v4045
      %v4047 = vpop.f32.mrb[0].mxu0
      %v4048 = vpop.f32.mrb[0].mxu0
      %v4049 = vadd.f32 0.0, %v4048
      %v4050 = vpop.f32.mrb[0].mxu0
      %4051 = vmatprep.mubr.bf16.mxu0 0
      %4052 = vmatmul.mubr.bf16.gmra.mrb[0].mxu0 %v3876
      %v4053 = vpop.f32.mrb[0].mxu0
      %v4054 = vadd.f32 0.0, %v4053
      %v4055 = vpop.f32.mrb[0].mxu0
      %v4056 = vpop.f32.mrb[0].mxu0
      %v4057 = vadd.f32 0.0, %v4056
      %v4058 = vpop.f32.mrb[0].mxu0
      %4059 = vmatprep.mubr.bf16.mxu0 0
      %4060 = vmatmul.mubr.bf16.gmra.mrb[0].mxu0 %v3877
      %v4061 = vpop.f32.mrb[0].mxu0
      %v4062 = vadd.f32 0.0, %v4061
      %v4063 = vpop.f32.mrb[0].mxu0
      %v4064 = vpop.f32.mrb[0].mxu0
      %v4065 = vadd.f32 0.0, %v4064
      %v4066 = vpop.f32.mrb[0].mxu0
      %4067 = vmatprep.mubr.bf16.mxu0 0
      %4068 = vmatmul.mubr.bf16.gmra.mrb[0].mxu0 %v3878
      %v4069 = vpop.f32.mrb[0].mxu0
      %v4070 = vadd.f32 0.0, %v4069
      %v4071 = vpop.f32.mrb[0].mxu0
      %v4072 = vpop.f32.mrb[0].mxu0
      %v4073 = vadd.f32 0.0, %v4072
      %v4074 = vpop.f32.mrb[0].mxu0
      %4075 = vmatprep.mubr.bf16.mxu0 0
      %4076 = vmatmul.mubr.bf16.gmra.mrb[0].mxu0 %v3879
      %v4077 = vpop.f32.mrb[0].mxu0
      %v4078 = vadd.f32 0.0, %v4077
      %v4079 = vpop.f32.mrb[0].mxu0
      %v4080 = vpop.f32.mrb[0].mxu0
      %v4081 = vadd.f32 0.0, %v4080
      %v4082 = vpop.f32.mrb[0].mxu0
      %4083 = vmatprep.mubr.bf16.mxu0 0
      %4084 = vmatmul.mubr.bf16.gmra.mrb[0].mxu0 %v3880
      %v4085 = vpop.f32.mrb[0].mxu0
      %v4086 = vadd.f32 0.0, %v4085
      %v4087 = vpop.f32.mrb[0].mxu0
      %v4088 = vpop.f32.mrb[0].mxu0
      %v4089 = vadd.f32 0.0, %v4088
      %v4090 = vpop.f32.mrb[0].mxu0
      %4091 = vmatprep.mubr.bf16.mxu0 0
      %4092 = vmatmul.mubr.bf16.gmra.mrb[0].mxu0 %v3881
      %v4093 = vpop.f32.mrb[0].mxu0
      %v4094 = vadd.f32 0.0, %v4093
      %v4095 = vpop.f32.mrb[0].mxu0
      %v4096 = vpop.f32.mrb[0].mxu0
      %v4097 = vadd.f32 0.0, %v4096
      %v4098 = vpop.f32.mrb[0].mxu0
      %4099 = vmatprep.mubr.bf16.mxu0 0
      %4100 = vmatmul.mubr.bf16.gmra.mrb[0].mxu0 %v3882
      %v4101 = vpop.f32.mrb[0].mxu0
      %v4102 = vadd.f32 0.0, %v4101
      %v4103 = vpop.f32.mrb[0].mxu0
      %v4104 = vpop.f32.mrb[0].mxu0
      %v4105 = vadd.f32 0.0, %v4104
      %v4106 = vpop.f32.mrb[0].mxu0
      %4107 = vdwg.mxu0
      %v4108 = vadd.f32 %v3754, %v3982
      %v4109 = vadd.f32 %v3755, %v3985
      %v4110 = vadd.f32 %v3756, %v3990
      %v4111 = vadd.f32 %v3757, %v3993
      %v4112 = vadd.f32 %v3758, %v3998
      %v4113 = vadd.f32 %v3759, %v4001
      %v4114 = vadd.f32 %v3760, %v4006
      %v4115 = vadd.f32 %v3761, %v4009
      %v4116 = vadd.f32 %v3762, %v4014
      %v4117 = vadd.f32 %v3763, %v4017
      %v4118 = vadd.f32 %v3764, %v4022
      %v4119 = vadd.f32 %v3765, %v4025
      %v4120 = vadd.f32 %v3766, %v4030
      %v4121 = vadd.f32 %v3767, %v4033
      %v4122 = vadd.f32 %v3768, %v4038
      %v4123 = vadd.f32 %v3769, %v4041
      %v4124 = vadd.f32 %v3770, %v4046
      %v4125 = vadd.f32 %v3771, %v4049
      %v4126 = vadd.f32 %v3772, %v4054
      %v4127 = vadd.f32 %v3773, %v4057
      %v4128 = vadd.f32 %v3774, %v4062
      %v4129 = vadd.f32 %v3775, %v4065
      %v4130 = vadd.f32 %v3776, %v4070
      %v4131 = vadd.f32 %v3777, %v4073
      %v4132 = vadd.f32 %v3778, %v4078
      %v4133 = vadd.f32 %v3779, %v4081
      %v4134 = vadd.f32 %v3780, %v4086
      %v4135 = vadd.f32 %v3781, %v4089
      %v4136 = vadd.f32 %v3782, %v4094
      %v4137 = vadd.f32 %v3783, %v4097
      %v4138 = vadd.f32 %v3784, %v4102
      %v4139 = vadd.f32 %v3785, %v4105
      %v4140 = vld [vmem:[#allocation2 + $0x10] sm:$0xf]
      %v4141 = vld [vmem:[#allocation2 + $0x14] sm:$0xf]
      %v4142 = vld [vmem:[#allocation2 + $0x18] sm:$0xf]
      %v4143 = vld [vmem:[#allocation2 + $0x1c] sm:$0xf]
      %v4144 = vld [vmem:[#allocation2 + $0x20] sm:$0xf]
      %v4145 = vld [vmem:[#allocation2 + $0x24] sm:$0xf]
      %v4146 = vld [vmem:[#allocation2 + $0x28] sm:$0xf]
      %v4147 = vld [vmem:[#allocation2 + $0x2c] sm:$0xf]
      %v4148 = vld [vmem:[#allocation2 + $0x30] sm:$0xf]
      %v4149 = vld [vmem:[#allocation2 + $0x34] sm:$0xf]
      %v4150 = vld [vmem:[#allocation2 + $0x38] sm:$0xf]
      %v4151 = vld [vmem:[#allocation2 + $0x3c] sm:$0xf]
      %v4152 = vld [vmem:[#allocation2 + $0x40] sm:$0xf]
      %v4153 = vld [vmem:[#allocation2 + $0x44] sm:$0xf]
      %v4154 = vld [vmem:[#allocation2 + $0x48] sm:$0xf]
      %v4155 = vld [vmem:[#allocation2 + $0x4c] sm:$0xf]
      %v4156 = vld [vmem:[#allocation2 + $0x50] sm:$0xf]
      %v4157 = vld [vmem:[#allocation2 + $0x54] sm:$0xf]
      %v4158 = vld [vmem:[#allocation2 + $0x58] sm:$0xf]
      %v4159 = vld [vmem:[#allocation2 + $0x5c] sm:$0xf]
      %v4160 = vld [vmem:[#allocation2 + $0x60] sm:$0xf]
      %v4161 = vld [vmem:[#allocation2 + $0x64] sm:$0xf]
      %v4162 = vld [vmem:[#allocation2 + $0x68] sm:$0xf]
      %v4163 = vld [vmem:[#allocation2 + $0x6c] sm:$0xf]
      %v4164 = vld [vmem:[#allocation2 + $0x70] sm:$0xf]
      %v4165 = vld [vmem:[#allocation2 + $0x74] sm:$0xf]
      %v4166 = vld [vmem:[#allocation2 + $0x78] sm:$0xf]
      %v4167 = vld [vmem:[#allocation2 + $0x7c] sm:$0xf]
      %v4168 = vld [vmem:[#allocation2 + $0x80] sm:$0xf]
      %v4169 = vld [vmem:[#allocation2 + $0x84] sm:$0xf]
      %v4170 = vld [vmem:[#allocation2 + $0x88] sm:$0xf]
      %v4171 = vld [vmem:[#allocation2 + $0x8c] sm:$0xf]
      %v4172 = vld [vmem:[#allocation2 + $0x90] sm:$0x1]
      %v4173 = vsel %vm2655, %v4140, 0
      %v4174 = vsel %vm2656, %v4141, 0
      %v4175 = vsel %vm2657, %v4142, 0
      %v4176 = vsel %vm2658, %v4143, 0
      %v4177 = vsel %vm2659, %v4144, 0
      %v4178 = vsel %vm2660, %v4145, 0
      %v4179 = vsel %vm2661, %v4146, 0
      %v4180 = vsel %vm2662, %v4147, 0
      %v4181 = vsel %vm2663, %v4148, 0
      %v4182 = vsel %vm2664, %v4149, 0
      %v4183 = vsel %vm2665, %v4150, 0
      %v4184 = vsel %vm2666, %v4151, 0
      %v4185 = vsel %vm2667, %v4152, 0
      %v4186 = vsel %vm2668, %v4153, 0
      %v4187 = vsel %vm2669, %v4154, 0
      %v4188 = vsel %vm2670, %v4155, 0
      %v4189 = vsel %vm2671, %v4156, 0
      %v4190 = vsel %vm2672, %v4157, 0
      %v4191 = vsel %vm2673, %v4158, 0
      %v4192 = vsel %vm2674, %v4159, 0
      %v4193 = vsel %vm2675, %v4160, 0
      %v4194 = vsel %vm2676, %v4161, 0
      %v4195 = vsel %vm2677, %v4162, 0
      %v4196 = vsel %vm2678, %v4163, 0
      %v4197 = vsel %vm2679, %v4164, 0
      %v4198 = vsel %vm2680, %v4165, 0
      %v4199 = vsel %vm2681, %v4166, 0
      %v4200 = vsel %vm2682, %v4167, 0
      %v4201 = vsel %vm2683, %v4168, 0
      %v4202 = vsel %vm2684, %v4169, 0
      %v4203 = vsel %vm2685, %v4170, 0
      %v4204 = vsel %vm2686, %v4171, 0
      %v4205 = vsel %vm2687, %v4172, 0
      %s4206 = scalar_lea.vmem %s239, 320
      %v4207 = vld [vmem:[%s4206] sm:$0xf]
      %v4208 = vld [vmem:[%s4206 + $0x4] sm:$0xf]
      %v4209 = vld [vmem:[%s4206 + $0x8] sm:$0xf]
      %v4210 = vld [vmem:[%s4206 + $0xc] sm:$0xf]
      %v4211 = vld [vmem:[%s4206 + $0x10] sm:$0xf]
      %v4212 = vld [vmem:[%s4206 + $0x14] sm:$0xf]
      %v4213 = vld [vmem:[%s4206 + $0x18] sm:$0xf]
      %v4214 = vld [vmem:[%s4206 + $0x1c] sm:$0xf]
      %v4215 = vld [vmem:[%s4206 + $0x20] sm:$0xf]
      %v4216 = vld [vmem:[%s4206 + $0x24] sm:$0xf]
      %v4217 = vld [vmem:[%s4206 + $0x28] sm:$0xf]
      %v4218 = vld [vmem:[%s4206 + $0x2c] sm:$0xf]
      %v4219 = vld [vmem:[%s4206 + $0x30] sm:$0xf]
      %v4220 = vld [vmem:[%s4206 + $0x34] sm:$0xf]
      %v4221 = vld [vmem:[%s4206 + $0x38] sm:$0xf]
      %v4222 = vld [vmem:[%s4206 + $0x3c] sm:$0xf]
      %v4256 = vunpack.c.l.b16 %v4173
      %v4257 = vunpack.c.l.b16 %v4174
      %v4258 = vunpack.c.l.b16 %v4175
      %v4259 = vunpack.c.l.b16 %v4176
      %v4260 = vunpack.c.l.b16 %v4177
      %v4261 = vunpack.c.l.b16 %v4178
      %v4262 = vunpack.c.l.b16 %v4179
      %v4263 = vunpack.c.l.b16 %v4180
      %v4264 = vunpack.c.l.b16 %v4181
      %v4265 = vunpack.c.l.b16 %v4182
      %v4266 = vunpack.c.l.b16 %v4183
      %v4267 = vunpack.c.l.b16 %v4184
      %v4268 = vunpack.c.l.b16 %v4185
      %v4269 = vunpack.c.l.b16 %v4186
      %v4270 = vunpack.c.l.b16 %v4187
      %v4271 = vunpack.c.l.b16 %v4188
      %v4272 = vunpack.c.l.b16 %v4189
      %v4273 = vunpack.c.l.b16 %v4190
      %v4274 = vunpack.c.l.b16 %v4191
      %v4275 = vunpack.c.l.b16 %v4192
      %v4276 = vunpack.c.l.b16 %v4193
      %v4277 = vunpack.c.l.b16 %v4194
      %v4278 = vunpack.c.l.b16 %v4195
      %v4279 = vunpack.c.l.b16 %v4196
      %v4280 = vunpack.c.l.b16 %v4197
      %v4281 = vunpack.c.l.b16 %v4198
      %v4282 = vunpack.c.l.b16 %v4199
      %v4283 = vunpack.c.l.b16 %v4200
      %v4284 = vunpack.c.l.b16 %v4201
      %v4285 = vunpack.c.l.b16 %v4202
      %v4286 = vunpack.c.l.b16 %v4203
      %v4287 = vunpack.c.l.b16 %v4204
      %v4288 = vunpack.c.l.b16 %v4205
      %v4289 = vpack.c.b16 %v4257, %v4256
      %v4290 = vpack.c.b16 %v4259, %v4258
      %v4291 = vpack.c.b16 %v4261, %v4260
      %v4292 = vpack.c.b16 %v4263, %v4262
      %v4293 = vpack.c.b16 %v4265, %v4264
      %v4294 = vpack.c.b16 %v4267, %v4266
      %v4295 = vpack.c.b16 %v4269, %v4268
      %v4296 = vpack.c.b16 %v4271, %v4270
      %v4297 = vpack.c.b16 %v4273, %v4272
      %v4298 = vpack.c.b16 %v4275, %v4274
      %v4299 = vpack.c.b16 %v4277, %v4276
      %v4300 = vpack.c.b16 %v4279, %v4278
      %v4301 = vpack.c.b16 %v4281, %v4280
      %v4302 = vpack.c.b16 %v4283, %v4282
      %v4303 = vpack.c.b16 %v4285, %v4284
      %v4304 = vpack.c.b16 %v4287, %v4286
      %v4305 = vpack.c.b16 %v4288, %v4288
      %v4307 = vshrl.u32 %v4289, 16
      %v4309 = vshll.u32 %v4289, 16
      %v4311 = vrot.slane %v4309, 1
      %v4312 = vor.u32 %v4307, %v4311
      %v4314 = vshll.u32 %v4290, 16
      %v4316 = vrot.slane %v4314, 1
      %v4317 = vsel %vm2821, %v4312, %v4316
      %v4318 = vshrl.u32 %v4290, 16
      %v4320 = vor.u32 %v4318, %v4316
      %v4322 = vshll.u32 %v4291, 16
      %v4324 = vrot.slane %v4322, 1
      %v4325 = vsel %vm2821, %v4320, %v4324
      %v4326 = vshrl.u32 %v4291, 16
      %v4328 = vor.u32 %v4326, %v4324
      %v4330 = vshll.u32 %v4292, 16
      %v4332 = vrot.slane %v4330, 1
      %v4333 = vsel %vm2821, %v4328, %v4332
      %v4334 = vshrl.u32 %v4292, 16
      %v4336 = vor.u32 %v4334, %v4332
      %v4338 = vshll.u32 %v4293, 16
      %v4340 = vrot.slane %v4338, 1
      %v4341 = vsel %vm2821, %v4336, %v4340
      %v4342 = vshrl.u32 %v4293, 16
      %v4344 = vor.u32 %v4342, %v4340
      %v4346 = vshll.u32 %v4294, 16
      %v4348 = vrot.slane %v4346, 1
      %v4349 = vsel %vm2821, %v4344, %v4348
      %v4350 = vshrl.u32 %v4294, 16
      %v4352 = vor.u32 %v4350, %v4348
      %v4354 = vshll.u32 %v4295, 16
      %v4356 = vrot.slane %v4354, 1
      %v4357 = vsel %vm2821, %v4352, %v4356
      %v4358 = vshrl.u32 %v4295, 16
      %v4360 = vor.u32 %v4358, %v4356
      %v4362 = vshll.u32 %v4296, 16
      %v4364 = vrot.slane %v4362, 1
      %v4365 = vsel %vm2821, %v4360, %v4364
      %v4366 = vshrl.u32 %v4296, 16
      %v4368 = vor.u32 %v4366, %v4364
      %v4370 = vshll.u32 %v4297, 16
      %v4372 = vrot.slane %v4370, 1
      %v4373 = vsel %vm2821, %v4368, %v4372
      %v4374 = vshrl.u32 %v4297, 16
      %v4376 = vor.u32 %v4374, %v4372
      %v4378 = vshll.u32 %v4298, 16
      %v4380 = vrot.slane %v4378, 1
      %v4381 = vsel %vm2821, %v4376, %v4380
      %v4382 = vshrl.u32 %v4298, 16
      %v4384 = vor.u32 %v4382, %v4380
      %v4386 = vshll.u32 %v4299, 16
      %v4388 = vrot.slane %v4386, 1
      %v4389 = vsel %vm2821, %v4384, %v4388
      %v4390 = vshrl.u32 %v4299, 16
      %v4392 = vor.u32 %v4390, %v4388
      %v4394 = vshll.u32 %v4300, 16
      %v4396 = vrot.slane %v4394, 1
      %v4397 = vsel %vm2821, %v4392, %v4396
      %v4398 = vshrl.u32 %v4300, 16
      %v4400 = vor.u32 %v4398, %v4396
      %v4402 = vshll.u32 %v4301, 16
      %v4404 = vrot.slane %v4402, 1
      %v4405 = vsel %vm2821, %v4400, %v4404
      %v4406 = vshrl.u32 %v4301, 16
      %v4408 = vor.u32 %v4406, %v4404
      %v4410 = vshll.u32 %v4302, 16
      %v4412 = vrot.slane %v4410, 1
      %v4413 = vsel %vm2821, %v4408, %v4412
      %v4414 = vshrl.u32 %v4302, 16
      %v4416 = vor.u32 %v4414, %v4412
      %v4418 = vshll.u32 %v4303, 16
      %v4420 = vrot.slane %v4418, 1
      %v4421 = vsel %vm2821, %v4416, %v4420
      %v4422 = vshrl.u32 %v4303, 16
      %v4424 = vor.u32 %v4422, %v4420
      %v4426 = vshll.u32 %v4304, 16
      %v4428 = vrot.slane %v4426, 1
      %v4429 = vsel %vm2821, %v4424, %v4428
      %v4430 = vshrl.u32 %v4304, 16
      %v4432 = vor.u32 %v4430, %v4428
      %v4434 = vshll.u32 %v4305, 16
      %v4436 = vrot.slane %v4434, 1
      %v4437 = vsel %vm2821, %v4432, %v4436
      %v4470 = vunpack.c.l.b16 %v4207
      %v4471 = vunpack.c.l.b16 %v4208
      %v4472 = vunpack.c.l.b16 %v4209
      %v4473 = vunpack.c.l.b16 %v4210
      %v4474 = vunpack.c.l.b16 %v4211
      %v4475 = vunpack.c.l.b16 %v4212
      %v4476 = vunpack.c.l.b16 %v4213
      %v4477 = vunpack.c.l.b16 %v4214
      %v4478 = vunpack.c.l.b16 %v4215
      %v4479 = vunpack.c.l.b16 %v4216
      %v4480 = vunpack.c.l.b16 %v4217
      %v4481 = vunpack.c.l.b16 %v4218
      %v4482 = vunpack.c.l.b16 %v4219
      %v4483 = vunpack.c.l.b16 %v4220
      %v4484 = vunpack.c.l.b16 %v4221
      %v4485 = vunpack.c.l.b16 %v4222
      %v4486 = vpack.c.b16 %v4471, %v4470
      %v4487 = vpack.c.b16 %v4473, %v4472
      %v4488 = vpack.c.b16 %v4475, %v4474
      %v4489 = vpack.c.b16 %v4477, %v4476
      %v4490 = vpack.c.b16 %v4479, %v4478
      %v4491 = vpack.c.b16 %v4481, %v4480
      %v4492 = vpack.c.b16 %v4483, %v4482
      %v4493 = vpack.c.b16 %v4485, %v4484
      %4502 = vmatprep.subr.bf16.mxu0 0
      %4503 = vmatpush1.bf16.msra.mxu0 %v4486
      %4504 = vmatprep.subr.bf16.mxu0 0
      %4505 = vmatpush1.bf16.msra.mxu0 %v4487
      %4506 = vmatprep.subr.bf16.mxu0 0
      %4507 = vmatpush1.bf16.msra.mxu0 %v4488
      %4508 = vmatprep.subr.bf16.mxu0 0
      %4509 = vmatpush1.bf16.msra.mxu0 %v4489
      %4510 = vmatprep.subr.bf16.mxu0 0
      %4511 = vmatpush1.bf16.msra.mxu0 %v4490
      %4512 = vmatprep.subr.bf16.mxu0 0
      %4513 = vmatpush1.bf16.msra.mxu0 %v4491
      %4514 = vmatprep.subr.bf16.mxu0 0
      %4515 = vmatpush1.bf16.msra.mxu0 %v4492
      %4516 = vmatprep.subr.bf16.mxu0 0
      %4517 = vmatpush1.bf16.msra.mxu0 %v4493
      %4518 = vmatprep.subr.bf16.mxu0 0
      %4519 = vmatpush1.bf16.msra.mxu0 0
      %4520 = vmatprep.subr.bf16.mxu0 0
      %4521 = vmatpush1.bf16.msra.mxu0 0
      %4522 = vmatprep.subr.bf16.mxu0 0
      %4523 = vmatpush1.bf16.msra.mxu0 0
      %4524 = vmatprep.subr.bf16.mxu0 0
      %4525 = vmatpush1.bf16.msra.mxu0 0
      %4526 = vmatprep.subr.bf16.mxu0 0
      %4527 = vmatpush1.bf16.msra.mxu0 0
      %4528 = vmatprep.subr.bf16.mxu0 0
      %4529 = vmatpush1.bf16.msra.mxu0 0
      %4530 = vmatprep.subr.bf16.mxu0 0
      %4531 = vmatpush1.bf16.msra.mxu0 0
      %4532 = vmatprep.subr.bf16.mxu0 0
      %4533 = vmatpush1.bf16.msra.mxu0 0
      %4534 = vmatprep.mubr.bf16.mxu0 0
      %4535 = vmatmul.mubr.bf16.gmra.mrb[0].mxu0 %v4317
      %v4536 = vpop.f32.mrb[0].mxu0
      %v4537 = vadd.f32 0.0, %v4536
      %v4538 = vpop.f32.mrb[0].mxu0
      %v4539 = vpop.f32.mrb[0].mxu0
      %v4540 = vadd.f32 0.0, %v4539
      %v4541 = vpop.f32.mrb[0].mxu0
      %4542 = vmatprep.mubr.bf16.mxu0 0
      %4543 = vmatmul.mubr.bf16.gmra.mrb[0].mxu0 %v4325
      %v4544 = vpop.f32.mrb[0].mxu0
      %v4545 = vadd.f32 0.0, %v4544
      %v4546 = vpop.f32.mrb[0].mxu0
      %v4547 = vpop.f32.mrb[0].mxu0
      %v4548 = vadd.f32 0.0, %v4547
      %v4549 = vpop.f32.mrb[0].mxu0
      %4550 = vmatprep.mubr.bf16.mxu0 0
      %4551 = vmatmul.mubr.bf16.gmra.mrb[0].mxu0 %v4333
      %v4552 = vpop.f32.mrb[0].mxu0
      %v4553 = vadd.f32 0.0, %v4552
      %v4554 = vpop.f32.mrb[0].mxu0
      %v4555 = vpop.f32.mrb[0].mxu0
      %v4556 = vadd.f32 0.0, %v4555
      %v4557 = vpop.f32.mrb[0].mxu0
      %4558 = vmatprep.mubr.bf16.mxu0 0
      %4559 = vmatmul.mubr.bf16.gmra.mrb[0].mxu0 %v4341
      %v4560 = vpop.f32.mrb[0].mxu0
      %v4561 = vadd.f32 0.0, %v4560
      %v4562 = vpop.f32.mrb[0].mxu0
      %v4563 = vpop.f32.mrb[0].mxu0
      %v4564 = vadd.f32 0.0, %v4563
      %v4565 = vpop.f32.mrb[0].mxu0
      %4566 = vmatprep.mubr.bf16.mxu0 0
      %4567 = vmatmul.mubr.bf16.gmra.mrb[0].mxu0 %v4349
      %v4568 = vpop.f32.mrb[0].mxu0
      %v4569 = vadd.f32 0.0, %v4568
      %v4570 = vpop.f32.mrb[0].mxu0
      %v4571 = vpop.f32.mrb[0].mxu0
      %v4572 = vadd.f32 0.0, %v4571
      %v4573 = vpop.f32.mrb[0].mxu0
      %4574 = vmatprep.mubr.bf16.mxu0 0
      %4575 = vmatmul.mubr.bf16.gmra.mrb[0].mxu0 %v4357
      %v4576 = vpop.f32.mrb[0].mxu0
      %v4577 = vadd.f32 0.0, %v4576
      %v4578 = vpop.f32.mrb[0].mxu0
      %v4579 = vpop.f32.mrb[0].mxu0
      %v4580 = vadd.f32 0.0, %v4579
      %v4581 = vpop.f32.mrb[0].mxu0
      %4582 = vmatprep.mubr.bf16.mxu0 0
      %4583 = vmatmul.mubr.bf16.gmra.mrb[0].mxu0 %v4365
      %v4584 = vpop.f32.mrb[0].mxu0
      %v4585 = vadd.f32 0.0, %v4584
      %v4586 = vpop.f32.mrb[0].mxu0
      %v4587 = vpop.f32.mrb[0].mxu0
      %v4588 = vadd.f32 0.0, %v4587
      %v4589 = vpop.f32.mrb[0].mxu0
      %4590 = vmatprep.mubr.bf16.mxu0 0
      %4591 = vmatmul.mubr.bf16.gmra.mrb[0].mxu0 %v4373
      %v4592 = vpop.f32.mrb[0].mxu0
      %v4593 = vadd.f32 0.0, %v4592
      %v4594 = vpop.f32.mrb[0].mxu0
      %v4595 = vpop.f32.mrb[0].mxu0
      %v4596 = vadd.f32 0.0, %v4595
      %v4597 = vpop.f32.mrb[0].mxu0
      %4598 = vmatprep.mubr.bf16.mxu0 0
      %4599 = vmatmul.mubr.bf16.gmra.mrb[0].mxu0 %v4381
      %v4600 = vpop.f32.mrb[0].mxu0
      %v4601 = vadd.f32 0.0, %v4600
      %v4602 = vpop.f32.mrb[0].mxu0
      %v4603 = vpop.f32.mrb[0].mxu0
      %v4604 = vadd.f32 0.0, %v4603
      %v4605 = vpop.f32.mrb[0].mxu0
      %4606 = vmatprep.mubr.bf16.mxu0 0
      %4607 = vmatmul.mubr.bf16.gmra.mrb[0].mxu0 %v4389
      %v4608 = vpop.f32.mrb[0].mxu0
      %v4609 = vadd.f32 0.0, %v4608
      %v4610 = vpop.f32.mrb[0].mxu0
      %v4611 = vpop.f32.mrb[0].mxu0
      %v4612 = vadd.f32 0.0, %v4611
      %v4613 = vpop.f32.mrb[0].mxu0
      %4614 = vmatprep.mubr.bf16.mxu0 0
      %4615 = vmatmul.mubr.bf16.gmra.mrb[0].mxu0 %v4397
      %v4616 = vpop.f32.mrb[0].mxu0
      %v4617 = vadd.f32 0.0, %v4616
      %v4618 = vpop.f32.mrb[0].mxu0
      %v4619 = vpop.f32.mrb[0].mxu0
      %v4620 = vadd.f32 0.0, %v4619
      %v4621 = vpop.f32.mrb[0].mxu0
      %4622 = vmatprep.mubr.bf16.mxu0 0
      %4623 = vmatmul.mubr.bf16.gmra.mrb[0].mxu0 %v4405
      %v4624 = vpop.f32.mrb[0].mxu0
      %v4625 = vadd.f32 0.0, %v4624
      %v4626 = vpop.f32.mrb[0].mxu0
      %v4627 = vpop.f32.mrb[0].mxu0
      %v4628 = vadd.f32 0.0, %v4627
      %v4629 = vpop.f32.mrb[0].mxu0
      %4630 = vmatprep.mubr.bf16.mxu0 0
      %4631 = vmatmul.mubr.bf16.gmra.mrb[0].mxu0 %v4413
      %v4632 = vpop.f32.mrb[0].mxu0
      %v4633 = vadd.f32 0.0, %v4632
      %v4634 = vpop.f32.mrb[0].mxu0
      %v4635 = vpop.f32.mrb[0].mxu0
      %v4636 = vadd.f32 0.0, %v4635
      %v4637 = vpop.f32.mrb[0].mxu0
      %4638 = vmatprep.mubr.bf16.mxu0 0
      %4639 = vmatmul.mubr.bf16.gmra.mrb[0].mxu0 %v4421
      %v4640 = vpop.f32.mrb[0].mxu0
      %v4641 = vadd.f32 0.0, %v4640
      %v4642 = vpop.f32.mrb[0].mxu0
      %v4643 = vpop.f32.mrb[0].mxu0
      %v4644 = vadd.f32 0.0, %v4643
      %v4645 = vpop.f32.mrb[0].mxu0
      %4646 = vmatprep.mubr.bf16.mxu0 0
      %4647 = vmatmul.mubr.bf16.gmra.mrb[0].mxu0 %v4429
      %v4648 = vpop.f32.mrb[0].mxu0
      %v4649 = vadd.f32 0.0, %v4648
      %v4650 = vpop.f32.mrb[0].mxu0
      %v4651 = vpop.f32.mrb[0].mxu0
      %v4652 = vadd.f32 0.0, %v4651
      %v4653 = vpop.f32.mrb[0].mxu0
      %4654 = vmatprep.mubr.bf16.mxu0 0
      %4655 = vmatmul.mubr.bf16.gmra.mrb[0].mxu0 %v4437
      %v4656 = vpop.f32.mrb[0].mxu0
      %v4657 = vadd.f32 0.0, %v4656
      %v4658 = vpop.f32.mrb[0].mxu0
      %v4659 = vpop.f32.mrb[0].mxu0
      %v4660 = vadd.f32 0.0, %v4659
      %v4661 = vpop.f32.mrb[0].mxu0
      %4662 = vdwg.mxu0
      %v4663 = vadd.f32 %v4108, %v4537
      %v4664 = vadd.f32 %v4109, %v4540
      %v4665 = vadd.f32 %v4110, %v4545
      %v4666 = vadd.f32 %v4111, %v4548
      %v4667 = vadd.f32 %v4112, %v4553
      %v4668 = vadd.f32 %v4113, %v4556
      %v4669 = vadd.f32 %v4114, %v4561
      %v4670 = vadd.f32 %v4115, %v4564
      %v4671 = vadd.f32 %v4116, %v4569
      %v4672 = vadd.f32 %v4117, %v4572
      %v4673 = vadd.f32 %v4118, %v4577
      %v4674 = vadd.f32 %v4119, %v4580
      %v4675 = vadd.f32 %v4120, %v4585
      %v4676 = vadd.f32 %v4121, %v4588
      %v4677 = vadd.f32 %v4122, %v4593
      %v4678 = vadd.f32 %v4123, %v4596
      %v4679 = vadd.f32 %v4124, %v4601
      %v4680 = vadd.f32 %v4125, %v4604
      %v4681 = vadd.f32 %v4126, %v4609
      %v4682 = vadd.f32 %v4127, %v4612
      %v4683 = vadd.f32 %v4128, %v4617
      %v4684 = vadd.f32 %v4129, %v4620
      %v4685 = vadd.f32 %v4130, %v4625
      %v4686 = vadd.f32 %v4131, %v4628
      %v4687 = vadd.f32 %v4132, %v4633
      %v4688 = vadd.f32 %v4133, %v4636
      %v4689 = vadd.f32 %v4134, %v4641
      %v4690 = vadd.f32 %v4135, %v4644
      %v4691 = vadd.f32 %v4136, %v4649
      %v4692 = vadd.f32 %v4137, %v4652
      %v4693 = vadd.f32 %v4138, %v4657
      %v4694 = vadd.f32 %v4139, %v4660
      %v4695 = vld [vmem:[#allocation2 + $0x14] sm:$0x8]
      %v4696 = vld [vmem:[#allocation2 + $0x18] sm:$0xf]
      %v4697 = vld [vmem:[#allocation2 + $0x1c] sm:$0xf]
      %v4698 = vld [vmem:[#allocation2 + $0x20] sm:$0xf]
      %v4699 = vld [vmem:[#allocation2 + $0x24] sm:$0xf]
      %v4700 = vld [vmem:[#allocation2 + $0x28] sm:$0xf]
      %v4701 = vld [vmem:[#allocation2 + $0x2c] sm:$0xf]
      %v4702 = vld [vmem:[#allocation2 + $0x30] sm:$0xf]
      %v4703 = vld [vmem:[#allocation2 + $0x34] sm:$0xf]
      %v4704 = vld [vmem:[#allocation2 + $0x38] sm:$0xf]
      %v4705 = vld [vmem:[#allocation2 + $0x3c] sm:$0xf]
      %v4706 = vld [vmem:[#allocation2 + $0x40] sm:$0xf]
      %v4707 = vld [vmem:[#allocation2 + $0x44] sm:$0xf]
      %v4708 = vld [vmem:[#allocation2 + $0x48] sm:$0xf]
      %v4709 = vld [vmem:[#allocation2 + $0x4c] sm:$0xf]
      %v4710 = vld [vmem:[#allocation2 + $0x50] sm:$0xf]
      %v4711 = vld [vmem:[#allocation2 + $0x54] sm:$0xf]
      %v4712 = vld [vmem:[#allocation2 + $0x58] sm:$0xf]
      %v4713 = vld [vmem:[#allocation2 + $0x5c] sm:$0xf]
      %v4714 = vld [vmem:[#allocation2 + $0x60] sm:$0xf]
      %v4715 = vld [vmem:[#allocation2 + $0x64] sm:$0xf]
      %v4716 = vld [vmem:[#allocation2 + $0x68] sm:$0xf]
      %v4717 = vld [vmem:[#allocation2 + $0x6c] sm:$0xf]
      %v4718 = vld [vmem:[#allocation2 + $0x70] sm:$0xf]
      %v4719 = vld [vmem:[#allocation2 + $0x74] sm:$0xf]
      %v4720 = vld [vmem:[#allocation2 + $0x78] sm:$0xf]
      %v4721 = vld [vmem:[#allocation2 + $0x7c] sm:$0xf]
      %v4722 = vld [vmem:[#allocation2 + $0x80] sm:$0xf]
      %v4723 = vld [vmem:[#allocation2 + $0x84] sm:$0xf]
      %v4724 = vld [vmem:[#allocation2 + $0x88] sm:$0xf]
      %v4725 = vld [vmem:[#allocation2 + $0x8c] sm:$0xf]
      %v4726 = vld [vmem:[#allocation2 + $0x90] sm:$0xf]
      %v4727 = vld [vmem:[#allocation2 + $0x94] sm:$0xf]
      %v4728 = vsel %vm1243, %v4695, 0
      %v4729 = vsel %vm1244, %v4696, 0
      %v4730 = vsel %vm1245, %v4697, 0
      %v4731 = vsel %vm1246, %v4698, 0
      %v4732 = vsel %vm1247, %v4699, 0
      %v4733 = vsel %vm1248, %v4700, 0
      %v4734 = vsel %vm1249, %v4701, 0
      %v4735 = vsel %vm1250, %v4702, 0
      %v4736 = vsel %vm1251, %v4703, 0
      %v4737 = vsel %vm1252, %v4704, 0
      %v4738 = vsel %vm1253, %v4705, 0
      %v4739 = vsel %vm1254, %v4706, 0
      %v4740 = vsel %vm1255, %v4707, 0
      %v4741 = vsel %vm1256, %v4708, 0
      %v4742 = vsel %vm1257, %v4709, 0
      %v4743 = vsel %vm1258, %v4710, 0
      %v4744 = vsel %vm1259, %v4711, 0
      %v4745 = vsel %vm1260, %v4712, 0
      %v4746 = vsel %vm1261, %v4713, 0
      %v4747 = vsel %vm1262, %v4714, 0
      %v4748 = vsel %vm1263, %v4715, 0
      %v4749 = vsel %vm1264, %v4716, 0
      %v4750 = vsel %vm1265, %v4717, 0
      %v4751 = vsel %vm1266, %v4718, 0
      %v4752 = vsel %vm1267, %v4719, 0
      %v4753 = vsel %vm1268, %v4720, 0
      %v4754 = vsel %vm1269, %v4721, 0
      %v4755 = vsel %vm1270, %v4722, 0
      %v4756 = vsel %vm1271, %v4723, 0
      %v4757 = vsel %vm1272, %v4724, 0
      %v4758 = vsel %vm1273, %v4725, 0
      %v4759 = vsel %vm1274, %v4726, 0
      %v4760 = vsel %vm1275, %v4727, 0
      %s4761 = scalar_lea.vmem %s239, 384
      %v4762 = vld [vmem:[%s4761] sm:$0xf]
      %v4763 = vld [vmem:[%s4761 + $0x4] sm:$0xf]
      %v4764 = vld [vmem:[%s4761 + $0x8] sm:$0xf]
      %v4765 = vld [vmem:[%s4761 + $0xc] sm:$0xf]
      %v4766 = vld [vmem:[%s4761 + $0x10] sm:$0xf]
      %v4767 = vld [vmem:[%s4761 + $0x14] sm:$0xf]
      %v4768 = vld [vmem:[%s4761 + $0x18] sm:$0xf]
      %v4769 = vld [vmem:[%s4761 + $0x1c] sm:$0xf]
      %v4770 = vld [vmem:[%s4761 + $0x20] sm:$0xf]
      %v4771 = vld [vmem:[%s4761 + $0x24] sm:$0xf]
      %v4772 = vld [vmem:[%s4761 + $0x28] sm:$0xf]
      %v4773 = vld [vmem:[%s4761 + $0x2c] sm:$0xf]
      %v4774 = vld [vmem:[%s4761 + $0x30] sm:$0xf]
      %v4775 = vld [vmem:[%s4761 + $0x34] sm:$0xf]
      %v4776 = vld [vmem:[%s4761 + $0x38] sm:$0xf]
      %v4777 = vld [vmem:[%s4761 + $0x3c] sm:$0xf]
      %v4811 = vunpack.c.l.b16 %v4728
      %v4812 = vunpack.c.l.b16 %v4729
      %v4813 = vunpack.c.l.b16 %v4730
      %v4814 = vunpack.c.l.b16 %v4731
      %v4815 = vunpack.c.l.b16 %v4732
      %v4816 = vunpack.c.l.b16 %v4733
      %v4817 = vunpack.c.l.b16 %v4734
      %v4818 = vunpack.c.l.b16 %v4735
      %v4819 = vunpack.c.l.b16 %v4736
      %v4820 = vunpack.c.l.b16 %v4737
      %v4821 = vunpack.c.l.b16 %v4738
      %v4822 = vunpack.c.l.b16 %v4739
      %v4823 = vunpack.c.l.b16 %v4740
      %v4824 = vunpack.c.l.b16 %v4741
      %v4825 = vunpack.c.l.b16 %v4742
      %v4826 = vunpack.c.l.b16 %v4743
      %v4827 = vunpack.c.l.b16 %v4744
      %v4828 = vunpack.c.l.b16 %v4745
      %v4829 = vunpack.c.l.b16 %v4746
      %v4830 = vunpack.c.l.b16 %v4747
      %v4831 = vunpack.c.l.b16 %v4748
      %v4832 = vunpack.c.l.b16 %v4749
      %v4833 = vunpack.c.l.b16 %v4750
      %v4834 = vunpack.c.l.b16 %v4751
      %v4835 = vunpack.c.l.b16 %v4752
      %v4836 = vunpack.c.l.b16 %v4753
      %v4837 = vunpack.c.l.b16 %v4754
      %v4838 = vunpack.c.l.b16 %v4755
      %v4839 = vunpack.c.l.b16 %v4756
      %v4840 = vunpack.c.l.b16 %v4757
      %v4841 = vunpack.c.l.b16 %v4758
      %v4842 = vunpack.c.l.b16 %v4759
      %v4843 = vunpack.c.l.b16 %v4760
      %v4844 = vpack.c.b16 %v4812, %v4811
      %v4845 = vpack.c.b16 %v4814, %v4813
      %v4846 = vpack.c.b16 %v4816, %v4815
      %v4847 = vpack.c.b16 %v4818, %v4817
      %v4848 = vpack.c.b16 %v4820, %v4819
      %v4849 = vpack.c.b16 %v4822, %v4821
      %v4850 = vpack.c.b16 %v4824, %v4823
      %v4851 = vpack.c.b16 %v4826, %v4825
      %v4852 = vpack.c.b16 %v4828, %v4827
      %v4853 = vpack.c.b16 %v4830, %v4829
      %v4854 = vpack.c.b16 %v4832, %v4831
      %v4855 = vpack.c.b16 %v4834, %v4833
      %v4856 = vpack.c.b16 %v4836, %v4835
      %v4857 = vpack.c.b16 %v4838, %v4837
      %v4858 = vpack.c.b16 %v4840, %v4839
      %v4859 = vpack.c.b16 %v4842, %v4841
      %v4860 = vpack.c.b16 %v4843, %v4843
      %v4862 = vshrl.u32 %v4844, 16
      %v4864 = vrot.slane %v4862, 3
      %v4865 = vshll.u32 %v4844, 16
      %v4867 = vrot.slane %v4865, 4
      %v4868 = vor.u32 %v4864, %v4867
      %v4870 = vshrl.u32 %v4845, 16
      %v4872 = vrot.slane %v4870, 3
      %v4873 = vshll.u32 %v4845, 16
      %v4875 = vrot.slane %v4873, 4
      %v4876 = vor.u32 %v4872, %v4875
      %v4877 = vsel %vm1730, %v4868, %v4876
      %v4879 = vshrl.u32 %v4846, 16
      %v4881 = vrot.slane %v4879, 3
      %v4882 = vshll.u32 %v4846, 16
      %v4884 = vrot.slane %v4882, 4
      %v4885 = vor.u32 %v4881, %v4884
      %v4886 = vsel %vm1730, %v4876, %v4885
      %v4888 = vshrl.u32 %v4847, 16
      %v4890 = vrot.slane %v4888, 3
      %v4891 = vshll.u32 %v4847, 16
      %v4893 = vrot.slane %v4891, 4
      %v4894 = vor.u32 %v4890, %v4893
      %v4895 = vsel %vm1730, %v4885, %v4894
      %v4897 = vshrl.u32 %v4848, 16
      %v4899 = vrot.slane %v4897, 3
      %v4900 = vshll.u32 %v4848, 16
      %v4902 = vrot.slane %v4900, 4
      %v4903 = vor.u32 %v4899, %v4902
      %v4904 = vsel %vm1730, %v4894, %v4903
      %v4906 = vshrl.u32 %v4849, 16
      %v4908 = vrot.slane %v4906, 3
      %v4909 = vshll.u32 %v4849, 16
      %v4911 = vrot.slane %v4909, 4
      %v4912 = vor.u32 %v4908, %v4911
      %v4913 = vsel %vm1730, %v4903, %v4912
      %v4915 = vshrl.u32 %v4850, 16
      %v4917 = vrot.slane %v4915, 3
      %v4918 = vshll.u32 %v4850, 16
      %v4920 = vrot.slane %v4918, 4
      %v4921 = vor.u32 %v4917, %v4920
      %v4922 = vsel %vm1730, %v4912, %v4921
      %v4924 = vshrl.u32 %v4851, 16
      %v4926 = vrot.slane %v4924, 3
      %v4927 = vshll.u32 %v4851, 16
      %v4929 = vrot.slane %v4927, 4
      %v4930 = vor.u32 %v4926, %v4929
      %v4931 = vsel %vm1730, %v4921, %v4930
      %v4933 = vshrl.u32 %v4852, 16
      %v4935 = vrot.slane %v4933, 3
      %v4936 = vshll.u32 %v4852, 16
      %v4938 = vrot.slane %v4936, 4
      %v4939 = vor.u32 %v4935, %v4938
      %v4940 = vsel %vm1730, %v4930, %v4939
      %v4942 = vshrl.u32 %v4853, 16
      %v4944 = vrot.slane %v4942, 3
      %v4945 = vshll.u32 %v4853, 16
      %v4947 = vrot.slane %v4945, 4
      %v4948 = vor.u32 %v4944, %v4947
      %v4949 = vsel %vm1730, %v4939, %v4948
      %v4951 = vshrl.u32 %v4854, 16
      %v4953 = vrot.slane %v4951, 3
      %v4954 = vshll.u32 %v4854, 16
      %v4956 = vrot.slane %v4954, 4
      %v4957 = vor.u32 %v4953, %v4956
      %v4958 = vsel %vm1730, %v4948, %v4957
      %v4960 = vshrl.u32 %v4855, 16
      %v4962 = vrot.slane %v4960, 3
      %v4963 = vshll.u32 %v4855, 16
      %v4965 = vrot.slane %v4963, 4
      %v4966 = vor.u32 %v4962, %v4965
      %v4967 = vsel %vm1730, %v4957, %v4966
      %v4969 = vshrl.u32 %v4856, 16
      %v4971 = vrot.slane %v4969, 3
      %v4972 = vshll.u32 %v4856, 16
      %v4974 = vrot.slane %v4972, 4
      %v4975 = vor.u32 %v4971, %v4974
      %v4976 = vsel %vm1730, %v4966, %v4975
      %v4978 = vshrl.u32 %v4857, 16
      %v4980 = vrot.slane %v4978, 3
      %v4981 = vshll.u32 %v4857, 16
      %v4983 = vrot.slane %v4981, 4
      %v4984 = vor.u32 %v4980, %v4983
      %v4985 = vsel %vm1730, %v4975, %v4984
      %v4987 = vshrl.u32 %v4858, 16
      %v4989 = vrot.slane %v4987, 3
      %v4990 = vshll.u32 %v4858, 16
      %v4992 = vrot.slane %v4990, 4
      %v4993 = vor.u32 %v4989, %v4992
      %v4994 = vsel %vm1730, %v4984, %v4993
      %v4996 = vshrl.u32 %v4859, 16
      %v4998 = vrot.slane %v4996, 3
      %v4999 = vshll.u32 %v4859, 16
      %v5001 = vrot.slane %v4999, 4
      %v5002 = vor.u32 %v4998, %v5001
      %v5003 = vsel %vm1730, %v4993, %v5002
      %v5005 = vshrl.u32 %v4860, 16
      %v5007 = vrot.slane %v5005, 3
      %v5008 = vshll.u32 %v4860, 16
      %v5010 = vrot.slane %v5008, 4
      %v5011 = vor.u32 %v5007, %v5010
      %v5012 = vsel %vm1730, %v5002, %v5011
      %v5045 = vunpack.c.l.b16 %v4762
      %v5046 = vunpack.c.l.b16 %v4763
      %v5047 = vunpack.c.l.b16 %v4764
      %v5048 = vunpack.c.l.b16 %v4765
      %v5049 = vunpack.c.l.b16 %v4766
      %v5050 = vunpack.c.l.b16 %v4767
      %v5051 = vunpack.c.l.b16 %v4768
      %v5052 = vunpack.c.l.b16 %v4769
      %v5053 = vunpack.c.l.b16 %v4770
      %v5054 = vunpack.c.l.b16 %v4771
      %v5055 = vunpack.c.l.b16 %v4772
      %v5056 = vunpack.c.l.b16 %v4773
      %v5057 = vunpack.c.l.b16 %v4774
      %v5058 = vunpack.c.l.b16 %v4775
      %v5059 = vunpack.c.l.b16 %v4776
      %v5060 = vunpack.c.l.b16 %v4777
      %v5061 = vpack.c.b16 %v5046, %v5045
      %v5062 = vpack.c.b16 %v5048, %v5047
      %v5063 = vpack.c.b16 %v5050, %v5049
      %v5064 = vpack.c.b16 %v5052, %v5051
      %v5065 = vpack.c.b16 %v5054, %v5053
      %v5066 = vpack.c.b16 %v5056, %v5055
      %v5067 = vpack.c.b16 %v5058, %v5057
      %v5068 = vpack.c.b16 %v5060, %v5059
      %5077 = vmatprep.subr.bf16.mxu0 0
      %5078 = vmatpush1.bf16.msra.mxu0 %v5061
      %5079 = vmatprep.subr.bf16.mxu0 0
      %5080 = vmatpush1.bf16.msra.mxu0 %v5062
      %5081 = vmatprep.subr.bf16.mxu0 0
      %5082 = vmatpush1.bf16.msra.mxu0 %v5063
      %5083 = vmatprep.subr.bf16.mxu0 0
      %5084 = vmatpush1.bf16.msra.mxu0 %v5064
      %5085 = vmatprep.subr.bf16.mxu0 0
      %5086 = vmatpush1.bf16.msra.mxu0 %v5065
      %5087 = vmatprep.subr.bf16.mxu0 0
      %5088 = vmatpush1.bf16.msra.mxu0 %v5066
      %5089 = vmatprep.subr.bf16.mxu0 0
      %5090 = vmatpush1.bf16.msra.mxu0 %v5067
      %5091 = vmatprep.subr.bf16.mxu0 0
      %5092 = vmatpush1.bf16.msra.mxu0 %v5068
      %5093 = vmatprep.subr.bf16.mxu0 0
      %5094 = vmatpush1.bf16.msra.mxu0 0
      %5095 = vmatprep.subr.bf16.mxu0 0
      %5096 = vmatpush1.bf16.msra.mxu0 0
      %5097 = vmatprep.subr.bf16.mxu0 0
      %5098 = vmatpush1.bf16.msra.mxu0 0
      %5099 = vmatprep.subr.bf16.mxu0 0
      %5100 = vmatpush1.bf16.msra.mxu0 0
      %5101 = vmatprep.subr.bf16.mxu0 0
      %5102 = vmatpush1.bf16.msra.mxu0 0
      %5103 = vmatprep.subr.bf16.mxu0 0
      %5104 = vmatpush1.bf16.msra.mxu0 0
      %5105 = vmatprep.subr.bf16.mxu0 0
      %5106 = vmatpush1.bf16.msra.mxu0 0
      %5107 = vmatprep.subr.bf16.mxu0 0
      %5108 = vmatpush1.bf16.msra.mxu0 0
      %5109 = vmatprep.mubr.bf16.mxu0 0
      %5110 = vmatmul.mubr.bf16.gmra.mrb[0].mxu0 %v4877
      %v5111 = vpop.f32.mrb[0].mxu0
      %v5112 = vadd.f32 0.0, %v5111
      %v5113 = vpop.f32.mrb[0].mxu0
      %v5114 = vpop.f32.mrb[0].mxu0
      %v5115 = vadd.f32 0.0, %v5114
      %v5116 = vpop.f32.mrb[0].mxu0
      %5117 = vmatprep.mubr.bf16.mxu0 0
      %5118 = vmatmul.mubr.bf16.gmra.mrb[0].mxu0 %v4886
      %v5119 = vpop.f32.mrb[0].mxu0
      %v5120 = vadd.f32 0.0, %v5119
      %v5121 = vpop.f32.mrb[0].mxu0
      %v5122 = vpop.f32.mrb[0].mxu0
      %v5123 = vadd.f32 0.0, %v5122
      %v5124 = vpop.f32.mrb[0].mxu0
      %5125 = vmatprep.mubr.bf16.mxu0 0
      %5126 = vmatmul.mubr.bf16.gmra.mrb[0].mxu0 %v4895
      %v5127 = vpop.f32.mrb[0].mxu0
      %v5128 = vadd.f32 0.0, %v5127
      %v5129 = vpop.f32.mrb[0].mxu0
      %v5130 = vpop.f32.mrb[0].mxu0
      %v5131 = vadd.f32 0.0, %v5130
      %v5132 = vpop.f32.mrb[0].mxu0
      %5133 = vmatprep.mubr.bf16.mxu0 0
      %5134 = vmatmul.mubr.bf16.gmra.mrb[0].mxu0 %v4904
      %v5135 = vpop.f32.mrb[0].mxu0
      %v5136 = vadd.f32 0.0, %v5135
      %v5137 = vpop.f32.mrb[0].mxu0
      %v5138 = vpop.f32.mrb[0].mxu0
      %v5139 = vadd.f32 0.0, %v5138
      %v5140 = vpop.f32.mrb[0].mxu0
      %5141 = vmatprep.mubr.bf16.mxu0 0
      %5142 = vmatmul.mubr.bf16.gmra.mrb[0].mxu0 %v4913
      %v5143 = vpop.f32.mrb[0].mxu0
      %v5144 = vadd.f32 0.0, %v5143
      %v5145 = vpop.f32.mrb[0].mxu0
      %v5146 = vpop.f32.mrb[0].mxu0
      %v5147 = vadd.f32 0.0, %v5146
      %v5148 = vpop.f32.mrb[0].mxu0
      %5149 = vmatprep.mubr.bf16.mxu0 0
      %5150 = vmatmul.mubr.bf16.gmra.mrb[0].mxu0 %v4922
      %v5151 = vpop.f32.mrb[0].mxu0
      %v5152 = vadd.f32 0.0, %v5151
      %v5153 = vpop.f32.mrb[0].mxu0
      %v5154 = vpop.f32.mrb[0].mxu0
      %v5155 = vadd.f32 0.0, %v5154
      %v5156 = vpop.f32.mrb[0].mxu0
      %5157 = vmatprep.mubr.bf16.mxu0 0
      %5158 = vmatmul.mubr.bf16.gmra.mrb[0].mxu0 %v4931
      %v5159 = vpop.f32.mrb[0].mxu0
      %v5160 = vadd.f32 0.0, %v5159
      %v5161 = vpop.f32.mrb[0].mxu0
      %v5162 = vpop.f32.mrb[0].mxu0
      %v5163 = vadd.f32 0.0, %v5162
      %v5164 = vpop.f32.mrb[0].mxu0
      %5165 = vmatprep.mubr.bf16.mxu0 0
      %5166 = vmatmul.mubr.bf16.gmra.mrb[0].mxu0 %v4940
      %v5167 = vpop.f32.mrb[0].mxu0
      %v5168 = vadd.f32 0.0, %v5167
      %v5169 = vpop.f32.mrb[0].mxu0
      %v5170 = vpop.f32.mrb[0].mxu0
      %v5171 = vadd.f32 0.0, %v5170
      %v5172 = vpop.f32.mrb[0].mxu0
      %5173 = vmatprep.mubr.bf16.mxu0 0
      %5174 = vmatmul.mubr.bf16.gmra.mrb[0].mxu0 %v4949
      %v5175 = vpop.f32.mrb[0].mxu0
      %v5176 = vadd.f32 0.0, %v5175
      %v5177 = vpop.f32.mrb[0].mxu0
      %v5178 = vpop.f32.mrb[0].mxu0
      %v5179 = vadd.f32 0.0, %v5178
      %v5180 = vpop.f32.mrb[0].mxu0
      %5181 = vmatprep.mubr.bf16.mxu0 0
      %5182 = vmatmul.mubr.bf16.gmra.mrb[0].mxu0 %v4958
      %v5183 = vpop.f32.mrb[0].mxu0
      %v5184 = vadd.f32 0.0, %v5183
      %v5185 = vpop.f32.mrb[0].mxu0
      %v5186 = vpop.f32.mrb[0].mxu0
      %v5187 = vadd.f32 0.0, %v5186
      %v5188 = vpop.f32.mrb[0].mxu0
      %5189 = vmatprep.mubr.bf16.mxu0 0
      %5190 = vmatmul.mubr.bf16.gmra.mrb[0].mxu0 %v4967
      %v5191 = vpop.f32.mrb[0].mxu0
      %v5192 = vadd.f32 0.0, %v5191
      %v5193 = vpop.f32.mrb[0].mxu0
      %v5194 = vpop.f32.mrb[0].mxu0
      %v5195 = vadd.f32 0.0, %v5194
      %v5196 = vpop.f32.mrb[0].mxu0
      %5197 = vmatprep.mubr.bf16.mxu0 0
      %5198 = vmatmul.mubr.bf16.gmra.mrb[0].mxu0 %v4976
      %v5199 = vpop.f32.mrb[0].mxu0
      %v5200 = vadd.f32 0.0, %v5199
      %v5201 = vpop.f32.mrb[0].mxu0
      %v5202 = vpop.f32.mrb[0].mxu0
      %v5203 = vadd.f32 0.0, %v5202
      %v5204 = vpop.f32.mrb[0].mxu0
      %5205 = vmatprep.mubr.bf16.mxu0 0
      %5206 = vmatmul.mubr.bf16.gmra.mrb[0].mxu0 %v4985
      %v5207 = vpop.f32.mrb[0].mxu0
      %v5208 = vadd.f32 0.0, %v5207
      %v5209 = vpop.f32.mrb[0].mxu0
      %v5210 = vpop.f32.mrb[0].mxu0
      %v5211 = vadd.f32 0.0, %v5210
      %v5212 = vpop.f32.mrb[0].mxu0
      %5213 = vmatprep.mubr.bf16.mxu0 0
      %5214 = vmatmul.mubr.bf16.gmra.mrb[0].mxu0 %v4994
      %v5215 = vpop.f32.mrb[0].mxu0
      %v5216 = vadd.f32 0.0, %v5215
      %v5217 = vpop.f32.mrb[0].mxu0
      %v5218 = vpop.f32.mrb[0].mxu0
      %v5219 = vadd.f32 0.0, %v5218
      %v5220 = vpop.f32.mrb[0].mxu0
      %5221 = vmatprep.mubr.bf16.mxu0 0
      %5222 = vmatmul.mubr.bf16.gmra.mrb[0].mxu0 %v5003
      %v5223 = vpop.f32.mrb[0].mxu0
      %v5224 = vadd.f32 0.0, %v5223
      %v5225 = vpop.f32.mrb[0].mxu0
      %v5226 = vpop.f32.mrb[0].mxu0
      %v5227 = vadd.f32 0.0, %v5226
      %v5228 = vpop.f32.mrb[0].mxu0
      %5229 = vmatprep.mubr.bf16.mxu0 0
      %5230 = vmatmul.mubr.bf16.gmra.mrb[0].mxu0 %v5012
      %v5231 = vpop.f32.mrb[0].mxu0
      %v5232 = vadd.f32 0.0, %v5231
      %v5233 = vpop.f32.mrb[0].mxu0
      %v5234 = vpop.f32.mrb[0].mxu0
      %v5235 = vadd.f32 0.0, %v5234
      %v5236 = vpop.f32.mrb[0].mxu0
      %5237 = vdwg.mxu0
      %v5238 = vadd.f32 %v4663, %v5112
      %v5239 = vadd.f32 %v4664, %v5115
      %v5240 = vadd.f32 %v4665, %v5120
      %v5241 = vadd.f32 %v4666, %v5123
      %v5242 = vadd.f32 %v4667, %v5128
      %v5243 = vadd.f32 %v4668, %v5131
      %v5244 = vadd.f32 %v4669, %v5136
      %v5245 = vadd.f32 %v4670, %v5139
      %v5246 = vadd.f32 %v4671, %v5144
      %v5247 = vadd.f32 %v4672, %v5147
      %v5248 = vadd.f32 %v4673, %v5152
      %v5249 = vadd.f32 %v4674, %v5155
      %v5250 = vadd.f32 %v4675, %v5160
      %v5251 = vadd.f32 %v4676, %v5163
      %v5252 = vadd.f32 %v4677, %v5168
      %v5253 = vadd.f32 %v4678, %v5171
      %v5254 = vadd.f32 %v4679, %v5176
      %v5255 = vadd.f32 %v4680, %v5179
      %v5256 = vadd.f32 %v4681, %v5184
      %v5257 = vadd.f32 %v4682, %v5187
      %v5258 = vadd.f32 %v4683, %v5192
      %v5259 = vadd.f32 %v4684, %v5195
      %v5260 = vadd.f32 %v4685, %v5200
      %v5261 = vadd.f32 %v4686, %v5203
      %v5262 = vadd.f32 %v4687, %v5208
      %v5263 = vadd.f32 %v4688, %v5211
      %v5264 = vadd.f32 %v4689, %v5216
      %v5265 = vadd.f32 %v4690, %v5219
      %v5266 = vadd.f32 %v4691, %v5224
      %v5267 = vadd.f32 %v4692, %v5227
      %v5268 = vadd.f32 %v4693, %v5232
      %v5269 = vadd.f32 %v4694, %v5235
      %s5270 = scalar_lea.vmem %s239, 448
      %v5271 = vld [vmem:[%s5270] sm:$0xf]
      %v5272 = vld [vmem:[%s5270 + $0x4] sm:$0xf]
      %v5273 = vld [vmem:[%s5270 + $0x8] sm:$0xf]
      %v5274 = vld [vmem:[%s5270 + $0xc] sm:$0xf]
      %v5275 = vld [vmem:[%s5270 + $0x10] sm:$0xf]
      %v5276 = vld [vmem:[%s5270 + $0x14] sm:$0xf]
      %v5277 = vld [vmem:[%s5270 + $0x18] sm:$0xf]
      %v5278 = vld [vmem:[%s5270 + $0x1c] sm:$0xf]
      %v5279 = vld [vmem:[%s5270 + $0x20] sm:$0xf]
      %v5280 = vld [vmem:[%s5270 + $0x24] sm:$0xf]
      %v5281 = vld [vmem:[%s5270 + $0x28] sm:$0xf]
      %v5282 = vld [vmem:[%s5270 + $0x2c] sm:$0xf]
      %v5283 = vld [vmem:[%s5270 + $0x30] sm:$0xf]
      %v5284 = vld [vmem:[%s5270 + $0x34] sm:$0xf]
      %v5285 = vld [vmem:[%s5270 + $0x38] sm:$0xf]
      %v5286 = vld [vmem:[%s5270 + $0x3c] sm:$0xf]
      %v5319 = vunpack.c.l.b16 %v4696
      %v5320 = vunpack.c.l.b16 %v4697
      %v5321 = vunpack.c.l.b16 %v4698
      %v5322 = vunpack.c.l.b16 %v4699
      %v5323 = vunpack.c.l.b16 %v4700
      %v5324 = vunpack.c.l.b16 %v4701
      %v5325 = vunpack.c.l.b16 %v4702
      %v5326 = vunpack.c.l.b16 %v4703
      %v5327 = vunpack.c.l.b16 %v4704
      %v5328 = vunpack.c.l.b16 %v4705
      %v5329 = vunpack.c.l.b16 %v4706
      %v5330 = vunpack.c.l.b16 %v4707
      %v5331 = vunpack.c.l.b16 %v4708
      %v5332 = vunpack.c.l.b16 %v4709
      %v5333 = vunpack.c.l.b16 %v4710
      %v5334 = vunpack.c.l.b16 %v4711
      %v5335 = vunpack.c.l.b16 %v4712
      %v5336 = vunpack.c.l.b16 %v4713
      %v5337 = vunpack.c.l.b16 %v4714
      %v5338 = vunpack.c.l.b16 %v4715
      %v5339 = vunpack.c.l.b16 %v4716
      %v5340 = vunpack.c.l.b16 %v4717
      %v5341 = vunpack.c.l.b16 %v4718
      %v5342 = vunpack.c.l.b16 %v4719
      %v5343 = vunpack.c.l.b16 %v4720
      %v5344 = vunpack.c.l.b16 %v4721
      %v5345 = vunpack.c.l.b16 %v4722
      %v5346 = vunpack.c.l.b16 %v4723
      %v5347 = vunpack.c.l.b16 %v4724
      %v5348 = vunpack.c.l.b16 %v4725
      %v5349 = vunpack.c.l.b16 %v4726
      %v5350 = vunpack.c.l.b16 %v4727
      %v5351 = vpack.c.b16 %v5320, %v5319
      %v5352 = vpack.c.b16 %v5322, %v5321
      %v5353 = vpack.c.b16 %v5324, %v5323
      %v5354 = vpack.c.b16 %v5326, %v5325
      %v5355 = vpack.c.b16 %v5328, %v5327
      %v5356 = vpack.c.b16 %v5330, %v5329
      %v5357 = vpack.c.b16 %v5332, %v5331
      %v5358 = vpack.c.b16 %v5334, %v5333
      %v5359 = vpack.c.b16 %v5336, %v5335
      %v5360 = vpack.c.b16 %v5338, %v5337
      %v5361 = vpack.c.b16 %v5340, %v5339
      %v5362 = vpack.c.b16 %v5342, %v5341
      %v5363 = vpack.c.b16 %v5344, %v5343
      %v5364 = vpack.c.b16 %v5346, %v5345
      %v5365 = vpack.c.b16 %v5348, %v5347
      %v5366 = vpack.c.b16 %v5350, %v5349
      %v5399 = vunpack.c.l.b16 %v5271
      %v5400 = vunpack.c.l.b16 %v5272
      %v5401 = vunpack.c.l.b16 %v5273
      %v5402 = vunpack.c.l.b16 %v5274
      %v5403 = vunpack.c.l.b16 %v5275
      %v5404 = vunpack.c.l.b16 %v5276
      %v5405 = vunpack.c.l.b16 %v5277
      %v5406 = vunpack.c.l.b16 %v5278
      %v5407 = vunpack.c.l.b16 %v5279
      %v5408 = vunpack.c.l.b16 %v5280
      %v5409 = vunpack.c.l.b16 %v5281
      %v5410 = vunpack.c.l.b16 %v5282
      %v5411 = vunpack.c.l.b16 %v5283
      %v5412 = vunpack.c.l.b16 %v5284
      %v5413 = vunpack.c.l.b16 %v5285
      %v5414 = vunpack.c.l.b16 %v5286
      %v5415 = vpack.c.b16 %v5400, %v5399
      %v5416 = vpack.c.b16 %v5402, %v5401
      %v5417 = vpack.c.b16 %v5404, %v5403
      %v5418 = vpack.c.b16 %v5406, %v5405
      %v5419 = vpack.c.b16 %v5408, %v5407
      %v5420 = vpack.c.b16 %v5410, %v5409
      %v5421 = vpack.c.b16 %v5412, %v5411
      %v5422 = vpack.c.b16 %v5414, %v5413
      %5431 = vmatprep.subr.bf16.mxu0 0
      %5432 = vmatpush1.bf16.msra.mxu0 %v5415
      %5433 = vmatprep.subr.bf16.mxu0 0
      %5434 = vmatpush1.bf16.msra.mxu0 %v5416
      %5435 = vmatprep.subr.bf16.mxu0 0
      %5436 = vmatpush1.bf16.msra.mxu0 %v5417
      %5437 = vmatprep.subr.bf16.mxu0 0
      %5438 = vmatpush1.bf16.msra.mxu0 %v5418
      %5439 = vmatprep.subr.bf16.mxu0 0
      %5440 = vmatpush1.bf16.msra.mxu0 %v5419
      %5441 = vmatprep.subr.bf16.mxu0 0
      %5442 = vmatpush1.bf16.msra.mxu0 %v5420
      %5443 = vmatprep.subr.bf16.mxu0 0
      %5444 = vmatpush1.bf16.msra.mxu0 %v5421
      %5445 = vmatprep.subr.bf16.mxu0 0
      %5446 = vmatpush1.bf16.msra.mxu0 %v5422
      %5447 = vmatprep.subr.bf16.mxu0 0
      %5448 = vmatpush1.bf16.msra.mxu0 0
      %5449 = vmatprep.subr.bf16.mxu0 0
      %5450 = vmatpush1.bf16.msra.mxu0 0
      %5451 = vmatprep.subr.bf16.mxu0 0
      %5452 = vmatpush1.bf16.msra.mxu0 0
      %5453 = vmatprep.subr.bf16.mxu0 0
      %5454 = vmatpush1.bf16.msra.mxu0 0
      %5455 = vmatprep.subr.bf16.mxu0 0
      %5456 = vmatpush1.bf16.msra.mxu0 0
      %5457 = vmatprep.subr.bf16.mxu0 0
      %5458 = vmatpush1.bf16.msra.mxu0 0
      %5459 = vmatprep.subr.bf16.mxu0 0
      %5460 = vmatpush1.bf16.msra.mxu0 0
      %5461 = vmatprep.subr.bf16.mxu0 0
      %5462 = vmatpush1.bf16.msra.mxu0 0
      %5463 = vmatprep.mubr.bf16.mxu0 0
      %5464 = vmatmul.mubr.bf16.gmra.mrb[0].mxu0 %v5351
      %v5465 = vpop.f32.mrb[0].mxu0
      %v5466 = vadd.f32 0.0, %v5465
      %v5467 = vpop.f32.mrb[0].mxu0
      %v5468 = vpop.f32.mrb[0].mxu0
      %v5469 = vadd.f32 0.0, %v5468
      %v5470 = vpop.f32.mrb[0].mxu0
      %5471 = vmatprep.mubr.bf16.mxu0 0
      %5472 = vmatmul.mubr.bf16.gmra.mrb[0].mxu0 %v5352
      %v5473 = vpop.f32.mrb[0].mxu0
      %v5474 = vadd.f32 0.0, %v5473
      %v5475 = vpop.f32.mrb[0].mxu0
      %v5476 = vpop.f32.mrb[0].mxu0
      %v5477 = vadd.f32 0.0, %v5476
      %v5478 = vpop.f32.mrb[0].mxu0
      %5479 = vmatprep.mubr.bf16.mxu0 0
      %5480 = vmatmul.mubr.bf16.gmra.mrb[0].mxu0 %v5353
      %v5481 = vpop.f32.mrb[0].mxu0
      %v5482 = vadd.f32 0.0, %v5481
      %v5483 = vpop.f32.mrb[0].mxu0
      %v5484 = vpop.f32.mrb[0].mxu0
      %v5485 = vadd.f32 0.0, %v5484
      %v5486 = vpop.f32.mrb[0].mxu0
      %5487 = vmatprep.mubr.bf16.mxu0 0
      %5488 = vmatmul.mubr.bf16.gmra.mrb[0].mxu0 %v5354
      %v5489 = vpop.f32.mrb[0].mxu0
      %v5490 = vadd.f32 0.0, %v5489
      %v5491 = vpop.f32.mrb[0].mxu0
      %v5492 = vpop.f32.mrb[0].mxu0
      %v5493 = vadd.f32 0.0, %v5492
      %v5494 = vpop.f32.mrb[0].mxu0
      %5495 = vmatprep.mubr.bf16.mxu0 0
      %5496 = vmatmul.mubr.bf16.gmra.mrb[0].mxu0 %v5355
      %v5497 = vpop.f32.mrb[0].mxu0
      %v5498 = vadd.f32 0.0, %v5497
      %v5499 = vpop.f32.mrb[0].mxu0
      %v5500 = vpop.f32.mrb[0].mxu0
      %v5501 = vadd.f32 0.0, %v5500
      %v5502 = vpop.f32.mrb[0].mxu0
      %5503 = vmatprep.mubr.bf16.mxu0 0
      %5504 = vmatmul.mubr.bf16.gmra.mrb[0].mxu0 %v5356
      %v5505 = vpop.f32.mrb[0].mxu0
      %v5506 = vadd.f32 0.0, %v5505
      %v5507 = vpop.f32.mrb[0].mxu0
      %v5508 = vpop.f32.mrb[0].mxu0
      %v5509 = vadd.f32 0.0, %v5508
      %v5510 = vpop.f32.mrb[0].mxu0
      %5511 = vmatprep.mubr.bf16.mxu0 0
      %5512 = vmatmul.mubr.bf16.gmra.mrb[0].mxu0 %v5357
      %v5513 = vpop.f32.mrb[0].mxu0
      %v5514 = vadd.f32 0.0, %v5513
      %v5515 = vpop.f32.mrb[0].mxu0
      %v5516 = vpop.f32.mrb[0].mxu0
      %v5517 = vadd.f32 0.0, %v5516
      %v5518 = vpop.f32.mrb[0].mxu0
      %5519 = vmatprep.mubr.bf16.mxu0 0
      %5520 = vmatmul.mubr.bf16.gmra.mrb[0].mxu0 %v5358
      %v5521 = vpop.f32.mrb[0].mxu0
      %v5522 = vadd.f32 0.0, %v5521
      %v5523 = vpop.f32.mrb[0].mxu0
      %v5524 = vpop.f32.mrb[0].mxu0
      %v5525 = vadd.f32 0.0, %v5524
      %v5526 = vpop.f32.mrb[0].mxu0
      %5527 = vmatprep.mubr.bf16.mxu0 0
      %5528 = vmatmul.mubr.bf16.gmra.mrb[0].mxu0 %v5359
      %v5529 = vpop.f32.mrb[0].mxu0
      %v5530 = vadd.f32 0.0, %v5529
      %v5531 = vpop.f32.mrb[0].mxu0
      %v5532 = vpop.f32.mrb[0].mxu0
      %v5533 = vadd.f32 0.0, %v5532
      %v5534 = vpop.f32.mrb[0].mxu0
      %5535 = vmatprep.mubr.bf16.mxu0 0
      %5536 = vmatmul.mubr.bf16.gmra.mrb[0].mxu0 %v5360
      %v5537 = vpop.f32.mrb[0].mxu0
      %v5538 = vadd.f32 0.0, %v5537
      %v5539 = vpop.f32.mrb[0].mxu0
      %v5540 = vpop.f32.mrb[0].mxu0
      %v5541 = vadd.f32 0.0, %v5540
      %v5542 = vpop.f32.mrb[0].mxu0
      %5543 = vmatprep.mubr.bf16.mxu0 0
      %5544 = vmatmul.mubr.bf16.gmra.mrb[0].mxu0 %v5361
      %v5545 = vpop.f32.mrb[0].mxu0
      %v5546 = vadd.f32 0.0, %v5545
      %v5547 = vpop.f32.mrb[0].mxu0
      %v5548 = vpop.f32.mrb[0].mxu0
      %v5549 = vadd.f32 0.0, %v5548
      %v5550 = vpop.f32.mrb[0].mxu0
      %5551 = vmatprep.mubr.bf16.mxu0 0
      %5552 = vmatmul.mubr.bf16.gmra.mrb[0].mxu0 %v5362
      %v5553 = vpop.f32.mrb[0].mxu0
      %v5554 = vadd.f32 0.0, %v5553
      %v5555 = vpop.f32.mrb[0].mxu0
      %v5556 = vpop.f32.mrb[0].mxu0
      %v5557 = vadd.f32 0.0, %v5556
      %v5558 = vpop.f32.mrb[0].mxu0
      %5559 = vmatprep.mubr.bf16.mxu0 0
      %5560 = vmatmul.mubr.bf16.gmra.mrb[0].mxu0 %v5363
      %v5561 = vpop.f32.mrb[0].mxu0
      %v5562 = vadd.f32 0.0, %v5561
      %v5563 = vpop.f32.mrb[0].mxu0
      %v5564 = vpop.f32.mrb[0].mxu0
      %v5565 = vadd.f32 0.0, %v5564
      %v5566 = vpop.f32.mrb[0].mxu0
      %5567 = vmatprep.mubr.bf16.mxu0 0
      %5568 = vmatmul.mubr.bf16.gmra.mrb[0].mxu0 %v5364
      %v5569 = vpop.f32.mrb[0].mxu0
      %v5570 = vadd.f32 0.0, %v5569
      %v5571 = vpop.f32.mrb[0].mxu0
      %v5572 = vpop.f32.mrb[0].mxu0
      %v5573 = vadd.f32 0.0, %v5572
      %v5574 = vpop.f32.mrb[0].mxu0
      %5575 = vmatprep.mubr.bf16.mxu0 0
      %5576 = vmatmul.mubr.bf16.gmra.mrb[0].mxu0 %v5365
      %v5577 = vpop.f32.mrb[0].mxu0
      %v5578 = vadd.f32 0.0, %v5577
      %v5579 = vpop.f32.mrb[0].mxu0
      %v5580 = vpop.f32.mrb[0].mxu0
      %v5581 = vadd.f32 0.0, %v5580
      %v5582 = vpop.f32.mrb[0].mxu0
      %5583 = vmatprep.mubr.bf16.mxu0 0
      %5584 = vmatmul.mubr.bf16.gmra.mrb[0].mxu0 %v5366
      %v5585 = vpop.f32.mrb[0].mxu0
      %v5586 = vadd.f32 0.0, %v5585
      %v5587 = vpop.f32.mrb[0].mxu0
      %v5588 = vpop.f32.mrb[0].mxu0
      %v5589 = vadd.f32 0.0, %v5588
      %v5590 = vpop.f32.mrb[0].mxu0
      %5591 = vdwg.mxu0
      %v5592 = vadd.f32 %v5238, %v5466
      %v5593 = vadd.f32 %v5239, %v5469
      %v5594 = vadd.f32 %v5240, %v5474
      %v5595 = vadd.f32 %v5241, %v5477
      %v5596 = vadd.f32 %v5242, %v5482
      %v5597 = vadd.f32 %v5243, %v5485
      %v5598 = vadd.f32 %v5244, %v5490
      %v5599 = vadd.f32 %v5245, %v5493
      %v5600 = vadd.f32 %v5246, %v5498
      %v5601 = vadd.f32 %v5247, %v5501
      %v5602 = vadd.f32 %v5248, %v5506
      %v5603 = vadd.f32 %v5249, %v5509
      %v5604 = vadd.f32 %v5250, %v5514
      %v5605 = vadd.f32 %v5251, %v5517
      %v5606 = vadd.f32 %v5252, %v5522
      %v5607 = vadd.f32 %v5253, %v5525
      %v5608 = vadd.f32 %v5254, %v5530
      %v5609 = vadd.f32 %v5255, %v5533
      %v5610 = vadd.f32 %v5256, %v5538
      %v5611 = vadd.f32 %v5257, %v5541
      %v5612 = vadd.f32 %v5258, %v5546
      %v5613 = vadd.f32 %v5259, %v5549
      %v5614 = vadd.f32 %v5260, %v5554
      %v5615 = vadd.f32 %v5261, %v5557
      %v5616 = vadd.f32 %v5262, %v5562
      %v5617 = vadd.f32 %v5263, %v5565
      %v5618 = vadd.f32 %v5264, %v5570
      %v5619 = vadd.f32 %v5265, %v5573
      %v5620 = vadd.f32 %v5266, %v5578
      %v5621 = vadd.f32 %v5267, %v5581
      %v5622 = vadd.f32 %v5268, %v5586
      %v5623 = vadd.f32 %v5269, %v5589
      %v5624 = vld [vmem:[#allocation2 + $0x18] sm:$0xf]
      %v5625 = vld [vmem:[#allocation2 + $0x1c] sm:$0xf]
      %v5626 = vld [vmem:[#allocation2 + $0x20] sm:$0xf]
      %v5627 = vld [vmem:[#allocation2 + $0x24] sm:$0xf]
      %v5628 = vld [vmem:[#allocation2 + $0x28] sm:$0xf]
      %v5629 = vld [vmem:[#allocation2 + $0x2c] sm:$0xf]
      %v5630 = vld [vmem:[#allocation2 + $0x30] sm:$0xf]
      %v5631 = vld [vmem:[#allocation2 + $0x34] sm:$0xf]
      %v5632 = vld [vmem:[#allocation2 + $0x38] sm:$0xf]
      %v5633 = vld [vmem:[#allocation2 + $0x3c] sm:$0xf]
      %v5634 = vld [vmem:[#allocation2 + $0x40] sm:$0xf]
      %v5635 = vld [vmem:[#allocation2 + $0x44] sm:$0xf]
      %v5636 = vld [vmem:[#allocation2 + $0x48] sm:$0xf]
      %v5637 = vld [vmem:[#allocation2 + $0x4c] sm:$0xf]
      %v5638 = vld [vmem:[#allocation2 + $0x50] sm:$0xf]
      %v5639 = vld [vmem:[#allocation2 + $0x54] sm:$0xf]
      %v5640 = vld [vmem:[#allocation2 + $0x58] sm:$0xf]
      %v5641 = vld [vmem:[#allocation2 + $0x5c] sm:$0xf]
      %v5642 = vld [vmem:[#allocation2 + $0x60] sm:$0xf]
      %v5643 = vld [vmem:[#allocation2 + $0x64] sm:$0xf]
      %v5644 = vld [vmem:[#allocation2 + $0x68] sm:$0xf]
      %v5645 = vld [vmem:[#allocation2 + $0x6c] sm:$0xf]
      %v5646 = vld [vmem:[#allocation2 + $0x70] sm:$0xf]
      %v5647 = vld [vmem:[#allocation2 + $0x74] sm:$0xf]
      %v5648 = vld [vmem:[#allocation2 + $0x78] sm:$0xf]
      %v5649 = vld [vmem:[#allocation2 + $0x7c] sm:$0xf]
      %v5650 = vld [vmem:[#allocation2 + $0x80] sm:$0xf]
      %v5651 = vld [vmem:[#allocation2 + $0x84] sm:$0xf]
      %v5652 = vld [vmem:[#allocation2 + $0x88] sm:$0xf]
      %v5653 = vld [vmem:[#allocation2 + $0x8c] sm:$0xf]
      %v5654 = vld [vmem:[#allocation2 + $0x90] sm:$0xf]
      %v5655 = vld [vmem:[#allocation2 + $0x94] sm:$0xf]
      %v5656 = vld [vmem:[#allocation2 + $0x98] sm:$0x1]
      %v5657 = vsel %vm2655, %v5624, 0
      %v5658 = vsel %vm2656, %v5625, 0
      %v5659 = vsel %vm2657, %v5626, 0
      %v5660 = vsel %vm2658, %v5627, 0
      %v5661 = vsel %vm2659, %v5628, 0
      %v5662 = vsel %vm2660, %v5629, 0
      %v5663 = vsel %vm2661, %v5630, 0
      %v5664 = vsel %vm2662, %v5631, 0
      %v5665 = vsel %vm2663, %v5632, 0
      %v5666 = vsel %vm2664, %v5633, 0
      %v5667 = vsel %vm2665, %v5634, 0
      %v5668 = vsel %vm2666, %v5635, 0
      %v5669 = vsel %vm2667, %v5636, 0
      %v5670 = vsel %vm2668, %v5637, 0
      %v5671 = vsel %vm2669, %v5638, 0
      %v5672 = vsel %vm2670, %v5639, 0
      %v5673 = vsel %vm2671, %v5640, 0
      %v5674 = vsel %vm2672, %v5641, 0
      %v5675 = vsel %vm2673, %v5642, 0
      %v5676 = vsel %vm2674, %v5643, 0
      %v5677 = vsel %vm2675, %v5644, 0
      %v5678 = vsel %vm2676, %v5645, 0
      %v5679 = vsel %vm2677, %v5646, 0
      %v5680 = vsel %vm2678, %v5647, 0
      %v5681 = vsel %vm2679, %v5648, 0
      %v5682 = vsel %vm2680, %v5649, 0
      %v5683 = vsel %vm2681, %v5650, 0
      %v5684 = vsel %vm2682, %v5651, 0
      %v5685 = vsel %vm2683, %v5652, 0
      %v5686 = vsel %vm2684, %v5653, 0
      %v5687 = vsel %vm2685, %v5654, 0
      %v5688 = vsel %vm2686, %v5655, 0
      %v5689 = vsel %vm2687, %v5656, 0
      %s5690 = scalar_lea.vmem %s239, 512
      %v5691 = vld [vmem:[%s5690] sm:$0xf]
      %v5692 = vld [vmem:[%s5690 + $0x4] sm:$0xf]
      %v5693 = vld [vmem:[%s5690 + $0x8] sm:$0xf]
      %v5694 = vld [vmem:[%s5690 + $0xc] sm:$0xf]
      %v5695 = vld [vmem:[%s5690 + $0x10] sm:$0xf]
      %v5696 = vld [vmem:[%s5690 + $0x14] sm:$0xf]
      %v5697 = vld [vmem:[%s5690 + $0x18] sm:$0xf]
      %v5698 = vld [vmem:[%s5690 + $0x1c] sm:$0xf]
      %v5699 = vld [vmem:[%s5690 + $0x20] sm:$0xf]
      %v5700 = vld [vmem:[%s5690 + $0x24] sm:$0xf]
      %v5701 = vld [vmem:[%s5690 + $0x28] sm:$0xf]
      %v5702 = vld [vmem:[%s5690 + $0x2c] sm:$0xf]
      %v5703 = vld [vmem:[%s5690 + $0x30] sm:$0xf]
      %v5704 = vld [vmem:[%s5690 + $0x34] sm:$0xf]
      %v5705 = vld [vmem:[%s5690 + $0x38] sm:$0xf]
      %v5706 = vld [vmem:[%s5690 + $0x3c] sm:$0xf]
      %v5740 = vunpack.c.l.b16 %v5657
      %v5741 = vunpack.c.l.b16 %v5658
      %v5742 = vunpack.c.l.b16 %v5659
      %v5743 = vunpack.c.l.b16 %v5660
      %v5744 = vunpack.c.l.b16 %v5661
      %v5745 = vunpack.c.l.b16 %v5662
      %v5746 = vunpack.c.l.b16 %v5663
      %v5747 = vunpack.c.l.b16 %v5664
      %v5748 = vunpack.c.l.b16 %v5665
      %v5749 = vunpack.c.l.b16 %v5666
      %v5750 = vunpack.c.l.b16 %v5667
      %v5751 = vunpack.c.l.b16 %v5668
      %v5752 = vunpack.c.l.b16 %v5669
      %v5753 = vunpack.c.l.b16 %v5670
      %v5754 = vunpack.c.l.b16 %v5671
      %v5755 = vunpack.c.l.b16 %v5672
      %v5756 = vunpack.c.l.b16 %v5673
      %v5757 = vunpack.c.l.b16 %v5674
      %v5758 = vunpack.c.l.b16 %v5675
      %v5759 = vunpack.c.l.b16 %v5676
      %v5760 = vunpack.c.l.b16 %v5677
      %v5761 = vunpack.c.l.b16 %v5678
      %v5762 = vunpack.c.l.b16 %v5679
      %v5763 = vunpack.c.l.b16 %v5680
      %v5764 = vunpack.c.l.b16 %v5681
      %v5765 = vunpack.c.l.b16 %v5682
      %v5766 = vunpack.c.l.b16 %v5683
      %v5767 = vunpack.c.l.b16 %v5684
      %v5768 = vunpack.c.l.b16 %v5685
      %v5769 = vunpack.c.l.b16 %v5686
      %v5770 = vunpack.c.l.b16 %v5687
      %v5771 = vunpack.c.l.b16 %v5688
      %v5772 = vunpack.c.l.b16 %v5689
      %v5773 = vpack.c.b16 %v5741, %v5740
      %v5774 = vpack.c.b16 %v5743, %v5742
      %v5775 = vpack.c.b16 %v5745, %v5744
      %v5776 = vpack.c.b16 %v5747, %v5746
      %v5777 = vpack.c.b16 %v5749, %v5748
      %v5778 = vpack.c.b16 %v5751, %v5750
      %v5779 = vpack.c.b16 %v5753, %v5752
      %v5780 = vpack.c.b16 %v5755, %v5754
      %v5781 = vpack.c.b16 %v5757, %v5756
      %v5782 = vpack.c.b16 %v5759, %v5758
      %v5783 = vpack.c.b16 %v5761, %v5760
      %v5784 = vpack.c.b16 %v5763, %v5762
      %v5785 = vpack.c.b16 %v5765, %v5764
      %v5786 = vpack.c.b16 %v5767, %v5766
      %v5787 = vpack.c.b16 %v5769, %v5768
      %v5788 = vpack.c.b16 %v5771, %v5770
      %v5789 = vpack.c.b16 %v5772, %v5772
      %v5791 = vshrl.u32 %v5773, 16
      %v5793 = vshll.u32 %v5773, 16
      %v5795 = vrot.slane %v5793, 1
      %v5796 = vor.u32 %v5791, %v5795
      %v5798 = vshll.u32 %v5774, 16
      %v5800 = vrot.slane %v5798, 1
      %v5801 = vsel %vm2821, %v5796, %v5800
      %v5802 = vshrl.u32 %v5774, 16
      %v5804 = vor.u32 %v5802, %v5800
      %v5806 = vshll.u32 %v5775, 16
      %v5808 = vrot.slane %v5806, 1
      %v5809 = vsel %vm2821, %v5804, %v5808
      %v5810 = vshrl.u32 %v5775, 16
      %v5812 = vor.u32 %v5810, %v5808
      %v5814 = vshll.u32 %v5776, 16
      %v5816 = vrot.slane %v5814, 1
      %v5817 = vsel %vm2821, %v5812, %v5816
      %v5818 = vshrl.u32 %v5776, 16
      %v5820 = vor.u32 %v5818, %v5816
      %v5822 = vshll.u32 %v5777, 16
      %v5824 = vrot.slane %v5822, 1
      %v5825 = vsel %vm2821, %v5820, %v5824
      %v5826 = vshrl.u32 %v5777, 16
      %v5828 = vor.u32 %v5826, %v5824
      %v5830 = vshll.u32 %v5778, 16
      %v5832 = vrot.slane %v5830, 1
      %v5833 = vsel %vm2821, %v5828, %v5832
      %v5834 = vshrl.u32 %v5778, 16
      %v5836 = vor.u32 %v5834, %v5832
      %v5838 = vshll.u32 %v5779, 16
      %v5840 = vrot.slane %v5838, 1
      %v5841 = vsel %vm2821, %v5836, %v5840
      %v5842 = vshrl.u32 %v5779, 16
      %v5844 = vor.u32 %v5842, %v5840
      %v5846 = vshll.u32 %v5780, 16
      %v5848 = vrot.slane %v5846, 1
      %v5849 = vsel %vm2821, %v5844, %v5848
      %v5850 = vshrl.u32 %v5780, 16
      %v5852 = vor.u32 %v5850, %v5848
      %v5854 = vshll.u32 %v5781, 16
      %v5856 = vrot.slane %v5854, 1
      %v5857 = vsel %vm2821, %v5852, %v5856
      %v5858 = vshrl.u32 %v5781, 16
      %v5860 = vor.u32 %v5858, %v5856
      %v5862 = vshll.u32 %v5782, 16
      %v5864 = vrot.slane %v5862, 1
      %v5865 = vsel %vm2821, %v5860, %v5864
      %v5866 = vshrl.u32 %v5782, 16
      %v5868 = vor.u32 %v5866, %v5864
      %v5870 = vshll.u32 %v5783, 16
      %v5872 = vrot.slane %v5870, 1
      %v5873 = vsel %vm2821, %v5868, %v5872
      %v5874 = vshrl.u32 %v5783, 16
      %v5876 = vor.u32 %v5874, %v5872
      %v5878 = vshll.u32 %v5784, 16
      %v5880 = vrot.slane %v5878, 1
      %v5881 = vsel %vm2821, %v5876, %v5880
      %v5882 = vshrl.u32 %v5784, 16
      %v5884 = vor.u32 %v5882, %v5880
      %v5886 = vshll.u32 %v5785, 16
      %v5888 = vrot.slane %v5886, 1
      %v5889 = vsel %vm2821, %v5884, %v5888
      %v5890 = vshrl.u32 %v5785, 16
      %v5892 = vor.u32 %v5890, %v5888
      %v5894 = vshll.u32 %v5786, 16
      %v5896 = vrot.slane %v5894, 1
      %v5897 = vsel %vm2821, %v5892, %v5896
      %v5898 = vshrl.u32 %v5786, 16
      %v5900 = vor.u32 %v5898, %v5896
      %v5902 = vshll.u32 %v5787, 16
      %v5904 = vrot.slane %v5902, 1
      %v5905 = vsel %vm2821, %v5900, %v5904
      %v5906 = vshrl.u32 %v5787, 16
      %v5908 = vor.u32 %v5906, %v5904
      %v5910 = vshll.u32 %v5788, 16
      %v5912 = vrot.slane %v5910, 1
      %v5913 = vsel %vm2821, %v5908, %v5912
      %v5914 = vshrl.u32 %v5788, 16
      %v5916 = vor.u32 %v5914, %v5912
      %v5918 = vshll.u32 %v5789, 16
      %v5920 = vrot.slane %v5918, 1
      %v5921 = vsel %vm2821, %v5916, %v5920
      %v5954 = vunpack.c.l.b16 %v5691
      %v5955 = vunpack.c.l.b16 %v5692
      %v5956 = vunpack.c.l.b16 %v5693
      %v5957 = vunpack.c.l.b16 %v5694
      %v5958 = vunpack.c.l.b16 %v5695
      %v5959 = vunpack.c.l.b16 %v5696
      %v5960 = vunpack.c.l.b16 %v5697
      %v5961 = vunpack.c.l.b16 %v5698
      %v5962 = vunpack.c.l.b16 %v5699
      %v5963 = vunpack.c.l.b16 %v5700
      %v5964 = vunpack.c.l.b16 %v5701
      %v5965 = vunpack.c.l.b16 %v5702
      %v5966 = vunpack.c.l.b16 %v5703
      %v5967 = vunpack.c.l.b16 %v5704
      %v5968 = vunpack.c.l.b16 %v5705
      %v5969 = vunpack.c.l.b16 %v5706
      %v5970 = vpack.c.b16 %v5955, %v5954
      %v5971 = vpack.c.b16 %v5957, %v5956
      %v5972 = vpack.c.b16 %v5959, %v5958
      %v5973 = vpack.c.b16 %v5961, %v5960
      %v5974 = vpack.c.b16 %v5963, %v5962
      %v5975 = vpack.c.b16 %v5965, %v5964
      %v5976 = vpack.c.b16 %v5967, %v5966
      %v5977 = vpack.c.b16 %v5969, %v5968
      %5986 = vmatprep.subr.bf16.mxu0 0
      %5987 = vmatpush1.bf16.msra.mxu0 %v5970
      %5988 = vmatprep.subr.bf16.mxu0 0
      %5989 = vmatpush1.bf16.msra.mxu0 %v5971
      %5990 = vmatprep.subr.bf16.mxu0 0
      %5991 = vmatpush1.bf16.msra.mxu0 %v5972
      %5992 = vmatprep.subr.bf16.mxu0 0
      %5993 = vmatpush1.bf16.msra.mxu0 %v5973
      %5994 = vmatprep.subr.bf16.mxu0 0
      %5995 = vmatpush1.bf16.msra.mxu0 %v5974
      %5996 = vmatprep.subr.bf16.mxu0 0
      %5997 = vmatpush1.bf16.msra.mxu0 %v5975
      %5998 = vmatprep.subr.bf16.mxu0 0
      %5999 = vmatpush1.bf16.msra.mxu0 %v5976
      %6000 = vmatprep.subr.bf16.mxu0 0
      %6001 = vmatpush1.bf16.msra.mxu0 %v5977
      %6002 = vmatprep.subr.bf16.mxu0 0
      %6003 = vmatpush1.bf16.msra.mxu0 0
      %6004 = vmatprep.subr.bf16.mxu0 0
      %6005 = vmatpush1.bf16.msra.mxu0 0
      %6006 = vmatprep.subr.bf16.mxu0 0
      %6007 = vmatpush1.bf16.msra.mxu0 0
      %6008 = vmatprep.subr.bf16.mxu0 0
      %6009 = vmatpush1.bf16.msra.mxu0 0
      %6010 = vmatprep.subr.bf16.mxu0 0
      %6011 = vmatpush1.bf16.msra.mxu0 0
      %6012 = vmatprep.subr.bf16.mxu0 0
      %6013 = vmatpush1.bf16.msra.mxu0 0
      %6014 = vmatprep.subr.bf16.mxu0 0
      %6015 = vmatpush1.bf16.msra.mxu0 0
      %6016 = vmatprep.subr.bf16.mxu0 0
      %6017 = vmatpush1.bf16.msra.mxu0 0
      %6018 = vmatprep.mubr.bf16.mxu0 0
      %6019 = vmatmul.mubr.bf16.gmra.mrb[0].mxu0 %v5801
      %v6020 = vpop.f32.mrb[0].mxu0
      %v6021 = vadd.f32 0.0, %v6020
      %v6022 = vpop.f32.mrb[0].mxu0
      %v6023 = vpop.f32.mrb[0].mxu0
      %v6024 = vadd.f32 0.0, %v6023
      %v6025 = vpop.f32.mrb[0].mxu0
      %6026 = vmatprep.mubr.bf16.mxu0 0
      %6027 = vmatmul.mubr.bf16.gmra.mrb[0].mxu0 %v5809
      %v6028 = vpop.f32.mrb[0].mxu0
      %v6029 = vadd.f32 0.0, %v6028
      %v6030 = vpop.f32.mrb[0].mxu0
      %v6031 = vpop.f32.mrb[0].mxu0
      %v6032 = vadd.f32 0.0, %v6031
      %v6033 = vpop.f32.mrb[0].mxu0
      %6034 = vmatprep.mubr.bf16.mxu0 0
      %6035 = vmatmul.mubr.bf16.gmra.mrb[0].mxu0 %v5817
      %v6036 = vpop.f32.mrb[0].mxu0
      %v6037 = vadd.f32 0.0, %v6036
      %v6038 = vpop.f32.mrb[0].mxu0
      %v6039 = vpop.f32.mrb[0].mxu0
      %v6040 = vadd.f32 0.0, %v6039
      %v6041 = vpop.f32.mrb[0].mxu0
      %6042 = vmatprep.mubr.bf16.mxu0 0
      %6043 = vmatmul.mubr.bf16.gmra.mrb[0].mxu0 %v5825
      %v6044 = vpop.f32.mrb[0].mxu0
      %v6045 = vadd.f32 0.0, %v6044
      %v6046 = vpop.f32.mrb[0].mxu0
      %v6047 = vpop.f32.mrb[0].mxu0
      %v6048 = vadd.f32 0.0, %v6047
      %v6049 = vpop.f32.mrb[0].mxu0
      %6050 = vmatprep.mubr.bf16.mxu0 0
      %6051 = vmatmul.mubr.bf16.gmra.mrb[0].mxu0 %v5833
      %v6052 = vpop.f32.mrb[0].mxu0
      %v6053 = vadd.f32 0.0, %v6052
      %v6054 = vpop.f32.mrb[0].mxu0
      %v6055 = vpop.f32.mrb[0].mxu0
      %v6056 = vadd.f32 0.0, %v6055
      %v6057 = vpop.f32.mrb[0].mxu0
      %6058 = vmatprep.mubr.bf16.mxu0 0
      %6059 = vmatmul.mubr.bf16.gmra.mrb[0].mxu0 %v5841
      %v6060 = vpop.f32.mrb[0].mxu0
      %v6061 = vadd.f32 0.0, %v6060
      %v6062 = vpop.f32.mrb[0].mxu0
      %v6063 = vpop.f32.mrb[0].mxu0
      %v6064 = vadd.f32 0.0, %v6063
      %v6065 = vpop.f32.mrb[0].mxu0
      %6066 = vmatprep.mubr.bf16.mxu0 0
      %6067 = vmatmul.mubr.bf16.gmra.mrb[0].mxu0 %v5849
      %v6068 = vpop.f32.mrb[0].mxu0
      %v6069 = vadd.f32 0.0, %v6068
      %v6070 = vpop.f32.mrb[0].mxu0
      %v6071 = vpop.f32.mrb[0].mxu0
      %v6072 = vadd.f32 0.0, %v6071
      %v6073 = vpop.f32.mrb[0].mxu0
      %6074 = vmatprep.mubr.bf16.mxu0 0
      %6075 = vmatmul.mubr.bf16.gmra.mrb[0].mxu0 %v5857
      %v6076 = vpop.f32.mrb[0].mxu0
      %v6077 = vadd.f32 0.0, %v6076
      %v6078 = vpop.f32.mrb[0].mxu0
      %v6079 = vpop.f32.mrb[0].mxu0
      %v6080 = vadd.f32 0.0, %v6079
      %v6081 = vpop.f32.mrb[0].mxu0
      %6082 = vmatprep.mubr.bf16.mxu0 0
      %6083 = vmatmul.mubr.bf16.gmra.mrb[0].mxu0 %v5865
      %v6084 = vpop.f32.mrb[0].mxu0
      %v6085 = vadd.f32 0.0, %v6084
      %v6086 = vpop.f32.mrb[0].mxu0
      %v6087 = vpop.f32.mrb[0].mxu0
      %v6088 = vadd.f32 0.0, %v6087
      %v6089 = vpop.f32.mrb[0].mxu0
      %6090 = vmatprep.mubr.bf16.mxu0 0
      %6091 = vmatmul.mubr.bf16.gmra.mrb[0].mxu0 %v5873
      %v6092 = vpop.f32.mrb[0].mxu0
      %v6093 = vadd.f32 0.0, %v6092
      %v6094 = vpop.f32.mrb[0].mxu0
      %v6095 = vpop.f32.mrb[0].mxu0
      %v6096 = vadd.f32 0.0, %v6095
      %v6097 = vpop.f32.mrb[0].mxu0
      %6098 = vmatprep.mubr.bf16.mxu0 0
      %6099 = vmatmul.mubr.bf16.gmra.mrb[0].mxu0 %v5881
      %v6100 = vpop.f32.mrb[0].mxu0
      %v6101 = vadd.f32 0.0, %v6100
      %v6102 = vpop.f32.mrb[0].mxu0
      %v6103 = vpop.f32.mrb[0].mxu0
      %v6104 = vadd.f32 0.0, %v6103
      %v6105 = vpop.f32.mrb[0].mxu0
      %6106 = vmatprep.mubr.bf16.mxu0 0
      %6107 = vmatmul.mubr.bf16.gmra.mrb[0].mxu0 %v5889
      %v6108 = vpop.f32.mrb[0].mxu0
      %v6109 = vadd.f32 0.0, %v6108
      %v6110 = vpop.f32.mrb[0].mxu0
      %v6111 = vpop.f32.mrb[0].mxu0
      %v6112 = vadd.f32 0.0, %v6111
      %v6113 = vpop.f32.mrb[0].mxu0
      %6114 = vmatprep.mubr.bf16.mxu0 0
      %6115 = vmatmul.mubr.bf16.gmra.mrb[0].mxu0 %v5897
      %v6116 = vpop.f32.mrb[0].mxu0
      %v6117 = vadd.f32 0.0, %v6116
      %v6118 = vpop.f32.mrb[0].mxu0
      %v6119 = vpop.f32.mrb[0].mxu0
      %v6120 = vadd.f32 0.0, %v6119
      %v6121 = vpop.f32.mrb[0].mxu0
      %6122 = vmatprep.mubr.bf16.mxu0 0
      %6123 = vmatmul.mubr.bf16.gmra.mrb[0].mxu0 %v5905
      %v6124 = vpop.f32.mrb[0].mxu0
      %v6125 = vadd.f32 0.0, %v6124
      %v6126 = vpop.f32.mrb[0].mxu0
      %v6127 = vpop.f32.mrb[0].mxu0
      %v6128 = vadd.f32 0.0, %v6127
      %v6129 = vpop.f32.mrb[0].mxu0
      %6130 = vmatprep.mubr.bf16.mxu0 0
      %6131 = vmatmul.mubr.bf16.gmra.mrb[0].mxu0 %v5913
      %v6132 = vpop.f32.mrb[0].mxu0
      %v6133 = vadd.f32 0.0, %v6132
      %v6134 = vpop.f32.mrb[0].mxu0
      %v6135 = vpop.f32.mrb[0].mxu0
      %v6136 = vadd.f32 0.0, %v6135
      %v6137 = vpop.f32.mrb[0].mxu0
      %6138 = vmatprep.mubr.bf16.mxu0 0
      %6139 = vmatmul.mubr.bf16.gmra.mrb[0].mxu0 %v5921
      %v6140 = vpop.f32.mrb[0].mxu0
      %v6141 = vadd.f32 0.0, %v6140
      %v6142 = vpop.f32.mrb[0].mxu0
      %v6143 = vpop.f32.mrb[0].mxu0
      %v6144 = vadd.f32 0.0, %v6143
      %v6145 = vpop.f32.mrb[0].mxu0
      %6146 = vdwg.mxu0
      %v6147 = vadd.f32 %v5592, %v6021
      %v6148 = vadd.f32 %v5593, %v6024
      %v6149 = vadd.f32 %v5594, %v6029
      %v6150 = vadd.f32 %v5595, %v6032
      %v6151 = vadd.f32 %v5596, %v6037
      %v6152 = vadd.f32 %v5597, %v6040
      %v6153 = vadd.f32 %v5598, %v6045
      %v6154 = vadd.f32 %v5599, %v6048
      %v6155 = vadd.f32 %v5600, %v6053
      %v6156 = vadd.f32 %v5601, %v6056
      %v6157 = vadd.f32 %v5602, %v6061
      %v6158 = vadd.f32 %v5603, %v6064
      %v6159 = vadd.f32 %v5604, %v6069
      %v6160 = vadd.f32 %v5605, %v6072
      %v6161 = vadd.f32 %v5606, %v6077
      %v6162 = vadd.f32 %v5607, %v6080
      %v6163 = vadd.f32 %v5608, %v6085
      %v6164 = vadd.f32 %v5609, %v6088
      %v6165 = vadd.f32 %v5610, %v6093
      %v6166 = vadd.f32 %v5611, %v6096
      %v6167 = vadd.f32 %v5612, %v6101
      %v6168 = vadd.f32 %v5613, %v6104
      %v6169 = vadd.f32 %v5614, %v6109
      %v6170 = vadd.f32 %v5615, %v6112
      %v6171 = vadd.f32 %v5616, %v6117
      %v6172 = vadd.f32 %v5617, %v6120
      %v6173 = vadd.f32 %v5618, %v6125
      %v6174 = vadd.f32 %v5619, %v6128
      %v6175 = vadd.f32 %v5620, %v6133
      %v6176 = vadd.f32 %v5621, %v6136
      %v6177 = vadd.f32 %v5622, %v6141
      %v6178 = vadd.f32 %v5623, %v6144
      %v6179 = vmax.f32 %v6147, 0.0
      %v6180 = vmax.f32 %v6148, 0.0
      %v6181 = vmax.f32 %v6149, 0.0
      %v6182 = vmax.f32 %v6150, 0.0
      %v6183 = vmax.f32 %v6151, 0.0
      %v6184 = vmax.f32 %v6152, 0.0
      %v6185 = vmax.f32 %v6153, 0.0
      %v6186 = vmax.f32 %v6154, 0.0
      %v6187 = vmax.f32 %v6155, 0.0
      %v6188 = vmax.f32 %v6156, 0.0
      %v6189 = vmax.f32 %v6157, 0.0
      %v6190 = vmax.f32 %v6158, 0.0
      %v6191 = vmax.f32 %v6159, 0.0
      %v6192 = vmax.f32 %v6160, 0.0
      %v6193 = vmax.f32 %v6161, 0.0
      %v6194 = vmax.f32 %v6162, 0.0
      %v6195 = vmax.f32 %v6163, 0.0
      %v6196 = vmax.f32 %v6164, 0.0
      %v6197 = vmax.f32 %v6165, 0.0
      %v6198 = vmax.f32 %v6166, 0.0
      %v6199 = vmax.f32 %v6167, 0.0
      %v6200 = vmax.f32 %v6168, 0.0
      %v6201 = vmax.f32 %v6169, 0.0
      %v6202 = vmax.f32 %v6170, 0.0
      %v6203 = vmax.f32 %v6171, 0.0
      %v6204 = vmax.f32 %v6172, 0.0
      %v6205 = vmax.f32 %v6173, 0.0
      %v6206 = vmax.f32 %v6174, 0.0
      %v6207 = vmax.f32 %v6175, 0.0
      %v6208 = vmax.f32 %v6176, 0.0
      %v6209 = vmax.f32 %v6177, 0.0
      %v6210 = vmax.f32 %v6178, 0.0
      %v6211 = vpack.c.bf16 %v6180, %v6179
      %v6212 = vpack.c.bf16 %v6182, %v6181
      %v6213 = vpack.c.bf16 %v6184, %v6183
      %v6214 = vpack.c.bf16 %v6186, %v6185
      %v6215 = vpack.c.bf16 %v6188, %v6187
      %v6216 = vpack.c.bf16 %v6190, %v6189
      %v6217 = vpack.c.bf16 %v6192, %v6191
      %v6218 = vpack.c.bf16 %v6194, %v6193
      %v6219 = vpack.c.bf16 %v6196, %v6195
      %v6220 = vpack.c.bf16 %v6198, %v6197
      %v6221 = vpack.c.bf16 %v6200, %v6199
      %v6222 = vpack.c.bf16 %v6202, %v6201
      %v6223 = vpack.c.bf16 %v6204, %v6203
      %v6224 = vpack.c.bf16 %v6206, %v6205
      %v6225 = vpack.c.bf16 %v6208, %v6207
      %v6226 = vpack.c.bf16 %v6210, %v6209
      %v6243 = vunpack.c.l.b16 %v552
      %v6244 = vunpack.c.l.b16 %v553
      %v6245 = vunpack.c.l.b16 %v554
      %v6246 = vunpack.c.l.b16 %v555
      %v6247 = vunpack.c.l.b16 %v556
      %v6248 = vunpack.c.l.b16 %v557
      %v6249 = vunpack.c.l.b16 %v558
      %v6250 = vunpack.c.l.b16 %v559
      %v6251 = vunpack.c.l.b16 %v560
      %v6252 = vunpack.c.l.b16 %v561
      %v6253 = vunpack.c.l.b16 %v562
      %v6254 = vunpack.c.l.b16 %v563
      %v6255 = vunpack.c.l.b16 %v564
      %v6256 = vunpack.c.l.b16 %v565
      %v6257 = vunpack.c.l.b16 %v566
      %v6258 = vunpack.c.l.b16 %v567
      %v6259 = vpack.c.b16 %v6244, %v6243
      %v6260 = vpack.c.b16 %v6246, %v6245
      %v6261 = vpack.c.b16 %v6248, %v6247
      %v6262 = vpack.c.b16 %v6250, %v6249
      %v6263 = vpack.c.b16 %v6252, %v6251
      %v6264 = vpack.c.b16 %v6254, %v6253
      %v6265 = vpack.c.b16 %v6256, %v6255
      %v6266 = vpack.c.b16 %v6258, %v6257
      %6275 = vmatprep.subr.bf16.mxu0 0
      %6276 = vmatpush1.bf16.msra.mxu0 %v6259
      %6277 = vmatprep.subr.bf16.mxu0 0
      %6278 = vmatpush1.bf16.msra.mxu0 %v6260
      %6279 = vmatprep.subr.bf16.mxu0 0
      %6280 = vmatpush1.bf16.msra.mxu0 %v6261
      %6281 = vmatprep.subr.bf16.mxu0 0
      %6282 = vmatpush1.bf16.msra.mxu0 %v6262
      %6283 = vmatprep.subr.bf16.mxu0 0
      %6284 = vmatpush1.bf16.msra.mxu0 %v6263
      %6285 = vmatprep.subr.bf16.mxu0 0
      %6286 = vmatpush1.bf16.msra.mxu0 %v6264
      %6287 = vmatprep.subr.bf16.mxu0 0
      %6288 = vmatpush1.bf16.msra.mxu0 %v6265
      %6289 = vmatprep.subr.bf16.mxu0 0
      %6290 = vmatpush1.bf16.msra.mxu0 %v6266
      %6291 = vmatprep.subr.bf16.mxu0 0
      %6292 = vmatpush1.bf16.msra.mxu0 0
      %6293 = vmatprep.subr.bf16.mxu0 0
      %6294 = vmatpush1.bf16.msra.mxu0 0
      %6295 = vmatprep.subr.bf16.mxu0 0
      %6296 = vmatpush1.bf16.msra.mxu0 0
      %6297 = vmatprep.subr.bf16.mxu0 0
      %6298 = vmatpush1.bf16.msra.mxu0 0
      %6299 = vmatprep.subr.bf16.mxu0 0
      %6300 = vmatpush1.bf16.msra.mxu0 0
      %6301 = vmatprep.subr.bf16.mxu0 0
      %6302 = vmatpush1.bf16.msra.mxu0 0
      %6303 = vmatprep.subr.bf16.mxu0 0
      %6304 = vmatpush1.bf16.msra.mxu0 0
      %6305 = vmatprep.subr.bf16.mxu0 0
      %6306 = vmatpush1.bf16.msra.mxu0 0
      %6307 = vmatprep.mubr.bf16.mxu0 0
      %6308 = vmatmul.mubr.bf16.gmra.mrb[0].mxu0 %v6211
      %v6309 = vpop.f32.mrb[0].mxu0
      %v6310 = vadd.f32 0.0, %v6309
      %v6311 = vpop.f32.mrb[0].mxu0
      %v6312 = vpop.f32.mrb[0].mxu0
      %v6313 = vadd.f32 0.0, %v6312
      %v6314 = vpop.f32.mrb[0].mxu0
      %6315 = vmatprep.mubr.bf16.mxu0 0
      %6316 = vmatmul.mubr.bf16.gmra.mrb[0].mxu0 %v6212
      %v6317 = vpop.f32.mrb[0].mxu0
      %v6318 = vadd.f32 0.0, %v6317
      %v6319 = vpop.f32.mrb[0].mxu0
      %v6320 = vpop.f32.mrb[0].mxu0
      %v6321 = vadd.f32 0.0, %v6320
      %v6322 = vpop.f32.mrb[0].mxu0
      %6323 = vmatprep.mubr.bf16.mxu0 0
      %6324 = vmatmul.mubr.bf16.gmra.mrb[0].mxu0 %v6213
      %v6325 = vpop.f32.mrb[0].mxu0
      %v6326 = vadd.f32 0.0, %v6325
      %v6327 = vpop.f32.mrb[0].mxu0
      %v6328 = vpop.f32.mrb[0].mxu0
      %v6329 = vadd.f32 0.0, %v6328
      %v6330 = vpop.f32.mrb[0].mxu0
      %6331 = vmatprep.mubr.bf16.mxu0 0
      %6332 = vmatmul.mubr.bf16.gmra.mrb[0].mxu0 %v6214
      %v6333 = vpop.f32.mrb[0].mxu0
      %v6334 = vadd.f32 0.0, %v6333
      %v6335 = vpop.f32.mrb[0].mxu0
      %v6336 = vpop.f32.mrb[0].mxu0
      %v6337 = vadd.f32 0.0, %v6336
      %v6338 = vpop.f32.mrb[0].mxu0
      %6339 = vmatprep.mubr.bf16.mxu0 0
      %6340 = vmatmul.mubr.bf16.gmra.mrb[0].mxu0 %v6215
      %v6341 = vpop.f32.mrb[0].mxu0
      %v6342 = vadd.f32 0.0, %v6341
      %v6343 = vpop.f32.mrb[0].mxu0
      %v6344 = vpop.f32.mrb[0].mxu0
      %v6345 = vadd.f32 0.0, %v6344
      %v6346 = vpop.f32.mrb[0].mxu0
      %6347 = vmatprep.mubr.bf16.mxu0 0
      %6348 = vmatmul.mubr.bf16.gmra.mrb[0].mxu0 %v6216
      %v6349 = vpop.f32.mrb[0].mxu0
      %v6350 = vadd.f32 0.0, %v6349
      %v6351 = vpop.f32.mrb[0].mxu0
      %v6352 = vpop.f32.mrb[0].mxu0
      %v6353 = vadd.f32 0.0, %v6352
      %v6354 = vpop.f32.mrb[0].mxu0
      %6355 = vmatprep.mubr.bf16.mxu0 0
      %6356 = vmatmul.mubr.bf16.gmra.mrb[0].mxu0 %v6217
      %v6357 = vpop.f32.mrb[0].mxu0
      %v6358 = vadd.f32 0.0, %v6357
      %v6359 = vpop.f32.mrb[0].mxu0
      %v6360 = vpop.f32.mrb[0].mxu0
      %v6361 = vadd.f32 0.0, %v6360
      %v6362 = vpop.f32.mrb[0].mxu0
      %6363 = vmatprep.mubr.bf16.mxu0 0
      %6364 = vmatmul.mubr.bf16.gmra.mrb[0].mxu0 %v6218
      %v6365 = vpop.f32.mrb[0].mxu0
      %v6366 = vadd.f32 0.0, %v6365
      %v6367 = vpop.f32.mrb[0].mxu0
      %v6368 = vpop.f32.mrb[0].mxu0
      %v6369 = vadd.f32 0.0, %v6368
      %v6370 = vpop.f32.mrb[0].mxu0
      %6371 = vmatprep.mubr.bf16.mxu0 0
      %6372 = vmatmul.mubr.bf16.gmra.mrb[0].mxu0 %v6219
      %v6373 = vpop.f32.mrb[0].mxu0
      %v6374 = vadd.f32 0.0, %v6373
      %v6375 = vpop.f32.mrb[0].mxu0
      %v6376 = vpop.f32.mrb[0].mxu0
      %v6377 = vadd.f32 0.0, %v6376
      %v6378 = vpop.f32.mrb[0].mxu0
      %6379 = vmatprep.mubr.bf16.mxu0 0
      %6380 = vmatmul.mubr.bf16.gmra.mrb[0].mxu0 %v6220
      %v6381 = vpop.f32.mrb[0].mxu0
      %v6382 = vadd.f32 0.0, %v6381
      %v6383 = vpop.f32.mrb[0].mxu0
      %v6384 = vpop.f32.mrb[0].mxu0
      %v6385 = vadd.f32 0.0, %v6384
      %v6386 = vpop.f32.mrb[0].mxu0
      %6387 = vmatprep.mubr.bf16.mxu0 0
      %6388 = vmatmul.mubr.bf16.gmra.mrb[0].mxu0 %v6221
      %v6389 = vpop.f32.mrb[0].mxu0
      %v6390 = vadd.f32 0.0, %v6389
      %v6391 = vpop.f32.mrb[0].mxu0
      %v6392 = vpop.f32.mrb[0].mxu0
      %v6393 = vadd.f32 0.0, %v6392
      %v6394 = vpop.f32.mrb[0].mxu0
      %6395 = vmatprep.mubr.bf16.mxu0 0
      %6396 = vmatmul.mubr.bf16.gmra.mrb[0].mxu0 %v6222
      %v6397 = vpop.f32.mrb[0].mxu0
      %v6398 = vadd.f32 0.0, %v6397
      %v6399 = vpop.f32.mrb[0].mxu0
      %v6400 = vpop.f32.mrb[0].mxu0
      %v6401 = vadd.f32 0.0, %v6400
      %v6402 = vpop.f32.mrb[0].mxu0
      %6403 = vmatprep.mubr.bf16.mxu0 0
      %6404 = vmatmul.mubr.bf16.gmra.mrb[0].mxu0 %v6223
      %v6405 = vpop.f32.mrb[0].mxu0
      %v6406 = vadd.f32 0.0, %v6405
      %v6407 = vpop.f32.mrb[0].mxu0
      %v6408 = vpop.f32.mrb[0].mxu0
      %v6409 = vadd.f32 0.0, %v6408
      %v6410 = vpop.f32.mrb[0].mxu0
      %6411 = vmatprep.mubr.bf16.mxu0 0
      %6412 = vmatmul.mubr.bf16.gmra.mrb[0].mxu0 %v6224
      %v6413 = vpop.f32.mrb[0].mxu0
      %v6414 = vadd.f32 0.0, %v6413
      %v6415 = vpop.f32.mrb[0].mxu0
      %v6416 = vpop.f32.mrb[0].mxu0
      %v6417 = vadd.f32 0.0, %v6416
      %v6418 = vpop.f32.mrb[0].mxu0
      %6419 = vmatprep.mubr.bf16.mxu0 0
      %6420 = vmatmul.mubr.bf16.gmra.mrb[0].mxu0 %v6225
      %v6421 = vpop.f32.mrb[0].mxu0
      %v6422 = vadd.f32 0.0, %v6421
      %v6423 = vpop.f32.mrb[0].mxu0
      %v6424 = vpop.f32.mrb[0].mxu0
      %v6425 = vadd.f32 0.0, %v6424
      %v6426 = vpop.f32.mrb[0].mxu0
      %6427 = vmatprep.mubr.bf16.mxu0 0
      %6428 = vmatmul.mubr.bf16.gmra.mrb[0].mxu0 %v6226
      %v6429 = vpop.f32.mrb[0].mxu0
      %v6430 = vadd.f32 0.0, %v6429
      %v6431 = vpop.f32.mrb[0].mxu0
      %v6432 = vpop.f32.mrb[0].mxu0
      %v6433 = vadd.f32 0.0, %v6432
      %v6434 = vpop.f32.mrb[0].mxu0
      %6435 = vdwg.mxu0
      %v6436 = vld [vmem:[#allocation3] sm:$0xff]
      %v6437 = vld [vmem:[#allocation3 + $0x8] sm:$0xff]
      %v6438 = vld [vmem:[#allocation3 + $0x10] sm:$0xff]
      %v6439 = vld [vmem:[#allocation3 + $0x18] sm:$0xff]
      %v6440 = vld [vmem:[#allocation3 + $0x20] sm:$0xff]
      %v6441 = vld [vmem:[#allocation3 + $0x28] sm:$0xff]
      %v6442 = vld [vmem:[#allocation3 + $0x30] sm:$0xff]
      %v6443 = vld [vmem:[#allocation3 + $0x38] sm:$0xff]
      %v6444 = vld [vmem:[#allocation3 + $0x40] sm:$0xff]
      %v6445 = vld [vmem:[#allocation3 + $0x48] sm:$0xff]
      %v6446 = vld [vmem:[#allocation3 + $0x50] sm:$0xff]
      %v6447 = vld [vmem:[#allocation3 + $0x58] sm:$0xff]
      %v6448 = vld [vmem:[#allocation3 + $0x60] sm:$0xff]
      %v6449 = vld [vmem:[#allocation3 + $0x68] sm:$0xff]
      %v6450 = vld [vmem:[#allocation3 + $0x70] sm:$0xff]
      %v6451 = vld [vmem:[#allocation3 + $0x78] sm:$0xff]
      %v6452 = vld [vmem:[#allocation3 + $0x80] sm:$0xff]
      %v6453 = vld [vmem:[#allocation3 + $0x88] sm:$0xff]
      %v6454 = vld [vmem:[#allocation3 + $0x90] sm:$0xff]
      %v6455 = vld [vmem:[#allocation3 + $0x98] sm:$0xff]
      %v6456 = vld [vmem:[#allocation3 + $0xa0] sm:$0xff]
      %v6457 = vld [vmem:[#allocation3 + $0xa8] sm:$0xff]
      %v6458 = vld [vmem:[#allocation3 + $0xb0] sm:$0xff]
      %v6459 = vld [vmem:[#allocation3 + $0xb8] sm:$0xff]
      %v6460 = vld [vmem:[#allocation3 + $0xc0] sm:$0xff]
      %v6461 = vld [vmem:[#allocation3 + $0xc8] sm:$0xff]
      %v6462 = vld [vmem:[#allocation3 + $0xd0] sm:$0xff]
      %v6463 = vld [vmem:[#allocation3 + $0xd8] sm:$0xff]
      %v6464 = vld [vmem:[#allocation3 + $0xe0] sm:$0xff]
      %v6465 = vld [vmem:[#allocation3 + $0xe8] sm:$0xff]
      %v6466 = vld [vmem:[#allocation3 + $0xf0] sm:$0xff]
      %v6467 = vld [vmem:[#allocation3 + $0xf8] sm:$0xff]
      %v6468 = vadd.f32 %v6436, %v6310
      %v6469 = vadd.f32 %v6437, %v6313
      %v6470 = vadd.f32 %v6438, %v6318
      %v6471 = vadd.f32 %v6439, %v6321
      %v6472 = vadd.f32 %v6440, %v6326
      %v6473 = vadd.f32 %v6441, %v6329
      %v6474 = vadd.f32 %v6442, %v6334
      %v6475 = vadd.f32 %v6443, %v6337
      %v6476 = vadd.f32 %v6444, %v6342
      %v6477 = vadd.f32 %v6445, %v6345
      %v6478 = vadd.f32 %v6446, %v6350
      %v6479 = vadd.f32 %v6447, %v6353
      %v6480 = vadd.f32 %v6448, %v6358
      %v6481 = vadd.f32 %v6449, %v6361
      %v6482 = vadd.f32 %v6450, %v6366
      %v6483 = vadd.f32 %v6451, %v6369
      %v6484 = vadd.f32 %v6452, %v6374
      %v6485 = vadd.f32 %v6453, %v6377
      %v6486 = vadd.f32 %v6454, %v6382
      %v6487 = vadd.f32 %v6455, %v6385
      %v6488 = vadd.f32 %v6456, %v6390
      %v6489 = vadd.f32 %v6457, %v6393
      %v6490 = vadd.f32 %v6458, %v6398
      %v6491 = vadd.f32 %v6459, %v6401
      %v6492 = vadd.f32 %v6460, %v6406
      %v6493 = vadd.f32 %v6461, %v6409
      %v6494 = vadd.f32 %v6462, %v6414
      %v6495 = vadd.f32 %v6463, %v6417
      %v6496 = vadd.f32 %v6464, %v6422
      %v6497 = vadd.f32 %v6465, %v6425
      %v6498 = vadd.f32 %v6466, %v6430
      %v6499 = vadd.f32 %v6467, %v6433
      %6500 = vst [vmem:[#allocation3] sm:$0xff] %v6468
      %6501 = vst [vmem:[#allocation3 + $0x8] sm:$0xff] %v6469
      %6502 = vst [vmem:[#allocation3 + $0x10] sm:$0xff] %v6470
      %6503 = vst [vmem:[#allocation3 + $0x18] sm:$0xff] %v6471
      %6504 = vst [vmem:[#allocation3 + $0x20] sm:$0xff] %v6472
      %6505 = vst [vmem:[#allocation3 + $0x28] sm:$0xff] %v6473
      %6506 = vst [vmem:[#allocation3 + $0x30] sm:$0xff] %v6474
      %6507 = vst [vmem:[#allocation3 + $0x38] sm:$0xff] %v6475
      %6508 = vst [vmem:[#allocation3 + $0x40] sm:$0xff] %v6476
      %6509 = vst [vmem:[#allocation3 + $0x48] sm:$0xff] %v6477
      %6510 = vst [vmem:[#allocation3 + $0x50] sm:$0xff] %v6478
      %6511 = vst [vmem:[#allocation3 + $0x58] sm:$0xff] %v6479
      %6512 = vst [vmem:[#allocation3 + $0x60] sm:$0xff] %v6480
      %6513 = vst [vmem:[#allocation3 + $0x68] sm:$0xff] %v6481
      %6514 = vst [vmem:[#allocation3 + $0x70] sm:$0xff] %v6482
      %6515 = vst [vmem:[#allocation3 + $0x78] sm:$0xff] %v6483
      %6516 = vst [vmem:[#allocation3 + $0x80] sm:$0xff] %v6484
      %6517 = vst [vmem:[#allocation3 + $0x88] sm:$0xff] %v6485
      %6518 = vst [vmem:[#allocation3 + $0x90] sm:$0xff] %v6486
      %6519 = vst [vmem:[#allocation3 + $0x98] sm:$0xff] %v6487
      %6520 = vst [vmem:[#allocation3 + $0xa0] sm:$0xff] %v6488
      %6521 = vst [vmem:[#allocation3 + $0xa8] sm:$0xff] %v6489
      %6522 = vst [vmem:[#allocation3 + $0xb0] sm:$0xff] %v6490
      %6523 = vst [vmem:[#allocation3 + $0xb8] sm:$0xff] %v6491
      %6524 = vst [vmem:[#allocation3 + $0xc0] sm:$0xff] %v6492
      %6525 = vst [vmem:[#allocation3 + $0xc8] sm:$0xff] %v6493
      %6526 = vst [vmem:[#allocation3 + $0xd0] sm:$0xff] %v6494
      %6527 = vst [vmem:[#allocation3 + $0xd8] sm:$0xff] %v6495
      %6528 = vst [vmem:[#allocation3 + $0xe0] sm:$0xff] %v6496
      %6529 = vst [vmem:[#allocation3 + $0xe8] sm:$0xff] %v6497
      %6530 = vst [vmem:[#allocation3 + $0xf0] sm:$0xff] %v6498
      %6531 = vst [vmem:[#allocation3 + $0xf8] sm:$0xff] %v6499
      %p6532 = scmp.eq.s32.totalorder %s20, 1
      // Predicated region
      $region41: #{residual_stack.1} parent=35 // pred_check
        %p6533 = pneg %p6532
      $region42: #{residual_stack.1} parent=35 // pred_check_branch
        %6535 = sbr.rel (%p6533) target = $region44
      $region43: #{residual_stack.1} parent=35 // pred_region
        %v6536 = vld [vmem:[#allocation3] sm:$0xff]
        %v6537 = vld [vmem:[#allocation3 + $0x8] sm:$0xff]
        %v6538 = vld [vmem:[#allocation3 + $0x10] sm:$0xff]
        %v6539 = vld [vmem:[#allocation3 + $0x18] sm:$0xff]
        %v6540 = vld [vmem:[#allocation3 + $0x20] sm:$0xff]
        %v6541 = vld [vmem:[#allocation3 + $0x28] sm:$0xff]
        %v6542 = vld [vmem:[#allocation3 + $0x30] sm:$0xff]
        %v6543 = vld [vmem:[#allocation3 + $0x38] sm:$0xff]
        %v6544 = vld [vmem:[#allocation3 + $0x40] sm:$0xff]
        %v6545 = vld [vmem:[#allocation3 + $0x48] sm:$0xff]
        %v6546 = vld [vmem:[#allocation3 + $0x50] sm:$0xff]
        %v6547 = vld [vmem:[#allocation3 + $0x58] sm:$0xff]
        %v6548 = vld [vmem:[#allocation3 + $0x60] sm:$0xff]
        %v6549 = vld [vmem:[#allocation3 + $0x68] sm:$0xff]
        %v6550 = vld [vmem:[#allocation3 + $0x70] sm:$0xff]
        %v6551 = vld [vmem:[#allocation3 + $0x78] sm:$0xff]
        %v6552 = vld [vmem:[#allocation3 + $0x80] sm:$0xff]
        %v6553 = vld [vmem:[#allocation3 + $0x88] sm:$0xff]
        %v6554 = vld [vmem:[#allocation3 + $0x90] sm:$0xff]
        %v6555 = vld [vmem:[#allocation3 + $0x98] sm:$0xff]
        %v6556 = vld [vmem:[#allocation3 + $0xa0] sm:$0xff]
        %v6557 = vld [vmem:[#allocation3 + $0xa8] sm:$0xff]
        %v6558 = vld [vmem:[#allocation3 + $0xb0] sm:$0xff]
        %v6559 = vld [vmem:[#allocation3 + $0xb8] sm:$0xff]
        %v6560 = vld [vmem:[#allocation3 + $0xc0] sm:$0xff]
        %v6561 = vld [vmem:[#allocation3 + $0xc8] sm:$0xff]
        %v6562 = vld [vmem:[#allocation3 + $0xd0] sm:$0xff]
        %v6563 = vld [vmem:[#allocation3 + $0xd8] sm:$0xff]
        %v6564 = vld [vmem:[#allocation3 + $0xe0] sm:$0xff]
        %v6565 = vld [vmem:[#allocation3 + $0xe8] sm:$0xff]
        %v6566 = vld [vmem:[#allocation3 + $0xf0] sm:$0xff]
        %v6567 = vld [vmem:[#allocation3 + $0xf8] sm:$0xff]
        %v6568 = vmax.f32 %v6536, 0.0
        %v6569 = vmax.f32 %v6537, 0.0
        %v6570 = vmax.f32 %v6538, 0.0
        %v6571 = vmax.f32 %v6539, 0.0
        %v6572 = vmax.f32 %v6540, 0.0
        %v6573 = vmax.f32 %v6541, 0.0
        %v6574 = vmax.f32 %v6542, 0.0
        %v6575 = vmax.f32 %v6543, 0.0
        %v6576 = vmax.f32 %v6544, 0.0
        %v6577 = vmax.f32 %v6545, 0.0
        %v6578 = vmax.f32 %v6546, 0.0
        %v6579 = vmax.f32 %v6547, 0.0
        %v6580 = vmax.f32 %v6548, 0.0
        %v6581 = vmax.f32 %v6549, 0.0
        %v6582 = vmax.f32 %v6550, 0.0
        %v6583 = vmax.f32 %v6551, 0.0
        %v6584 = vmax.f32 %v6552, 0.0
        %v6585 = vmax.f32 %v6553, 0.0
        %v6586 = vmax.f32 %v6554, 0.0
        %v6587 = vmax.f32 %v6555, 0.0
        %v6588 = vmax.f32 %v6556, 0.0
        %v6589 = vmax.f32 %v6557, 0.0
        %v6590 = vmax.f32 %v6558, 0.0
        %v6591 = vmax.f32 %v6559, 0.0
        %v6592 = vmax.f32 %v6560, 0.0
        %v6593 = vmax.f32 %v6561, 0.0
        %v6594 = vmax.f32 %v6562, 0.0
        %v6595 = vmax.f32 %v6563, 0.0
        %v6596 = vmax.f32 %v6564, 0.0
        %v6597 = vmax.f32 %v6565, 0.0
        %v6598 = vmax.f32 %v6566, 0.0
        %v6599 = vmax.f32 %v6567, 0.0
        %6600 = vst [vmem:[%s249] sm:$0xff] %v6568
        %6601 = vst [vmem:[%s249 + $0x8] sm:$0xff] %v6569
        %6602 = vst [vmem:[%s249 + $0x10] sm:$0xff] %v6570
        %6603 = vst [vmem:[%s249 + $0x18] sm:$0xff] %v6571
        %6604 = vst [vmem:[%s249 + $0x20] sm:$0xff] %v6572
        %6605 = vst [vmem:[%s249 + $0x28] sm:$0xff] %v6573
        %6606 = vst [vmem:[%s249 + $0x30] sm:$0xff] %v6574
        %6607 = vst [vmem:[%s249 + $0x38] sm:$0xff] %v6575
        %6608 = vst [vmem:[%s249 + $0x40] sm:$0xff] %v6576
        %6609 = vst [vmem:[%s249 + $0x48] sm:$0xff] %v6577
        %6610 = vst [vmem:[%s249 + $0x50] sm:$0xff] %v6578
        %6611 = vst [vmem:[%s249 + $0x58] sm:$0xff] %v6579
        %6612 = vst [vmem:[%s249 + $0x60] sm:$0xff] %v6580
        %6613 = vst [vmem:[%s249 + $0x68] sm:$0xff] %v6581
        %6614 = vst [vmem:[%s249 + $0x70] sm:$0xff] %v6582
        %6615 = vst [vmem:[%s249 + $0x78] sm:$0xff] %v6583
        %6616 = vst [vmem:[%s249 + $0x80] sm:$0xff] %v6584
        %6617 = vst [vmem:[%s249 + $0x88] sm:$0xff] %v6585
        %6618 = vst [vmem:[%s249 + $0x90] sm:$0xff] %v6586
        %6619 = vst [vmem:[%s249 + $0x98] sm:$0xff] %v6587
        %6620 = vst [vmem:[%s249 + $0xa0] sm:$0xff] %v6588
        %6621 = vst [vmem:[%s249 + $0xa8] sm:$0xff] %v6589
        %6622 = vst [vmem:[%s249 + $0xb0] sm:$0xff] %v6590
        %6623 = vst [vmem:[%s249 + $0xb8] sm:$0xff] %v6591
        %6624 = vst [vmem:[%s249 + $0xc0] sm:$0xff] %v6592
        %6625 = vst [vmem:[%s249 + $0xc8] sm:$0xff] %v6593
        %6626 = vst [vmem:[%s249 + $0xd0] sm:$0xff] %v6594
        %6627 = vst [vmem:[%s249 + $0xd8] sm:$0xff] %v6595
        %6628 = vst [vmem:[%s249 + $0xe0] sm:$0xff] %v6596
        %6629 = vst [vmem:[%s249 + $0xe8] sm:$0xff] %v6597
        %6630 = vst [vmem:[%s249 + $0xf0] sm:$0xff] %v6598
        %6631 = vst [vmem:[%s249 + $0xf8] sm:$0xff] %v6599
      $region44: #{residual_stack.1} parent=35 // pred_fallthru
        _
      %p6632 = scmp.lt.s32.totalorder %s19, 1
      %s6633 = scalar_select %p6632, %s19, 1
      %s6634 = smul.addr %s6633, 32
      %s6635 = smul.addr %s6634, 8
      %s6636 = scalar_lea.vmem %s4, %s6635
      // Predicated region
      $region45: #{residual_stack.1} parent=35 // pred_check
        %p6637 = pneg %p144
      $region46: #{residual_stack.1} parent=35 // pred_check_branch
        %6639 = sbr.rel (%p6637) target = $region48
      $region47: #{residual_stack.1} parent=35 // pred_region
        _
      $region48: #{residual_stack.1} parent=35 // pred_fallthru
        _
    $region36: #{residual_stack.1} parent=5 // pred_fallthru
      _
    %p6640 = scmp.le.s32.totalorder 2, %s10
    // Predicated region
    $region49: #{residual_stack.1} parent=5 // pred_check
      %p6641 = pneg %p6640
    $region50: #{residual_stack.1} parent=5 // pred_check_branch
      %6643 = sbr.rel (%p6641) target = $region52
    $region51: #{residual_stack.1} parent=5 // pred_region
      %s6644 = ssub.s32 %s10, 2
      // Predicated region
      $region53: #{residual_stack.1} parent=51 // pred_check
        %p6645 = pneg %p150
      $region54: #{residual_stack.1} parent=51 // pred_check_branch
        %6647 = sbr.rel (%p6645) target = $region56
      $region55: #{residual_stack.1} parent=51 // pred_region
        %p6648 = scmp.lt.s32.totalorder %s21, 1
        %s6649 = scalar_select %p6648, %s21, 1
        %s6650 = smul.addr %s6649, 32
        %s6651 = smul.addr %s6650, 8
        %s6652 = scalar_lea.vmem %s4, %s6651
      $region56: #{residual_stack.1} parent=51 // pred_fallthru
        _
    $region52: #{residual_stack.1} parent=5 // pred_fallthru
      _
  $region6: #{residual_stack.1} parent=0 // loop_footer
    %s14 = sadd.s32 1, %s10
  $region7: #{residual_stack.1} parent=0 // loop_footer_branch
    %9 = sbr.rel target = $region3
  $region8: #{residual_stack.1} parent=0 // loop_exit
    _

</llo_original>
